<compile_context>
chip_gen: v6e
topology: v6e:2x2x1
jax: 0.10.0
libtpu: 0.0.40
codegen_flags: <defaults>
</compile_context>

<pallas_src>
import functools

import jax
import jax.numpy as jnp
from jax import lax
from jax.experimental import pallas as pl
from jax.experimental.pallas import tpu as pltpu

# Stand-ins for get_parameters()
INPUT_DAYS = 4
CONV_CHANNEL = 4
OUTPUT_DAYS = 4
BN_EPS = 1e-5

# 3x3 tap offsets; tap index t = (dy+1)*3 + (dx+1) matches HWIO weight order.
_TAPS = tuple((dy, dx) for dy in (-1, 0, 1) for dx in (-1, 0, 1))


def _round_up(x, m):
    return -(-x // m) * m


# ----------------------------------------------------------------------------
# Fused whole-network Pallas kernel (one block of B images per grid step)
# ----------------------------------------------------------------------------
def _encoder_kernel(x_ref, w_ref, b_ref, m_ref, o_ref, col_ref, *, H, W, B, meta):
    """Fused forward pass on one lane-dense block of B images.

    x_ref  : (Cin0_pad, B*H*W)  f32 input activations (conv1 channels padded)
    w_ref  : (L, Cout_max, K_max) folded conv+BN weights (col dtype)
    b_ref  : (L, Cout_max, 1)     folded BN biases, f32
    m_ref  : (9*Cin_max, B*H*W)   per-tap boundary masks, f32
    o_ref  : (Cout_last, B*H*W)   output
    col_ref: (9*Cin_max, B*H*W)   im2col scratch (col dtype)
    meta   : tuple of (cout, cin) per layer (static)
    """
    BP = B * H * W
    cin_max = m_ref.shape[0] // 9
    # Per-tap roll amounts along the concatenated B*H*W axis. Cross-image and
    # end-of-axis wraps land on lanes that the masks zero out.
    shifts = [(-(dy * W + dx)) % BP for dy, dx in _TAPS]

    def conv_bn(x, li, relu):
        """3x3 'same' conv + folded BN (+ optional ReLU) on a (Cin, BP) act."""
        cout, cin = meta[li]
        k = 9 * cin
        for t in range(9):
            if shifts[t] == 0:                      # centre tap: identity
                xs = x
            else:
                xs = (pltpu.roll(x, shift=shifts[t], axis=1)
                      * m_ref[t * cin_max:t * cin_max + cin, :])
            col_ref[t * cin:(t + 1) * cin, :] = xs.astype(col_ref.dtype)
        # One MXU contraction per conv: (Cout, 9*Cin) @ (9*Cin, B*H*W).
        y = lax.dot_general(
            w_ref[li, :cout, :k], col_ref[0:k, :],
            dimension_numbers=(((1,), (0,)), ((), ())),
            preferred_element_type=jnp.float32)
        y = y + b_ref[li, :cout, :]                 # (Cout, 1) folded-BN bias
        if relu:
            y = jnp.maximum(y, 0.0)
        return y

    def resblock(x, li):
        # conv-BN-ReLU, conv-BN, residual add (no ReLU after the add).
        h = conv_bn(x, li, relu=True)
        h = conv_bn(h, li + 1, relu=False)
        return h + x

    f = conv_bn(x_ref[...], 0, relu=True)           # conv1 + bn1 + relu
    f = resblock(f, 1)                              # ResBlock_1[0]
    f = resblock(f, 3)                              # ResBlock_1[1]
    f = conv_bn(f, 5, relu=True)                    # conv2 + bn2 + relu
    f = resblock(f, 6)                              # ResBlock_2[0]
    f = resblock(f, 8)                              # ResBlock_2[1]
    f = conv_bn(f, 10, relu=False)                  # conv3 (no BN / ReLU)
    o_ref[...] = f.astype(o_ref.dtype)


# ----------------------------------------------------------------------------
# Parameter folding (eval-mode BN folded into conv weights) + stacking
# ----------------------------------------------------------------------------
def _fold_conv_bn(w_hwio, bn):
    """(3,3,Cin,Cout) HWIO weight + BN -> ((Cout,9,Cin) weight, (Cout,) bias)."""
    cin, cout = w_hwio.shape[2], w_hwio.shape[3]
    if bn is None:
        scale = jnp.ones((cout,), jnp.float32)
        bias = jnp.zeros((cout,), jnp.float32)
    else:
        scale = bn["gamma"] / jnp.sqrt(bn["var"] + BN_EPS)
        bias = bn["beta"] - bn["mean"] * scale
    w = w_hwio.astype(jnp.float32) * scale                    # per-Cout scale
    w = jnp.transpose(w, (3, 0, 1, 2)).reshape(cout, 9, cin)  # (Cout, 9, Cin)
    return w, bias.astype(jnp.float32)


def _fold_layers(params):
    layers = [_fold_conv_bn(params["conv1_w"], params["bn1"])]
    for rb in (params["rb1a"], params["rb1b"]):
        layers.append(_fold_conv_bn(rb["w1"], rb["bn1"]))
        layers.append(_fold_conv_bn(rb["w2"], rb["bn2"]))
    layers.append(_fold_conv_bn(params["conv2_w"], params["bn2"]))
    for rb in (params["rb2a"], params["rb2b"]):
        layers.append(_fold_conv_bn(rb["w1"], rb["bn1"]))
        layers.append(_fold_conv_bn(rb["w2"], rb["bn2"]))
    layers.append(_fold_conv_bn(params["conv3_w"], None))
    return layers


def _stack_layers(layers, pcins):
    """Zero-pad & stack all layers into (L,Cout_max,K_max) / (L,Cout_max,1)."""
    couts = [w.shape[0] for w, _ in layers]
    cout_max = max(couts)
    k_max = 9 * max(pcins)
    L = len(layers)
    w_stack = jnp.zeros((L, cout_max, k_max), jnp.float32)
    b_stack = jnp.zeros((L, cout_max, 1), jnp.float32)
    for i, (w, bias) in enumerate(layers):
        cout, _, cin = w.shape
        pcin = pcins[i]
        wp = jnp.zeros((cout, 9, pcin), jnp.float32).at[:, :, :cin].set(w)
        w_stack = w_stack.at[i, :cout, :9 * pcin].set(wp.reshape(cout, 9 * pcin))
        b_stack = b_stack.at[i, :cout, 0].set(bias)
    return w_stack, b_stack


def _build_masks(h, w, b, cin_max):
    """(9*cin_max, b*h*w) f32 boundary masks, one cin_max-row block per tap."""
    p = h * w
    pos = jnp.arange(b * p, dtype=jnp.int32) % p        # within-image position
    row = pos // w
    col = pos % w
    blocks = []
    for dy, dx in _TAPS:
        ok = ((row + dy >= 0) & (row + dy < h) &
              (col + dx >= 0) & (col + dx < w))
        blocks.append(jnp.broadcast_to(ok.astype(jnp.float32)[None, :],
                                       (cin_max, b * p)))
    return jnp.concatenate(blocks, axis=0)


# ----------------------------------------------------------------------------
# Wrapper
# ----------------------------------------------------------------------------
def encoder_forward(x_nchw, params, *, batch_block=8, col_dtype=jnp.float32):
    """x_nchw: (N, input_days, H, W) -> (N, output_days, H, W).

    col_dtype=jnp.bfloat16 halves im2col traffic on v6e/v7x (keep f32 on v5e).
    """
    n, c0, h, w = x_nchw.shape
    p = h * w

    # Batch block: B images per grid step; keep >=2 grid steps so both v7x
    # TensorCores get work under dimension_semantics=("parallel",).
    if n <= 1:
        b = 1
    else:
        b = max(1, min(batch_block, -(-n // 2)))
    g = -(-n // b)
    n_pad = g * b
    bp = b * p

    layers = _fold_layers(params)
    cins = [wm.shape[2] for wm, _ in layers]
    couts = [wm.shape[0] for wm, _ in layers]
    c0p = _round_up(cins[0], 8)                  # pad conv1 Cin -> aligned taps
    pcins = [c0p] + cins[1:]
    meta = tuple(zip(couts, pcins))
    cout_final = couts[-1]
    cin_max = max(pcins)

    w_stack, b_stack = _stack_layers(layers, pcins)
    w_stack = w_stack.astype(col_dtype)
    masks = _build_masks(h, w, b, cin_max)

    # NCHW -> (G, C_pad, B*P): batch-pad, channel-pad, pack B images on lanes.
    x = x_nchw.reshape(n, c0, p).astype(jnp.float32)
    if n_pad != n:
        x = jnp.concatenate([x, jnp.zeros((n_pad - n, c0, p), jnp.float32)], 0)
    if c0p != c0:
        x = jnp.concatenate([x, jnp.zeros((n_pad, c0p - c0, p), jnp.float32)], 1)
    x = x.reshape(g, b, c0p, p).transpose(0, 2, 1, 3).reshape(g, c0p, bp)

    out = pl.pallas_call(
        functools.partial(_encoder_kernel, H=h, W=w, B=b, meta=meta),
        out_shape=jax.ShapeDtypeStruct((g, cout_final, bp), jnp.float32),
        grid_spec=pltpu.PrefetchScalarGridSpec(
            num_scalar_prefetch=0,
            grid=(g,),
            in_specs=[
                pl.BlockSpec((pl.Squeezed(), c0p, bp), lambda i: (i, 0, 0)),
                pl.BlockSpec(w_stack.shape, lambda i: (0, 0, 0)),
                pl.BlockSpec(b_stack.shape, lambda i: (0, 0, 0)),
                pl.BlockSpec(masks.shape, lambda i: (0, 0)),
            ],
            out_specs=pl.BlockSpec((pl.Squeezed(), cout_final, bp),
                                   lambda i: (i, 0, 0)),
            scratch_shapes=[pltpu.VMEM((9 * cin_max, bp), col_dtype)],
        ),
        compiler_params=pltpu.CompilerParams(
            dimension_semantics=("parallel",)),
    )(x, w_stack, b_stack, masks)

    out = out.reshape(g, cout_final, b, p).transpose(0, 2, 1, 3)
    return out.reshape(n_pad, cout_final, h, w)[:n]


# ----------------------------------------------------------------------------
# Pure-JAX reference (XLA convs) for validation
# ----------------------------------------------------------------------------
def _ref_conv_bn(x, w, scale, bias, *, relu, residual=None):
    y = lax.conv_general_dilated(
        x, w, window_strides=(1, 1), padding="SAME",
        dimension_numbers=("NHWC", "HWIO", "NHWC"))
    y = y * scale + bias
    if relu:
        y = jnp.maximum(y, 0.0)
    if residual is not None:
        y = y + residual
    return y


def encoder_forward_ref(x_nchw, params):
    def fold(bn):
        scale = bn["gamma"] / jnp.sqrt(bn["var"] + BN_EPS)
        return scale, bn["beta"] - bn["mean"] * scale

    x = jnp.transpose(x_nchw, (0, 2, 3, 1))            # NCHW -> NHWC

    def resblock(xx, rb):
        s1, b1 = fold(rb["bn1"])
        s2, b2 = fold(rb["bn2"])
        hh = _ref_conv_bn(xx, rb["w1"], s1, b1, relu=True)
        return _ref_conv_bn(hh, rb["w2"], s2, b2, relu=False, residual=xx)

    s1, b1 = fold(params["bn1"])
    f = _ref_conv_bn(x, params["conv1_w"], s1, b1, relu=True)
    f = resblock(f, params["rb1a"])
    f = resblock(f, params["rb1b"])

    s2, b2 = fold(params["bn2"])
    f = _ref_conv_bn(f, params["conv2_w"], s2, b2, relu=True)
    f = resblock(f, params["rb2a"])
    f = resblock(f, params["rb2b"])

    c3 = params["conv3_w"]
    ones = jnp.ones((c3.shape[-1],), jnp.float32)
    zeros = jnp.zeros((c3.shape[-1],), jnp.float32)
    f = _ref_conv_bn(f, c3, ones, zeros, relu=False)    # conv3: no BN/ReLU
    return jnp.transpose(f, (0, 3, 1, 2))               # NHWC -> NCHW


# ----------------------------------------------------------------------------
# Deterministic parameter initialization (shapes per the PyTorch __init__)
# ----------------------------------------------------------------------------
def make_params(key):
    keys = iter(jax.random.split(key, 64))

    def conv_w(cin, cout):
        # (3,3,Cin,Cout) == transposed PyTorch (Cout,Cin,3,3)
        return 0.1 * jax.random.normal(next(keys), (3, 3, cin, cout), jnp.float32)

    def bn(c):
        return dict(
            gamma=1.0 + 0.1 * jax.random.normal(next(keys), (c,), jnp.float32),
            beta=0.1 * jax.random.normal(next(keys), (c,), jnp.float32),
            mean=0.1 * jax.random.normal(next(keys), (c,), jnp.float32),
            var=1.0 + 0.1 * jnp.abs(jax.random.normal(next(keys), (c,), jnp.float32)),
        )

    def rb(c):
        return dict(w1=conv_w(c, c), bn1=bn(c), w2=conv_w(c, c), bn2=bn(c))

    c2 = CONV_CHANNEL * 2
    c4 = CONV_CHANNEL * 4
    return dict(
        conv1_w=conv_w(INPUT_DAYS, c2), bn1=bn(c2),
        rb1a=rb(c2), rb1b=rb(c2),
        conv2_w=conv_w(c2, c4), bn2=bn(c4),
        rb2a=rb(c4), rb2b=rb(c4),
        conv3_w=conv_w(c4, OUTPUT_DAYS),
    )


if __name__ == "__main__":
    key = jax.random.PRNGKey(0)
    kp, kx, kx2 = jax.random.split(key, 3)
    params = make_params(kp)

    # Primary check: batch=2 (B=1 per step, grid=2 -> feeds both v7x TCs).
    x = jax.random.normal(kx, (2, INPUT_DAYS, 16, 16), jnp.float32)
    out = jax.block_until_ready(encoder_forward(x, params))
    ref = jax.block_until_ready(encoder_forward_ref(x, params))
    assert out.shape == (2, OUTPUT_DAYS, 16, 16), out.shape
    assert jnp.allclose(out, ref, atol=1e-3, rtol=1e-3), (
        float(jnp.max(jnp.abs(out - ref))))

    # Secondary check: batch=5 exercises the multi-image-per-step lane packing
    # (B=3, grid=2) and the batch-padding path of the wrapper.
    x2 = jax.random.normal(kx2, (5, INPUT_DAYS, 16, 16), jnp.float32)
    out2 = jax.block_until_ready(encoder_forward(x2, params))
    ref2 = jax.block_until_ready(encoder_forward_ref(x2, params))
    assert out2.shape == (5, OUTPUT_DAYS, 16, 16), out2.shape
    assert jnp.allclose(out2, ref2, atol=1e-3, rtol=1e-3), (
        float(jnp.max(jnp.abs(out2 - ref2))))

    print("KERNEL_OK")
</pallas_src>

<mosaic_0001>
module attributes {stable_mosaic.version = 11 : i64} {
  func.func @_encoder_kernel(%arg0: i32, %arg1: memref<1x8x256xf32, #tpu.memory_space<vmem>>, %arg2: memref<11x16x144xf32, #tpu.memory_space<vmem>>, %arg3: memref<11x16x1xf32, #tpu.memory_space<vmem>>, %arg4: memref<144x256xf32, #tpu.memory_space<vmem>>, %arg5: memref<1x4x256xf32, #tpu.memory_space<vmem>>, %arg6: memref<144x256xf32, #tpu.memory_space<vmem>>) attributes {dimension_semantics = [#tpu.dimension_semantics<parallel>], iteration_bounds = array<i64: 2>, scalar_prefetch = 0 : i64, scratch_operands = 1 : i64, tpu.core_type = #tpu.core_type<tc>, window_params = [{transform_indices = @transform_0, window_bounds = array<i64: 1, 8, 256>}, {pipeline_mode = #tpu.pipeline_mode<synchronous>, transform_indices = @transform_1, window_bounds = array<i64: 11, 16, 144>}, {pipeline_mode = #tpu.pipeline_mode<synchronous>, transform_indices = @transform_2, window_bounds = array<i64: 11, 16, 1>}, {pipeline_mode = #tpu.pipeline_mode<synchronous>, transform_indices = @transform_3, window_bounds = array<i64: 144, 256>}, {transform_indices = @transform_4, window_bounds = array<i64: 1, 4, 256>}]} {
    %c0 = arith.constant 0 : index
    %c0_0 = arith.constant 0 : index
    %c0_1 = arith.constant 0 : index
    %0 = vector.load %arg1[%c0, %c0_0, %c0_1] : memref<1x8x256xf32, #tpu.memory_space<vmem>>, vector<1x8x256xf32>
    %1 = vector.shape_cast %0 : vector<1x8x256xf32> to vector<8x256xf32>
    %c17_i32 = arith.constant 17 : i32
    %2 = tpu.dynamic_rotate %1 by %c17_i32 dim 1 : vector<8x256xf32>, i32 -> vector<8x256xf32>
    %c0_2 = arith.constant 0 : index
    %c0_3 = arith.constant 0 : index
    %3 = vector.load %arg4[%c0_2, %c0_3] : memref<144x256xf32, #tpu.memory_space<vmem>>, vector<8x256xf32>
    %4 = arith.mulf %2, %3 : vector<8x256xf32>
    %c0_4 = arith.constant 0 : index
    %c0_5 = arith.constant 0 : index
    %5 = vector.load %arg6[%c0_4, %c0_5] : memref<144x256xf32, #tpu.memory_space<vmem>>, vector<8x256xf32>
    tpu.vector_store %arg6[%c0_4, %c0_5], %4 {strides = array<i32>} : memref<144x256xf32, #tpu.memory_space<vmem>>, vector<8x256xf32>,
    %c16_i32 = arith.constant 16 : i32
    %6 = tpu.dynamic_rotate %1 by %c16_i32 dim 1 : vector<8x256xf32>, i32 -> vector<8x256xf32>
    %c16 = arith.constant 16 : index
    %c0_6 = arith.constant 0 : index
    %7 = vector.load %arg4[%c16, %c0_6] : memref<144x256xf32, #tpu.memory_space<vmem>>, vector<8x256xf32>
    %8 = arith.mulf %6, %7 : vector<8x256xf32>
    %c8 = arith.constant 8 : index
    %c0_7 = arith.constant 0 : index
    %9 = vector.load %arg6[%c8, %c0_7] : memref<144x256xf32, #tpu.memory_space<vmem>>, vector<8x256xf32>
    tpu.vector_store %arg6[%c8, %c0_7], %8 {strides = array<i32>} : memref<144x256xf32, #tpu.memory_space<vmem>>, vector<8x256xf32>,
    %c15_i32 = arith.constant 15 : i32
    %10 = tpu.dynamic_rotate %1 by %c15_i32 dim 1 : vector<8x256xf32>, i32 -> vector<8x256xf32>
    %c32 = arith.constant 32 : index
    %c0_8 = arith.constant 0 : index
    %11 = vector.load %arg4[%c32, %c0_8] : memref<144x256xf32, #tpu.memory_space<vmem>>, vector<8x256xf32>
    %12 = arith.mulf %10, %11 : vector<8x256xf32>
    %c16_9 = arith.constant 16 : index
    %c0_10 = arith.constant 0 : index
    %13 = vector.load %arg6[%c16_9, %c0_10] : memref<144x256xf32, #tpu.memory_space<vmem>>, vector<8x256xf32>
    tpu.vector_store %arg6[%c16_9, %c0_10], %12 {strides = array<i32>} : memref<144x256xf32, #tpu.memory_space<vmem>>, vector<8x256xf32>,
    %c1_i32 = arith.constant 1 : i32
    %14 = tpu.dynamic_rotate %1 by %c1_i32 dim 1 : vector<8x256xf32>, i32 -> vector<8x256xf32>
    %c48 = arith.constant 48 : index
    %c0_11 = arith.constant 0 : index
    %15 = vector.load %arg4[%c48, %c0_11] : memref<144x256xf32, #tpu.memory_space<vmem>>, vector<8x256xf32>
    %16 = arith.mulf %14, %15 : vector<8x256xf32>
    %c24 = arith.constant 24 : index
    %c0_12 = arith.constant 0 : index
    %17 = vector.load %arg6[%c24, %c0_12] : memref<144x256xf32, #tpu.memory_space<vmem>>, vector<8x256xf32>
    tpu.vector_store %arg6[%c24, %c0_12], %16 {strides = array<i32>} : memref<144x256xf32, #tpu.memory_space<vmem>>, vector<8x256xf32>,
    %c32_13 = arith.constant 32 : index
    %c0_14 = arith.constant 0 : index
    %18 = vector.load %arg6[%c32_13, %c0_14] : memref<144x256xf32, #tpu.memory_space<vmem>>, vector<8x256xf32>
    tpu.vector_store %arg6[%c32_13, %c0_14], %1 {strides = array<i32>} : memref<144x256xf32, #tpu.memory_space<vmem>>, vector<8x256xf32>,
    %c255_i32 = arith.constant 255 : i32
    %19 = tpu.dynamic_rotate %1 by %c255_i32 dim 1 : vector<8x256xf32>, i32 -> vector<8x256xf32>
    %c80 = arith.constant 80 : index
    %c0_15 = arith.constant 0 : index
    %20 = vector.load %arg4[%c80, %c0_15] : memref<144x256xf32, #tpu.memory_space<vmem>>, vector<8x256xf32>
    %21 = arith.mulf %19, %20 : vector<8x256xf32>
    %c40 = arith.constant 40 : index
    %c0_16 = arith.constant 0 : index
    %22 = vector.load %arg6[%c40, %c0_16] : memref<144x256xf32, #tpu.memory_space<vmem>>, vector<8x256xf32>
    tpu.vector_store %arg6[%c40, %c0_16], %21 {strides = array<i32>} : memref<144x256xf32, #tpu.memory_space<vmem>>, vector<8x256xf32>,
    %c241_i32 = arith.constant 241 : i32
    %23 = tpu.dynamic_rotate %1 by %c241_i32 dim 1 : vector<8x256xf32>, i32 -> vector<8x256xf32>
    %c96 = arith.constant 96 : index
    %c0_17 = arith.constant 0 : index
    %24 = vector.load %arg4[%c96, %c0_17] : memref<144x256xf32, #tpu.memory_space<vmem>>, vector<8x256xf32>
    %25 = arith.mulf %23, %24 : vector<8x256xf32>
    %c48_18 = arith.constant 48 : index
    %c0_19 = arith.constant 0 : index
    %26 = vector.load %arg6[%c48_18, %c0_19] : memref<144x256xf32, #tpu.memory_space<vmem>>, vector<8x256xf32>
    tpu.vector_store %arg6[%c48_18, %c0_19], %25 {strides = array<i32>} : memref<144x256xf32, #tpu.memory_space<vmem>>, vector<8x256xf32>,
    %c240_i32 = arith.constant 240 : i32
    %27 = tpu.dynamic_rotate %1 by %c240_i32 dim 1 : vector<8x256xf32>, i32 -> vector<8x256xf32>
    %c112 = arith.constant 112 : index
    %c0_20 = arith.constant 0 : index
    %28 = vector.load %arg4[%c112, %c0_20] : memref<144x256xf32, #tpu.memory_space<vmem>>, vector<8x256xf32>
    %29 = arith.mulf %27, %28 : vector<8x256xf32>
    %c56 = arith.constant 56 : index
    %c0_21 = arith.constant 0 : index
    %30 = vector.load %arg6[%c56, %c0_21] : memref<144x256xf32, #tpu.memory_space<vmem>>, vector<8x256xf32>
    tpu.vector_store %arg6[%c56, %c0_21], %29 {strides = array<i32>} : memref<144x256xf32, #tpu.memory_space<vmem>>, vector<8x256xf32>,
    %c239_i32 = arith.constant 239 : i32
    %31 = tpu.dynamic_rotate %1 by %c239_i32 dim 1 : vector<8x256xf32>, i32 -> vector<8x256xf32>
    %c128 = arith.constant 128 : index
    %c0_22 = arith.constant 0 : index
    %32 = vector.load %arg4[%c128, %c0_22] : memref<144x256xf32, #tpu.memory_space<vmem>>, vector<8x256xf32>
    %33 = arith.mulf %31, %32 : vector<8x256xf32>
    %c64 = arith.constant 64 : index
    %c0_23 = arith.constant 0 : index
    %34 = vector.load %arg6[%c64, %c0_23] : memref<144x256xf32, #tpu.memory_space<vmem>>, vector<8x256xf32>
    tpu.vector_store %arg6[%c64, %c0_23], %33 {strides = array<i32>} : memref<144x256xf32, #tpu.memory_space<vmem>>, vector<8x256xf32>,
    %c0_24 = arith.constant 0 : index
    %c0_25 = arith.constant 0 : index
    %c0_26 = arith.constant 0 : index
    %35 = vector.load %arg2[%c0_24, %c0_25, %c0_26] : memref<11x16x144xf32, #tpu.memory_space<vmem>>, vector<1x8x72xf32>
    %36 = vector.shape_cast %35 : vector<1x8x72xf32> to vector<8x72xf32>
    %c0_27 = arith.constant 0 : index
    %c0_28 = arith.constant 0 : index
    %37 = vector.load %arg6[%c0_27, %c0_28] : memref<144x256xf32, #tpu.memory_space<vmem>>, vector<72x256xf32>
    %cst = arith.constant dense<0.000000e+00> : vector<8x256xf32>
    %38 = tpu.matmul %36, %37, %cst {dimension_numbers = #tpu.dot_dimension_numbers<[1], [0], [0], [1], [0, 0, 1, 1], [], []>} : vector<8x72xf32>, vector<72x256xf32>, vector<8x256xf32> -> vector<8x256xf32>
    %c0_29 = arith.constant 0 : index
    %c0_30 = arith.constant 0 : index
    %c0_31 = arith.constant 0 : index
    %39 = vector.load %arg3[%c0_29, %c0_30, %c0_31] : memref<11x16x1xf32, #tpu.memory_space<vmem>>, vector<1x8x1xf32>
    %40 = vector.shape_cast %39 : vector<1x8x1xf32> to vector<8x1xf32>
    %41 = vector.broadcast %40 : vector<8x1xf32> to vector<8x256xf32>
    %42 = arith.addf %38, %41 : vector<8x256xf32>
    %cst_32 = arith.constant 0.000000e+00 : f32
    %43 = vector.broadcast %cst_32 : f32 to vector<8x256xf32>
    %44 = arith.maximumf %42, %43 : vector<8x256xf32>
    %c17_i32_33 = arith.constant 17 : i32
    %45 = tpu.dynamic_rotate %44 by %c17_i32_33 dim 1 : vector<8x256xf32>, i32 -> vector<8x256xf32>
    %c0_34 = arith.constant 0 : index
    %c0_35 = arith.constant 0 : index
    %46 = vector.load %arg4[%c0_34, %c0_35] : memref<144x256xf32, #tpu.memory_space<vmem>>, vector<8x256xf32>
    %47 = arith.mulf %45, %46 : vector<8x256xf32>
    %c0_36 = arith.constant 0 : index
    %c0_37 = arith.constant 0 : index
    %48 = vector.load %arg6[%c0_36, %c0_37] : memref<144x256xf32, #tpu.memory_space<vmem>>, vector<8x256xf32>
    tpu.vector_store %arg6[%c0_36, %c0_37], %47 {strides = array<i32>} : memref<144x256xf32, #tpu.memory_space<vmem>>, vector<8x256xf32>,
    %c16_i32_38 = arith.constant 16 : i32
    %49 = tpu.dynamic_rotate %44 by %c16_i32_38 dim 1 : vector<8x256xf32>, i32 -> vector<8x256xf32>
    %c16_39 = arith.constant 16 : index
    %c0_40 = arith.constant 0 : index
    %50 = vector.load %arg4[%c16_39, %c0_40] : memref<144x256xf32, #tpu.memory_space<vmem>>, vector<8x256xf32>
    %51 = arith.mulf %49, %50 : vector<8x256xf32>
    %c8_41 = arith.constant 8 : index
    %c0_42 = arith.constant 0 : index
    %52 = vector.load %arg6[%c8_41, %c0_42] : memref<144x256xf32, #tpu.memory_space<vmem>>, vector<8x256xf32>
    tpu.vector_store %arg6[%c8_41, %c0_42], %51 {strides = array<i32>} : memref<144x256xf32, #tpu.memory_space<vmem>>, vector<8x256xf32>,
    %c15_i32_43 = arith.constant 15 : i32
    %53 = tpu.dynamic_rotate %44 by %c15_i32_43 dim 1 : vector<8x256xf32>, i32 -> vector<8x256xf32>
    %c32_44 = arith.constant 32 : index
    %c0_45 = arith.constant 0 : index
    %54 = vector.load %arg4[%c32_44, %c0_45] : memref<144x256xf32, #tpu.memory_space<vmem>>, vector<8x256xf32>
    %55 = arith.mulf %53, %54 : vector<8x256xf32>
    %c16_46 = arith.constant 16 : index
    %c0_47 = arith.constant 0 : index
    %56 = vector.load %arg6[%c16_46, %c0_47] : memref<144x256xf32, #tpu.memory_space<vmem>>, vector<8x256xf32>
    tpu.vector_store %arg6[%c16_46, %c0_47], %55 {strides = array<i32>} : memref<144x256xf32, #tpu.memory_space<vmem>>, vector<8x256xf32>,
    %c1_i32_48 = arith.constant 1 : i32
    %57 = tpu.dynamic_rotate %44 by %c1_i32_48 dim 1 : vector<8x256xf32>, i32 -> vector<8x256xf32>
    %c48_49 = arith.constant 48 : index
    %c0_50 = arith.constant 0 : index
    %58 = vector.load %arg4[%c48_49, %c0_50] : memref<144x256xf32, #tpu.memory_space<vmem>>, vector<8x256xf32>
    %59 = arith.mulf %57, %58 : vector<8x256xf32>
    %c24_51 = arith.constant 24 : index
    %c0_52 = arith.constant 0 : index
    %60 = vector.load %arg6[%c24_51, %c0_52] : memref<144x256xf32, #tpu.memory_space<vmem>>, vector<8x256xf32>
    tpu.vector_store %arg6[%c24_51, %c0_52], %59 {strides = array<i32>} : memref<144x256xf32, #tpu.memory_space<vmem>>, vector<8x256xf32>,
    %c32_53 = arith.constant 32 : index
    %c0_54 = arith.constant 0 : index
    %61 = vector.load %arg6[%c32_53, %c0_54] : memref<144x256xf32, #tpu.memory_space<vmem>>, vector<8x256xf32>
    tpu.vector_store %arg6[%c32_53, %c0_54], %44 {strides = array<i32>} : memref<144x256xf32, #tpu.memory_space<vmem>>, vector<8x256xf32>,
    %c255_i32_55 = arith.constant 255 : i32
    %62 = tpu.dynamic_rotate %44 by %c255_i32_55 dim 1 : vector<8x256xf32>, i32 -> vector<8x256xf32>
    %c80_56 = arith.constant 80 : index
    %c0_57 = arith.constant 0 : index
    %63 = vector.load %arg4[%c80_56, %c0_57] : memref<144x256xf32, #tpu.memory_space<vmem>>, vector<8x256xf32>
    %64 = arith.mulf %62, %63 : vector<8x256xf32>
    %c40_58 = arith.constant 40 : index
    %c0_59 = arith.constant 0 : index
    %65 = vector.load %arg6[%c40_58, %c0_59] : memref<144x256xf32, #tpu.memory_space<vmem>>, vector<8x256xf32>
    tpu.vector_store %arg6[%c40_58, %c0_59], %64 {strides = array<i32>} : memref<144x256xf32, #tpu.memory_space<vmem>>, vector<8x256xf32>,
    %c241_i32_60 = arith.constant 241 : i32
    %66 = tpu.dynamic_rotate %44 by %c241_i32_60 dim 1 : vector<8x256xf32>, i32 -> vector<8x256xf32>
    %c96_61 = arith.constant 96 : index
    %c0_62 = arith.constant 0 : index
    %67 = vector.load %arg4[%c96_61, %c0_62] : memref<144x256xf32, #tpu.memory_space<vmem>>, vector<8x256xf32>
    %68 = arith.mulf %66, %67 : vector<8x256xf32>
    %c48_63 = arith.constant 48 : index
    %c0_64 = arith.constant 0 : index
    %69 = vector.load %arg6[%c48_63, %c0_64] : memref<144x256xf32, #tpu.memory_space<vmem>>, vector<8x256xf32>
    tpu.vector_store %arg6[%c48_63, %c0_64], %68 {strides = array<i32>} : memref<144x256xf32, #tpu.memory_space<vmem>>, vector<8x256xf32>,
    %c240_i32_65 = arith.constant 240 : i32
    %70 = tpu.dynamic_rotate %44 by %c240_i32_65 dim 1 : vector<8x256xf32>, i32 -> vector<8x256xf32>
    %c112_66 = arith.constant 112 : index
    %c0_67 = arith.constant 0 : index
    %71 = vector.load %arg4[%c112_66, %c0_67] : memref<144x256xf32, #tpu.memory_space<vmem>>, vector<8x256xf32>
    %72 = arith.mulf %70, %71 : vector<8x256xf32>
    %c56_68 = arith.constant 56 : index
    %c0_69 = arith.constant 0 : index
    %73 = vector.load %arg6[%c56_68, %c0_69] : memref<144x256xf32, #tpu.memory_space<vmem>>, vector<8x256xf32>
    tpu.vector_store %arg6[%c56_68, %c0_69], %72 {strides = array<i32>} : memref<144x256xf32, #tpu.memory_space<vmem>>, vector<8x256xf32>,
    %c239_i32_70 = arith.constant 239 : i32
    %74 = tpu.dynamic_rotate %44 by %c239_i32_70 dim 1 : vector<8x256xf32>, i32 -> vector<8x256xf32>
    %c128_71 = arith.constant 128 : index
    %c0_72 = arith.constant 0 : index
    %75 = vector.load %arg4[%c128_71, %c0_72] : memref<144x256xf32, #tpu.memory_space<vmem>>, vector<8x256xf32>
    %76 = arith.mulf %74, %75 : vector<8x256xf32>
    %c64_73 = arith.constant 64 : index
    %c0_74 = arith.constant 0 : index
    %77 = vector.load %arg6[%c64_73, %c0_74] : memref<144x256xf32, #tpu.memory_space<vmem>>, vector<8x256xf32>
    tpu.vector_store %arg6[%c64_73, %c0_74], %76 {strides = array<i32>} : memref<144x256xf32, #tpu.memory_space<vmem>>, vector<8x256xf32>,
    %c1 = arith.constant 1 : index
    %c0_75 = arith.constant 0 : index
    %c0_76 = arith.constant 0 : index
    %78 = vector.load %arg2[%c1, %c0_75, %c0_76] : memref<11x16x144xf32, #tpu.memory_space<vmem>>, vector<1x8x72xf32>
    %79 = vector.shape_cast %78 : vector<1x8x72xf32> to vector<8x72xf32>
    %c0_77 = arith.constant 0 : index
    %c0_78 = arith.constant 0 : index
    %80 = vector.load %arg6[%c0_77, %c0_78] : memref<144x256xf32, #tpu.memory_space<vmem>>, vector<72x256xf32>
    %cst_79 = arith.constant dense<0.000000e+00> : vector<8x256xf32>
    %81 = tpu.matmul %79, %80, %cst_79 {dimension_numbers = #tpu.dot_dimension_numbers<[1], [0], [0], [1], [0, 0, 1, 1], [], []>} : vector<8x72xf32>, vector<72x256xf32>, vector<8x256xf32> -> vector<8x256xf32>
    %c1_80 = arith.constant 1 : index
    %c0_81 = arith.constant 0 : index
    %c0_82 = arith.constant 0 : index
    %82 = vector.load %arg3[%c1_80, %c0_81, %c0_82] : memref<11x16x1xf32, #tpu.memory_space<vmem>>, vector<1x8x1xf32>
    %83 = vector.shape_cast %82 : vector<1x8x1xf32> to vector<8x1xf32>
    %84 = vector.broadcast %83 : vector<8x1xf32> to vector<8x256xf32>
    %85 = arith.addf %81, %84 : vector<8x256xf32>
    %cst_83 = arith.constant 0.000000e+00 : f32
    %86 = vector.broadcast %cst_83 : f32 to vector<8x256xf32>
    %87 = arith.maximumf %85, %86 : vector<8x256xf32>
    %c17_i32_84 = arith.constant 17 : i32
    %88 = tpu.dynamic_rotate %87 by %c17_i32_84 dim 1 : vector<8x256xf32>, i32 -> vector<8x256xf32>
    %c0_85 = arith.constant 0 : index
    %c0_86 = arith.constant 0 : index
    %89 = vector.load %arg4[%c0_85, %c0_86] : memref<144x256xf32, #tpu.memory_space<vmem>>, vector<8x256xf32>
    %90 = arith.mulf %88, %89 : vector<8x256xf32>
    %c0_87 = arith.constant 0 : index
    %c0_88 = arith.constant 0 : index
    %91 = vector.load %arg6[%c0_87, %c0_88] : memref<144x256xf32, #tpu.memory_space<vmem>>, vector<8x256xf32>
    tpu.vector_store %arg6[%c0_87, %c0_88], %90 {strides = array<i32>} : memref<144x256xf32, #tpu.memory_space<vmem>>, vector<8x256xf32>,
    %c16_i32_89 = arith.constant 16 : i32
    %92 = tpu.dynamic_rotate %87 by %c16_i32_89 dim 1 : vector<8x256xf32>, i32 -> vector<8x256xf32>
    %c16_90 = arith.constant 16 : index
    %c0_91 = arith.constant 0 : index
    %93 = vector.load %arg4[%c16_90, %c0_91] : memref<144x256xf32, #tpu.memory_space<vmem>>, vector<8x256xf32>
    %94 = arith.mulf %92, %93 : vector<8x256xf32>
    %c8_92 = arith.constant 8 : index
    %c0_93 = arith.constant 0 : index
    %95 = vector.load %arg6[%c8_92, %c0_93] : memref<144x256xf32, #tpu.memory_space<vmem>>, vector<8x256xf32>
    tpu.vector_store %arg6[%c8_92, %c0_93], %94 {strides = array<i32>} : memref<144x256xf32, #tpu.memory_space<vmem>>, vector<8x256xf32>,
    %c15_i32_94 = arith.constant 15 : i32
    %96 = tpu.dynamic_rotate %87 by %c15_i32_94 dim 1 : vector<8x256xf32>, i32 -> vector<8x256xf32>
    %c32_95 = arith.constant 32 : index
    %c0_96 = arith.constant 0 : index
    %97 = vector.load %arg4[%c32_95, %c0_96] : memref<144x256xf32, #tpu.memory_space<vmem>>, vector<8x256xf32>
    %98 = arith.mulf %96, %97 : vector<8x256xf32>
    %c16_97 = arith.constant 16 : index
    %c0_98 = arith.constant 0 : index
    %99 = vector.load %arg6[%c16_97, %c0_98] : memref<144x256xf32, #tpu.memory_space<vmem>>, vector<8x256xf32>
    tpu.vector_store %arg6[%c16_97, %c0_98], %98 {strides = array<i32>} : memref<144x256xf32, #tpu.memory_space<vmem>>, vector<8x256xf32>,
    %c1_i32_99 = arith.constant 1 : i32
    %100 = tpu.dynamic_rotate %87 by %c1_i32_99 dim 1 : vector<8x256xf32>, i32 -> vector<8x256xf32>
    %c48_100 = arith.constant 48 : index
    %c0_101 = arith.constant 0 : index
    %101 = vector.load %arg4[%c48_100, %c0_101] : memref<144x256xf32, #tpu.memory_space<vmem>>, vector<8x256xf32>
    %102 = arith.mulf %100, %101 : vector<8x256xf32>
    %c24_102 = arith.constant 24 : index
    %c0_103 = arith.constant 0 : index
    %103 = vector.load %arg6[%c24_102, %c0_103] : memref<144x256xf32, #tpu.memory_space<vmem>>, vector<8x256xf32>
    tpu.vector_store %arg6[%c24_102, %c0_103], %102 {strides = array<i32>} : memref<144x256xf32, #tpu.memory_space<vmem>>, vector<8x256xf32>,
    %c32_104 = arith.constant 32 : index
    %c0_105 = arith.constant 0 : index
    %104 = vector.load %arg6[%c32_104, %c0_105] : memref<144x256xf32, #tpu.memory_space<vmem>>, vector<8x256xf32>
    tpu.vector_store %arg6[%c32_104, %c0_105], %87 {strides = array<i32>} : memref<144x256xf32, #tpu.memory_space<vmem>>, vector<8x256xf32>,
    %c255_i32_106 = arith.constant 255 : i32
    %105 = tpu.dynamic_rotate %87 by %c255_i32_106 dim 1 : vector<8x256xf32>, i32 -> vector<8x256xf32>
    %c80_107 = arith.constant 80 : index
    %c0_108 = arith.constant 0 : index
    %106 = vector.load %arg4[%c80_107, %c0_108] : memref<144x256xf32, #tpu.memory_space<vmem>>, vector<8x256xf32>
    %107 = arith.mulf %105, %106 : vector<8x256xf32>
    %c40_109 = arith.constant 40 : index
    %c0_110 = arith.constant 0 : index
    %108 = vector.load %arg6[%c40_109, %c0_110] : memref<144x256xf32, #tpu.memory_space<vmem>>, vector<8x256xf32>
    tpu.vector_store %arg6[%c40_109, %c0_110], %107 {strides = array<i32>} : memref<144x256xf32, #tpu.memory_space<vmem>>, vector<8x256xf32>,
    %c241_i32_111 = arith.constant 241 : i32
    %109 = tpu.dynamic_rotate %87 by %c241_i32_111 dim 1 : vector<8x256xf32>, i32 -> vector<8x256xf32>
    %c96_112 = arith.constant 96 : index
    %c0_113 = arith.constant 0 : index
    %110 = vector.load %arg4[%c96_112, %c0_113] : memref<144x256xf32, #tpu.memory_space<vmem>>, vector<8x256xf32>
    %111 = arith.mulf %109, %110 : vector<8x256xf32>
    %c48_114 = arith.constant 48 : index
    %c0_115 = arith.constant 0 : index
    %112 = vector.load %arg6[%c48_114, %c0_115] : memref<144x256xf32, #tpu.memory_space<vmem>>, vector<8x256xf32>
    tpu.vector_store %arg6[%c48_114, %c0_115], %111 {strides = array<i32>} : memref<144x256xf32, #tpu.memory_space<vmem>>, vector<8x256xf32>,
    %c240_i32_116 = arith.constant 240 : i32
    %113 = tpu.dynamic_rotate %87 by %c240_i32_116 dim 1 : vector<8x256xf32>, i32 -> vector<8x256xf32>
    %c112_117 = arith.constant 112 : index
    %c0_118 = arith.constant 0 : index
    %114 = vector.load %arg4[%c112_117, %c0_118] : memref<144x256xf32, #tpu.memory_space<vmem>>, vector<8x256xf32>
    %115 = arith.mulf %113, %114 : vector<8x256xf32>
    %c56_119 = arith.constant 56 : index
    %c0_120 = arith.constant 0 : index
    %116 = vector.load %arg6[%c56_119, %c0_120] : memref<144x256xf32, #tpu.memory_space<vmem>>, vector<8x256xf32>
    tpu.vector_store %arg6[%c56_119, %c0_120], %115 {strides = array<i32>} : memref<144x256xf32, #tpu.memory_space<vmem>>, vector<8x256xf32>,
    %c239_i32_121 = arith.constant 239 : i32
    %117 = tpu.dynamic_rotate %87 by %c239_i32_121 dim 1 : vector<8x256xf32>, i32 -> vector<8x256xf32>
    %c128_122 = arith.constant 128 : index
    %c0_123 = arith.constant 0 : index
    %118 = vector.load %arg4[%c128_122, %c0_123] : memref<144x256xf32, #tpu.memory_space<vmem>>, vector<8x256xf32>
    %119 = arith.mulf %117, %118 : vector<8x256xf32>
    %c64_124 = arith.constant 64 : index
    %c0_125 = arith.constant 0 : index
    %120 = vector.load %arg6[%c64_124, %c0_125] : memref<144x256xf32, #tpu.memory_space<vmem>>, vector<8x256xf32>
    tpu.vector_store %arg6[%c64_124, %c0_125], %119 {strides = array<i32>} : memref<144x256xf32, #tpu.memory_space<vmem>>, vector<8x256xf32>,
    %c2 = arith.constant 2 : index
    %c0_126 = arith.constant 0 : index
    %c0_127 = arith.constant 0 : index
    %121 = vector.load %arg2[%c2, %c0_126, %c0_127] : memref<11x16x144xf32, #tpu.memory_space<vmem>>, vector<1x8x72xf32>
    %122 = vector.shape_cast %121 : vector<1x8x72xf32> to vector<8x72xf32>
    %c0_128 = arith.constant 0 : index
    %c0_129 = arith.constant 0 : index
    %123 = vector.load %arg6[%c0_128, %c0_129] : memref<144x256xf32, #tpu.memory_space<vmem>>, vector<72x256xf32>
    %cst_130 = arith.constant dense<0.000000e+00> : vector<8x256xf32>
    %124 = tpu.matmul %122, %123, %cst_130 {dimension_numbers = #tpu.dot_dimension_numbers<[1], [0], [0], [1], [0, 0, 1, 1], [], []>} : vector<8x72xf32>, vector<72x256xf32>, vector<8x256xf32> -> vector<8x256xf32>
    %c2_131 = arith.constant 2 : index
    %c0_132 = arith.constant 0 : index
    %c0_133 = arith.constant 0 : index
    %125 = vector.load %arg3[%c2_131, %c0_132, %c0_133] : memref<11x16x1xf32, #tpu.memory_space<vmem>>, vector<1x8x1xf32>
    %126 = vector.shape_cast %125 : vector<1x8x1xf32> to vector<8x1xf32>
    %127 = vector.broadcast %126 : vector<8x1xf32> to vector<8x256xf32>
    %128 = arith.addf %124, %127 : vector<8x256xf32>
    %129 = arith.addf %128, %44 : vector<8x256xf32>
    %c17_i32_134 = arith.constant 17 : i32
    %130 = tpu.dynamic_rotate %129 by %c17_i32_134 dim 1 : vector<8x256xf32>, i32 -> vector<8x256xf32>
    %c0_135 = arith.constant 0 : index
    %c0_136 = arith.constant 0 : index
    %131 = vector.load %arg4[%c0_135, %c0_136] : memref<144x256xf32, #tpu.memory_space<vmem>>, vector<8x256xf32>
    %132 = arith.mulf %130, %131 : vector<8x256xf32>
    %c0_137 = arith.constant 0 : index
    %c0_138 = arith.constant 0 : index
    %133 = vector.load %arg6[%c0_137, %c0_138] : memref<144x256xf32, #tpu.memory_space<vmem>>, vector<8x256xf32>
    tpu.vector_store %arg6[%c0_137, %c0_138], %132 {strides = array<i32>} : memref<144x256xf32, #tpu.memory_space<vmem>>, vector<8x256xf32>,
    %c16_i32_139 = arith.constant 16 : i32
    %134 = tpu.dynamic_rotate %129 by %c16_i32_139 dim 1 : vector<8x256xf32>, i32 -> vector<8x256xf32>
    %c16_140 = arith.constant 16 : index
    %c0_141 = arith.constant 0 : index
    %135 = vector.load %arg4[%c16_140, %c0_141] : memref<144x256xf32, #tpu.memory_space<vmem>>, vector<8x256xf32>
    %136 = arith.mulf %134, %135 : vector<8x256xf32>
    %c8_142 = arith.constant 8 : index
    %c0_143 = arith.constant 0 : index
    %137 = vector.load %arg6[%c8_142, %c0_143] : memref<144x256xf32, #tpu.memory_space<vmem>>, vector<8x256xf32>
    tpu.vector_store %arg6[%c8_142, %c0_143], %136 {strides = array<i32>} : memref<144x256xf32, #tpu.memory_space<vmem>>, vector<8x256xf32>,
    %c15_i32_144 = arith.constant 15 : i32
    %138 = tpu.dynamic_rotate %129 by %c15_i32_144 dim 1 : vector<8x256xf32>, i32 -> vector<8x256xf32>
    %c32_145 = arith.constant 32 : index
    %c0_146 = arith.constant 0 : index
    %139 = vector.load %arg4[%c32_145, %c0_146] : memref<144x256xf32, #tpu.memory_space<vmem>>, vector<8x256xf32>
    %140 = arith.mulf %138, %139 : vector<8x256xf32>
    %c16_147 = arith.constant 16 : index
    %c0_148 = arith.constant 0 : index
    %141 = vector.load %arg6[%c16_147, %c0_148] : memref<144x256xf32, #tpu.memory_space<vmem>>, vector<8x256xf32>
    tpu.vector_store %arg6[%c16_147, %c0_148], %140 {strides = array<i32>} : memref<144x256xf32, #tpu.memory_space<vmem>>, vector<8x256xf32>,
    %c1_i32_149 = arith.constant 1 : i32
    %142 = tpu.dynamic_rotate %129 by %c1_i32_149 dim 1 : vector<8x256xf32>, i32 -> vector<8x256xf32>
    %c48_150 = arith.constant 48 : index
    %c0_151 = arith.constant 0 : index
    %143 = vector.load %arg4[%c48_150, %c0_151] : memref<144x256xf32, #tpu.memory_space<vmem>>, vector<8x256xf32>
    %144 = arith.mulf %142, %143 : vector<8x256xf32>
    %c24_152 = arith.constant 24 : index
    %c0_153 = arith.constant 0 : index
    %145 = vector.load %arg6[%c24_152, %c0_153] : memref<144x256xf32, #tpu.memory_space<vmem>>, vector<8x256xf32>
    tpu.vector_store %arg6[%c24_152, %c0_153], %144 {strides = array<i32>} : memref<144x256xf32, #tpu.memory_space<vmem>>, vector<8x256xf32>,
    %c32_154 = arith.constant 32 : index
    %c0_155 = arith.constant 0 : index
    %146 = vector.load %arg6[%c32_154, %c0_155] : memref<144x256xf32, #tpu.memory_space<vmem>>, vector<8x256xf32>
    tpu.vector_store %arg6[%c32_154, %c0_155], %129 {strides = array<i32>} : memref<144x256xf32, #tpu.memory_space<vmem>>, vector<8x256xf32>,
    %c255_i32_156 = arith.constant 255 : i32
    %147 = tpu.dynamic_rotate %129 by %c255_i32_156 dim 1 : vector<8x256xf32>, i32 -> vector<8x256xf32>
    %c80_157 = arith.constant 80 : index
    %c0_158 = arith.constant 0 : index
    %148 = vector.load %arg4[%c80_157, %c0_158] : memref<144x256xf32, #tpu.memory_space<vmem>>, vector<8x256xf32>
    %149 = arith.mulf %147, %148 : vector<8x256xf32>
    %c40_159 = arith.constant 40 : index
    %c0_160 = arith.constant 0 : index
    %150 = vector.load %arg6[%c40_159, %c0_160] : memref<144x256xf32, #tpu.memory_space<vmem>>, vector<8x256xf32>
    tpu.vector_store %arg6[%c40_159, %c0_160], %149 {strides = array<i32>} : memref<144x256xf32, #tpu.memory_space<vmem>>, vector<8x256xf32>,
    %c241_i32_161 = arith.constant 241 : i32
    %151 = tpu.dynamic_rotate %129 by %c241_i32_161 dim 1 : vector<8x256xf32>, i32 -> vector<8x256xf32>
    %c96_162 = arith.constant 96 : index
    %c0_163 = arith.constant 0 : index
    %152 = vector.load %arg4[%c96_162, %c0_163] : memref<144x256xf32, #tpu.memory_space<vmem>>, vector<8x256xf32>
    %153 = arith.mulf %151, %152 : vector<8x256xf32>
    %c48_164 = arith.constant 48 : index
    %c0_165 = arith.constant 0 : index
    %154 = vector.load %arg6[%c48_164, %c0_165] : memref<144x256xf32, #tpu.memory_space<vmem>>, vector<8x256xf32>
    tpu.vector_store %arg6[%c48_164, %c0_165], %153 {strides = array<i32>} : memref<144x256xf32, #tpu.memory_space<vmem>>, vector<8x256xf32>,
    %c240_i32_166 = arith.constant 240 : i32
    %155 = tpu.dynamic_rotate %129 by %c240_i32_166 dim 1 : vector<8x256xf32>, i32 -> vector<8x256xf32>
    %c112_167 = arith.constant 112 : index
    %c0_168 = arith.constant 0 : index
    %156 = vector.load %arg4[%c112_167, %c0_168] : memref<144x256xf32, #tpu.memory_space<vmem>>, vector<8x256xf32>
    %157 = arith.mulf %155, %156 : vector<8x256xf32>
    %c56_169 = arith.constant 56 : index
    %c0_170 = arith.constant 0 : index
    %158 = vector.load %arg6[%c56_169, %c0_170] : memref<144x256xf32, #tpu.memory_space<vmem>>, vector<8x256xf32>
    tpu.vector_store %arg6[%c56_169, %c0_170], %157 {strides = array<i32>} : memref<144x256xf32, #tpu.memory_space<vmem>>, vector<8x256xf32>,
    %c239_i32_171 = arith.constant 239 : i32
    %159 = tpu.dynamic_rotate %129 by %c239_i32_171 dim 1 : vector<8x256xf32>, i32 -> vector<8x256xf32>
    %c128_172 = arith.constant 128 : index
    %c0_173 = arith.constant 0 : index
    %160 = vector.load %arg4[%c128_172, %c0_173] : memref<144x256xf32, #tpu.memory_space<vmem>>, vector<8x256xf32>
    %161 = arith.mulf %159, %160 : vector<8x256xf32>
    %c64_174 = arith.constant 64 : index
    %c0_175 = arith.constant 0 : index
    %162 = vector.load %arg6[%c64_174, %c0_175] : memref<144x256xf32, #tpu.memory_space<vmem>>, vector<8x256xf32>
    tpu.vector_store %arg6[%c64_174, %c0_175], %161 {strides = array<i32>} : memref<144x256xf32, #tpu.memory_space<vmem>>, vector<8x256xf32>,
    %c3 = arith.constant 3 : index
    %c0_176 = arith.constant 0 : index
    %c0_177 = arith.constant 0 : index
    %163 = vector.load %arg2[%c3, %c0_176, %c0_177] : memref<11x16x144xf32, #tpu.memory_space<vmem>>, vector<1x8x72xf32>
    %164 = vector.shape_cast %163 : vector<1x8x72xf32> to vector<8x72xf32>
    %c0_178 = arith.constant 0 : index
    %c0_179 = arith.constant 0 : index
    %165 = vector.load %arg6[%c0_178, %c0_179] : memref<144x256xf32, #tpu.memory_space<vmem>>, vector<72x256xf32>
    %cst_180 = arith.constant dense<0.000000e+00> : vector<8x256xf32>
    %166 = tpu.matmul %164, %165, %cst_180 {dimension_numbers = #tpu.dot_dimension_numbers<[1], [0], [0], [1], [0, 0, 1, 1], [], []>} : vector<8x72xf32>, vector<72x256xf32>, vector<8x256xf32> -> vector<8x256xf32>
    %c3_181 = arith.constant 3 : index
    %c0_182 = arith.constant 0 : index
    %c0_183 = arith.constant 0 : index
    %167 = vector.load %arg3[%c3_181, %c0_182, %c0_183] : memref<11x16x1xf32, #tpu.memory_space<vmem>>, vector<1x8x1xf32>
    %168 = vector.shape_cast %167 : vector<1x8x1xf32> to vector<8x1xf32>
    %169 = vector.broadcast %168 : vector<8x1xf32> to vector<8x256xf32>
    %170 = arith.addf %166, %169 : vector<8x256xf32>
    %cst_184 = arith.constant 0.000000e+00 : f32
    %171 = vector.broadcast %cst_184 : f32 to vector<8x256xf32>
    %172 = arith.maximumf %170, %171 : vector<8x256xf32>
    %c17_i32_185 = arith.constant 17 : i32
    %173 = tpu.dynamic_rotate %172 by %c17_i32_185 dim 1 : vector<8x256xf32>, i32 -> vector<8x256xf32>
    %c0_186 = arith.constant 0 : index
    %c0_187 = arith.constant 0 : index
    %174 = vector.load %arg4[%c0_186, %c0_187] : memref<144x256xf32, #tpu.memory_space<vmem>>, vector<8x256xf32>
    %175 = arith.mulf %173, %174 : vector<8x256xf32>
    %c0_188 = arith.constant 0 : index
    %c0_189 = arith.constant 0 : index
    %176 = vector.load %arg6[%c0_188, %c0_189] : memref<144x256xf32, #tpu.memory_space<vmem>>, vector<8x256xf32>
    tpu.vector_store %arg6[%c0_188, %c0_189], %175 {strides = array<i32>} : memref<144x256xf32, #tpu.memory_space<vmem>>, vector<8x256xf32>,
    %c16_i32_190 = arith.constant 16 : i32
    %177 = tpu.dynamic_rotate %172 by %c16_i32_190 dim 1 : vector<8x256xf32>, i32 -> vector<8x256xf32>
    %c16_191 = arith.constant 16 : index
    %c0_192 = arith.constant 0 : index
    %178 = vector.load %arg4[%c16_191, %c0_192] : memref<144x256xf32, #tpu.memory_space<vmem>>, vector<8x256xf32>
    %179 = arith.mulf %177, %178 : vector<8x256xf32>
    %c8_193 = arith.constant 8 : index
    %c0_194 = arith.constant 0 : index
    %180 = vector.load %arg6[%c8_193, %c0_194] : memref<144x256xf32, #tpu.memory_space<vmem>>, vector<8x256xf32>
    tpu.vector_store %arg6[%c8_193, %c0_194], %179 {strides = array<i32>} : memref<144x256xf32, #tpu.memory_space<vmem>>, vector<8x256xf32>,
    %c15_i32_195 = arith.constant 15 : i32
    %181 = tpu.dynamic_rotate %172 by %c15_i32_195 dim 1 : vector<8x256xf32>, i32 -> vector<8x256xf32>
    %c32_196 = arith.constant 32 : index
    %c0_197 = arith.constant 0 : index
    %182 = vector.load %arg4[%c32_196, %c0_197] : memref<144x256xf32, #tpu.memory_space<vmem>>, vector<8x256xf32>
    %183 = arith.mulf %181, %182 : vector<8x256xf32>
    %c16_198 = arith.constant 16 : index
    %c0_199 = arith.constant 0 : index
    %184 = vector.load %arg6[%c16_198, %c0_199] : memref<144x256xf32, #tpu.memory_space<vmem>>, vector<8x256xf32>
    tpu.vector_store %arg6[%c16_198, %c0_199], %183 {strides = array<i32>} : memref<144x256xf32, #tpu.memory_space<vmem>>, vector<8x256xf32>,
    %c1_i32_200 = arith.constant 1 : i32
    %185 = tpu.dynamic_rotate %172 by %c1_i32_200 dim 1 : vector<8x256xf32>, i32 -> vector<8x256xf32>
    %c48_201 = arith.constant 48 : index
    %c0_202 = arith.constant 0 : index
    %186 = vector.load %arg4[%c48_201, %c0_202] : memref<144x256xf32, #tpu.memory_space<vmem>>, vector<8x256xf32>
    %187 = arith.mulf %185, %186 : vector<8x256xf32>
    %c24_203 = arith.constant 24 : index
    %c0_204 = arith.constant 0 : index
    %188 = vector.load %arg6[%c24_203, %c0_204] : memref<144x256xf32, #tpu.memory_space<vmem>>, vector<8x256xf32>
    tpu.vector_store %arg6[%c24_203, %c0_204], %187 {strides = array<i32>} : memref<144x256xf32, #tpu.memory_space<vmem>>, vector<8x256xf32>,
    %c32_205 = arith.constant 32 : index
    %c0_206 = arith.constant 0 : index
    %189 = vector.load %arg6[%c32_205, %c0_206] : memref<144x256xf32, #tpu.memory_space<vmem>>, vector<8x256xf32>
    tpu.vector_store %arg6[%c32_205, %c0_206], %172 {strides = array<i32>} : memref<144x256xf32, #tpu.memory_space<vmem>>, vector<8x256xf32>,
    %c255_i32_207 = arith.constant 255 : i32
    %190 = tpu.dynamic_rotate %172 by %c255_i32_207 dim 1 : vector<8x256xf32>, i32 -> vector<8x256xf32>
    %c80_208 = arith.constant 80 : index
    %c0_209 = arith.constant 0 : index
    %191 = vector.load %arg4[%c80_208, %c0_209] : memref<144x256xf32, #tpu.memory_space<vmem>>, vector<8x256xf32>
    %192 = arith.mulf %190, %191 : vector<8x256xf32>
    %c40_210 = arith.constant 40 : index
    %c0_211 = arith.constant 0 : index
    %193 = vector.load %arg6[%c40_210, %c0_211] : memref<144x256xf32, #tpu.memory_space<vmem>>, vector<8x256xf32>
    tpu.vector_store %arg6[%c40_210, %c0_211], %192 {strides = array<i32>} : memref<144x256xf32, #tpu.memory_space<vmem>>, vector<8x256xf32>,
    %c241_i32_212 = arith.constant 241 : i32
    %194 = tpu.dynamic_rotate %172 by %c241_i32_212 dim 1 : vector<8x256xf32>, i32 -> vector<8x256xf32>
    %c96_213 = arith.constant 96 : index
    %c0_214 = arith.constant 0 : index
    %195 = vector.load %arg4[%c96_213, %c0_214] : memref<144x256xf32, #tpu.memory_space<vmem>>, vector<8x256xf32>
    %196 = arith.mulf %194, %195 : vector<8x256xf32>
    %c48_215 = arith.constant 48 : index
    %c0_216 = arith.constant 0 : index
    %197 = vector.load %arg6[%c48_215, %c0_216] : memref<144x256xf32, #tpu.memory_space<vmem>>, vector<8x256xf32>
    tpu.vector_store %arg6[%c48_215, %c0_216], %196 {strides = array<i32>} : memref<144x256xf32, #tpu.memory_space<vmem>>, vector<8x256xf32>,
    %c240_i32_217 = arith.constant 240 : i32
    %198 = tpu.dynamic_rotate %172 by %c240_i32_217 dim 1 : vector<8x256xf32>, i32 -> vector<8x256xf32>
    %c112_218 = arith.constant 112 : index
    %c0_219 = arith.constant 0 : index
    %199 = vector.load %arg4[%c112_218, %c0_219] : memref<144x256xf32, #tpu.memory_space<vmem>>, vector<8x256xf32>
    %200 = arith.mulf %198, %199 : vector<8x256xf32>
    %c56_220 = arith.constant 56 : index
    %c0_221 = arith.constant 0 : index
    %201 = vector.load %arg6[%c56_220, %c0_221] : memref<144x256xf32, #tpu.memory_space<vmem>>, vector<8x256xf32>
    tpu.vector_store %arg6[%c56_220, %c0_221], %200 {strides = array<i32>} : memref<144x256xf32, #tpu.memory_space<vmem>>, vector<8x256xf32>,
    %c239_i32_222 = arith.constant 239 : i32
    %202 = tpu.dynamic_rotate %172 by %c239_i32_222 dim 1 : vector<8x256xf32>, i32 -> vector<8x256xf32>
    %c128_223 = arith.constant 128 : index
    %c0_224 = arith.constant 0 : index
    %203 = vector.load %arg4[%c128_223, %c0_224] : memref<144x256xf32, #tpu.memory_space<vmem>>, vector<8x256xf32>
    %204 = arith.mulf %202, %203 : vector<8x256xf32>
    %c64_225 = arith.constant 64 : index
    %c0_226 = arith.constant 0 : index
    %205 = vector.load %arg6[%c64_225, %c0_226] : memref<144x256xf32, #tpu.memory_space<vmem>>, vector<8x256xf32>
    tpu.vector_store %arg6[%c64_225, %c0_226], %204 {strides = array<i32>} : memref<144x256xf32, #tpu.memory_space<vmem>>, vector<8x256xf32>,
    %c4 = arith.constant 4 : index
    %c0_227 = arith.constant 0 : index
    %c0_228 = arith.constant 0 : index
    %206 = vector.load %arg2[%c4, %c0_227, %c0_228] : memref<11x16x144xf32, #tpu.memory_space<vmem>>, vector<1x8x72xf32>
    %207 = vector.shape_cast %206 : vector<1x8x72xf32> to vector<8x72xf32>
    %c0_229 = arith.constant 0 : index
    %c0_230 = arith.constant 0 : index
    %208 = vector.load %arg6[%c0_229, %c0_230] : memref<144x256xf32, #tpu.memory_space<vmem>>, vector<72x256xf32>
    %cst_231 = arith.constant dense<0.000000e+00> : vector<8x256xf32>
    %209 = tpu.matmul %207, %208, %cst_231 {dimension_numbers = #tpu.dot_dimension_numbers<[1], [0], [0], [1], [0, 0, 1, 1], [], []>} : vector<8x72xf32>, vector<72x256xf32>, vector<8x256xf32> -> vector<8x256xf32>
    %c4_232 = arith.constant 4 : index
    %c0_233 = arith.constant 0 : index
    %c0_234 = arith.constant 0 : index
    %210 = vector.load %arg3[%c4_232, %c0_233, %c0_234] : memref<11x16x1xf32, #tpu.memory_space<vmem>>, vector<1x8x1xf32>
    %211 = vector.shape_cast %210 : vector<1x8x1xf32> to vector<8x1xf32>
    %212 = vector.broadcast %211 : vector<8x1xf32> to vector<8x256xf32>
    %213 = arith.addf %209, %212 : vector<8x256xf32>
    %214 = arith.addf %213, %129 : vector<8x256xf32>
    %c17_i32_235 = arith.constant 17 : i32
    %215 = tpu.dynamic_rotate %214 by %c17_i32_235 dim 1 : vector<8x256xf32>, i32 -> vector<8x256xf32>
    %c0_236 = arith.constant 0 : index
    %c0_237 = arith.constant 0 : index
    %216 = vector.load %arg4[%c0_236, %c0_237] : memref<144x256xf32, #tpu.memory_space<vmem>>, vector<8x256xf32>
    %217 = arith.mulf %215, %216 : vector<8x256xf32>
    %c0_238 = arith.constant 0 : index
    %c0_239 = arith.constant 0 : index
    %218 = vector.load %arg6[%c0_238, %c0_239] : memref<144x256xf32, #tpu.memory_space<vmem>>, vector<8x256xf32>
    tpu.vector_store %arg6[%c0_238, %c0_239], %217 {strides = array<i32>} : memref<144x256xf32, #tpu.memory_space<vmem>>, vector<8x256xf32>,
    %c16_i32_240 = arith.constant 16 : i32
    %219 = tpu.dynamic_rotate %214 by %c16_i32_240 dim 1 : vector<8x256xf32>, i32 -> vector<8x256xf32>
    %c16_241 = arith.constant 16 : index
    %c0_242 = arith.constant 0 : index
    %220 = vector.load %arg4[%c16_241, %c0_242] : memref<144x256xf32, #tpu.memory_space<vmem>>, vector<8x256xf32>
    %221 = arith.mulf %219, %220 : vector<8x256xf32>
    %c8_243 = arith.constant 8 : index
    %c0_244 = arith.constant 0 : index
    %222 = vector.load %arg6[%c8_243, %c0_244] : memref<144x256xf32, #tpu.memory_space<vmem>>, vector<8x256xf32>
    tpu.vector_store %arg6[%c8_243, %c0_244], %221 {strides = array<i32>} : memref<144x256xf32, #tpu.memory_space<vmem>>, vector<8x256xf32>,
    %c15_i32_245 = arith.constant 15 : i32
    %223 = tpu.dynamic_rotate %214 by %c15_i32_245 dim 1 : vector<8x256xf32>, i32 -> vector<8x256xf32>
    %c32_246 = arith.constant 32 : index
    %c0_247 = arith.constant 0 : index
    %224 = vector.load %arg4[%c32_246, %c0_247] : memref<144x256xf32, #tpu.memory_space<vmem>>, vector<8x256xf32>
    %225 = arith.mulf %223, %224 : vector<8x256xf32>
    %c16_248 = arith.constant 16 : index
    %c0_249 = arith.constant 0 : index
    %226 = vector.load %arg6[%c16_248, %c0_249] : memref<144x256xf32, #tpu.memory_space<vmem>>, vector<8x256xf32>
    tpu.vector_store %arg6[%c16_248, %c0_249], %225 {strides = array<i32>} : memref<144x256xf32, #tpu.memory_space<vmem>>, vector<8x256xf32>,
    %c1_i32_250 = arith.constant 1 : i32
    %227 = tpu.dynamic_rotate %214 by %c1_i32_250 dim 1 : vector<8x256xf32>, i32 -> vector<8x256xf32>
    %c48_251 = arith.constant 48 : index
    %c0_252 = arith.constant 0 : index
    %228 = vector.load %arg4[%c48_251, %c0_252] : memref<144x256xf32, #tpu.memory_space<vmem>>, vector<8x256xf32>
    %229 = arith.mulf %227, %228 : vector<8x256xf32>
    %c24_253 = arith.constant 24 : index
    %c0_254 = arith.constant 0 : index
    %230 = vector.load %arg6[%c24_253, %c0_254] : memref<144x256xf32, #tpu.memory_space<vmem>>, vector<8x256xf32>
    tpu.vector_store %arg6[%c24_253, %c0_254], %229 {strides = array<i32>} : memref<144x256xf32, #tpu.memory_space<vmem>>, vector<8x256xf32>,
    %c32_255 = arith.constant 32 : index
    %c0_256 = arith.constant 0 : index
    %231 = vector.load %arg6[%c32_255, %c0_256] : memref<144x256xf32, #tpu.memory_space<vmem>>, vector<8x256xf32>
    tpu.vector_store %arg6[%c32_255, %c0_256], %214 {strides = array<i32>} : memref<144x256xf32, #tpu.memory_space<vmem>>, vector<8x256xf32>,
    %c255_i32_257 = arith.constant 255 : i32
    %232 = tpu.dynamic_rotate %214 by %c255_i32_257 dim 1 : vector<8x256xf32>, i32 -> vector<8x256xf32>
    %c80_258 = arith.constant 80 : index
    %c0_259 = arith.constant 0 : index
    %233 = vector.load %arg4[%c80_258, %c0_259] : memref<144x256xf32, #tpu.memory_space<vmem>>, vector<8x256xf32>
    %234 = arith.mulf %232, %233 : vector<8x256xf32>
    %c40_260 = arith.constant 40 : index
    %c0_261 = arith.constant 0 : index
    %235 = vector.load %arg6[%c40_260, %c0_261] : memref<144x256xf32, #tpu.memory_space<vmem>>, vector<8x256xf32>
    tpu.vector_store %arg6[%c40_260, %c0_261], %234 {strides = array<i32>} : memref<144x256xf32, #tpu.memory_space<vmem>>, vector<8x256xf32>,
    %c241_i32_262 = arith.constant 241 : i32
    %236 = tpu.dynamic_rotate %214 by %c241_i32_262 dim 1 : vector<8x256xf32>, i32 -> vector<8x256xf32>
    %c96_263 = arith.constant 96 : index
    %c0_264 = arith.constant 0 : index
    %237 = vector.load %arg4[%c96_263, %c0_264] : memref<144x256xf32, #tpu.memory_space<vmem>>, vector<8x256xf32>
    %238 = arith.mulf %236, %237 : vector<8x256xf32>
    %c48_265 = arith.constant 48 : index
    %c0_266 = arith.constant 0 : index
    %239 = vector.load %arg6[%c48_265, %c0_266] : memref<144x256xf32, #tpu.memory_space<vmem>>, vector<8x256xf32>
    tpu.vector_store %arg6[%c48_265, %c0_266], %238 {strides = array<i32>} : memref<144x256xf32, #tpu.memory_space<vmem>>, vector<8x256xf32>,
    %c240_i32_267 = arith.constant 240 : i32
    %240 = tpu.dynamic_rotate %214 by %c240_i32_267 dim 1 : vector<8x256xf32>, i32 -> vector<8x256xf32>
    %c112_268 = arith.constant 112 : index
    %c0_269 = arith.constant 0 : index
    %241 = vector.load %arg4[%c112_268, %c0_269] : memref<144x256xf32, #tpu.memory_space<vmem>>, vector<8x256xf32>
    %242 = arith.mulf %240, %241 : vector<8x256xf32>
    %c56_270 = arith.constant 56 : index
    %c0_271 = arith.constant 0 : index
    %243 = vector.load %arg6[%c56_270, %c0_271] : memref<144x256xf32, #tpu.memory_space<vmem>>, vector<8x256xf32>
    tpu.vector_store %arg6[%c56_270, %c0_271], %242 {strides = array<i32>} : memref<144x256xf32, #tpu.memory_space<vmem>>, vector<8x256xf32>,
    %c239_i32_272 = arith.constant 239 : i32
    %244 = tpu.dynamic_rotate %214 by %c239_i32_272 dim 1 : vector<8x256xf32>, i32 -> vector<8x256xf32>
    %c128_273 = arith.constant 128 : index
    %c0_274 = arith.constant 0 : index
    %245 = vector.load %arg4[%c128_273, %c0_274] : memref<144x256xf32, #tpu.memory_space<vmem>>, vector<8x256xf32>
    %246 = arith.mulf %244, %245 : vector<8x256xf32>
    %c64_275 = arith.constant 64 : index
    %c0_276 = arith.constant 0 : index
    %247 = vector.load %arg6[%c64_275, %c0_276] : memref<144x256xf32, #tpu.memory_space<vmem>>, vector<8x256xf32>
    tpu.vector_store %arg6[%c64_275, %c0_276], %246 {strides = array<i32>} : memref<144x256xf32, #tpu.memory_space<vmem>>, vector<8x256xf32>,
    %c5 = arith.constant 5 : index
    %c0_277 = arith.constant 0 : index
    %c0_278 = arith.constant 0 : index
    %248 = vector.load %arg2[%c5, %c0_277, %c0_278] : memref<11x16x144xf32, #tpu.memory_space<vmem>>, vector<1x16x72xf32>
    %249 = vector.shape_cast %248 : vector<1x16x72xf32> to vector<16x72xf32>
    %c0_279 = arith.constant 0 : index
    %c0_280 = arith.constant 0 : index
    %250 = vector.load %arg6[%c0_279, %c0_280] : memref<144x256xf32, #tpu.memory_space<vmem>>, vector<72x256xf32>
    %cst_281 = arith.constant dense<0.000000e+00> : vector<16x256xf32>
    %251 = tpu.matmul %249, %250, %cst_281 {dimension_numbers = #tpu.dot_dimension_numbers<[1], [0], [0], [1], [0, 0, 1, 1], [], []>} : vector<16x72xf32>, vector<72x256xf32>, vector<16x256xf32> -> vector<16x256xf32>
    %c5_282 = arith.constant 5 : index
    %c0_283 = arith.constant 0 : index
    %c0_284 = arith.constant 0 : index
    %252 = vector.load %arg3[%c5_282, %c0_283, %c0_284] : memref<11x16x1xf32, #tpu.memory_space<vmem>>, vector<1x16x1xf32>
    %253 = vector.shape_cast %252 : vector<1x16x1xf32> to vector<16x1xf32>
    %254 = vector.broadcast %253 : vector<16x1xf32> to vector<16x256xf32>
    %255 = arith.addf %251, %254 : vector<16x256xf32>
    %cst_285 = arith.constant 0.000000e+00 : f32
    %256 = vector.broadcast %cst_285 : f32 to vector<16x256xf32>
    %257 = arith.maximumf %255, %256 : vector<16x256xf32>
    %c17_i32_286 = arith.constant 17 : i32
    %258 = tpu.dynamic_rotate %257 by %c17_i32_286 dim 1 : vector<16x256xf32>, i32 -> vector<16x256xf32>
    %c0_287 = arith.constant 0 : index
    %c0_288 = arith.constant 0 : index
    %259 = vector.load %arg4[%c0_287, %c0_288] : memref<144x256xf32, #tpu.memory_space<vmem>>, vector<16x256xf32>
    %260 = arith.mulf %258, %259 : vector<16x256xf32>
    %c0_289 = arith.constant 0 : index
    %c0_290 = arith.constant 0 : index
    %261 = vector.load %arg6[%c0_289, %c0_290] : memref<144x256xf32, #tpu.memory_space<vmem>>, vector<16x256xf32>
    tpu.vector_store %arg6[%c0_289, %c0_290], %260 {strides = array<i32>} : memref<144x256xf32, #tpu.memory_space<vmem>>, vector<16x256xf32>,
    %c16_i32_291 = arith.constant 16 : i32
    %262 = tpu.dynamic_rotate %257 by %c16_i32_291 dim 1 : vector<16x256xf32>, i32 -> vector<16x256xf32>
    %c16_292 = arith.constant 16 : index
    %c0_293 = arith.constant 0 : index
    %263 = vector.load %arg4[%c16_292, %c0_293] : memref<144x256xf32, #tpu.memory_space<vmem>>, vector<16x256xf32>
    %264 = arith.mulf %262, %263 : vector<16x256xf32>
    %c16_294 = arith.constant 16 : index
    %c0_295 = arith.constant 0 : index
    %265 = vector.load %arg6[%c16_294, %c0_295] : memref<144x256xf32, #tpu.memory_space<vmem>>, vector<16x256xf32>
    tpu.vector_store %arg6[%c16_294, %c0_295], %264 {strides = array<i32>} : memref<144x256xf32, #tpu.memory_space<vmem>>, vector<16x256xf32>,
    %c15_i32_296 = arith.constant 15 : i32
    %266 = tpu.dynamic_rotate %257 by %c15_i32_296 dim 1 : vector<16x256xf32>, i32 -> vector<16x256xf32>
    %c32_297 = arith.constant 32 : index
    %c0_298 = arith.constant 0 : index
    %267 = vector.load %arg4[%c32_297, %c0_298] : memref<144x256xf32, #tpu.memory_space<vmem>>, vector<16x256xf32>
    %268 = arith.mulf %266, %267 : vector<16x256xf32>
    %c32_299 = arith.constant 32 : index
    %c0_300 = arith.constant 0 : index
    %269 = vector.load %arg6[%c32_299, %c0_300] : memref<144x256xf32, #tpu.memory_space<vmem>>, vector<16x256xf32>
    tpu.vector_store %arg6[%c32_299, %c0_300], %268 {strides = array<i32>} : memref<144x256xf32, #tpu.memory_space<vmem>>, vector<16x256xf32>,
    %c1_i32_301 = arith.constant 1 : i32
    %270 = tpu.dynamic_rotate %257 by %c1_i32_301 dim 1 : vector<16x256xf32>, i32 -> vector<16x256xf32>
    %c48_302 = arith.constant 48 : index
    %c0_303 = arith.constant 0 : index
    %271 = vector.load %arg4[%c48_302, %c0_303] : memref<144x256xf32, #tpu.memory_space<vmem>>, vector<16x256xf32>
    %272 = arith.mulf %270, %271 : vector<16x256xf32>
    %c48_304 = arith.constant 48 : index
    %c0_305 = arith.constant 0 : index
    %273 = vector.load %arg6[%c48_304, %c0_305] : memref<144x256xf32, #tpu.memory_space<vmem>>, vector<16x256xf32>
    tpu.vector_store %arg6[%c48_304, %c0_305], %272 {strides = array<i32>} : memref<144x256xf32, #tpu.memory_space<vmem>>, vector<16x256xf32>,
    %c64_306 = arith.constant 64 : index
    %c0_307 = arith.constant 0 : index
    %274 = vector.load %arg6[%c64_306, %c0_307] : memref<144x256xf32, #tpu.memory_space<vmem>>, vector<16x256xf32>
    tpu.vector_store %arg6[%c64_306, %c0_307], %257 {strides = array<i32>} : memref<144x256xf32, #tpu.memory_space<vmem>>, vector<16x256xf32>,
    %c255_i32_308 = arith.constant 255 : i32
    %275 = tpu.dynamic_rotate %257 by %c255_i32_308 dim 1 : vector<16x256xf32>, i32 -> vector<16x256xf32>
    %c80_309 = arith.constant 80 : index
    %c0_310 = arith.constant 0 : index
    %276 = vector.load %arg4[%c80_309, %c0_310] : memref<144x256xf32, #tpu.memory_space<vmem>>, vector<16x256xf32>
    %277 = arith.mulf %275, %276 : vector<16x256xf32>
    %c80_311 = arith.constant 80 : index
    %c0_312 = arith.constant 0 : index
    %278 = vector.load %arg6[%c80_311, %c0_312] : memref<144x256xf32, #tpu.memory_space<vmem>>, vector<16x256xf32>
    tpu.vector_store %arg6[%c80_311, %c0_312], %277 {strides = array<i32>} : memref<144x256xf32, #tpu.memory_space<vmem>>, vector<16x256xf32>,
    %c241_i32_313 = arith.constant 241 : i32
    %279 = tpu.dynamic_rotate %257 by %c241_i32_313 dim 1 : vector<16x256xf32>, i32 -> vector<16x256xf32>
    %c96_314 = arith.constant 96 : index
    %c0_315 = arith.constant 0 : index
    %280 = vector.load %arg4[%c96_314, %c0_315] : memref<144x256xf32, #tpu.memory_space<vmem>>, vector<16x256xf32>
    %281 = arith.mulf %279, %280 : vector<16x256xf32>
    %c96_316 = arith.constant 96 : index
    %c0_317 = arith.constant 0 : index
    %282 = vector.load %arg6[%c96_316, %c0_317] : memref<144x256xf32, #tpu.memory_space<vmem>>, vector<16x256xf32>
    tpu.vector_store %arg6[%c96_316, %c0_317], %281 {strides = array<i32>} : memref<144x256xf32, #tpu.memory_space<vmem>>, vector<16x256xf32>,
    %c240_i32_318 = arith.constant 240 : i32
    %283 = tpu.dynamic_rotate %257 by %c240_i32_318 dim 1 : vector<16x256xf32>, i32 -> vector<16x256xf32>
    %c112_319 = arith.constant 112 : index
    %c0_320 = arith.constant 0 : index
    %284 = vector.load %arg4[%c112_319, %c0_320] : memref<144x256xf32, #tpu.memory_space<vmem>>, vector<16x256xf32>
    %285 = arith.mulf %283, %284 : vector<16x256xf32>
    %c112_321 = arith.constant 112 : index
    %c0_322 = arith.constant 0 : index
    %286 = vector.load %arg6[%c112_321, %c0_322] : memref<144x256xf32, #tpu.memory_space<vmem>>, vector<16x256xf32>
    tpu.vector_store %arg6[%c112_321, %c0_322], %285 {strides = array<i32>} : memref<144x256xf32, #tpu.memory_space<vmem>>, vector<16x256xf32>,
    %c239_i32_323 = arith.constant 239 : i32
    %287 = tpu.dynamic_rotate %257 by %c239_i32_323 dim 1 : vector<16x256xf32>, i32 -> vector<16x256xf32>
    %c128_324 = arith.constant 128 : index
    %c0_325 = arith.constant 0 : index
    %288 = vector.load %arg4[%c128_324, %c0_325] : memref<144x256xf32, #tpu.memory_space<vmem>>, vector<16x256xf32>
    %289 = arith.mulf %287, %288 : vector<16x256xf32>
    %c128_326 = arith.constant 128 : index
    %c0_327 = arith.constant 0 : index
    %290 = vector.load %arg6[%c128_326, %c0_327] : memref<144x256xf32, #tpu.memory_space<vmem>>, vector<16x256xf32>
    tpu.vector_store %arg6[%c128_326, %c0_327], %289 {strides = array<i32>} : memref<144x256xf32, #tpu.memory_space<vmem>>, vector<16x256xf32>,
    %c6 = arith.constant 6 : index
    %c0_328 = arith.constant 0 : index
    %c0_329 = arith.constant 0 : index
    %291 = vector.load %arg2[%c6, %c0_328, %c0_329] : memref<11x16x144xf32, #tpu.memory_space<vmem>>, vector<1x16x144xf32>
    %292 = vector.shape_cast %291 : vector<1x16x144xf32> to vector<16x144xf32>
    %c0_330 = arith.constant 0 : index
    %c0_331 = arith.constant 0 : index
    %293 = vector.load %arg6[%c0_330, %c0_331] : memref<144x256xf32, #tpu.memory_space<vmem>>, vector<144x256xf32>
    %cst_332 = arith.constant dense<0.000000e+00> : vector<16x256xf32>
    %294 = tpu.matmul %292, %293, %cst_332 {dimension_numbers = #tpu.dot_dimension_numbers<[1], [0], [0], [1], [0, 0, 1, 1], [], []>} : vector<16x144xf32>, vector<144x256xf32>, vector<16x256xf32> -> vector<16x256xf32>
    %c6_333 = arith.constant 6 : index
    %c0_334 = arith.constant 0 : index
    %c0_335 = arith.constant 0 : index
    %295 = vector.load %arg3[%c6_333, %c0_334, %c0_335] : memref<11x16x1xf32, #tpu.memory_space<vmem>>, vector<1x16x1xf32>
    %296 = vector.shape_cast %295 : vector<1x16x1xf32> to vector<16x1xf32>
    %297 = vector.broadcast %296 : vector<16x1xf32> to vector<16x256xf32>
    %298 = arith.addf %294, %297 : vector<16x256xf32>
    %cst_336 = arith.constant 0.000000e+00 : f32
    %299 = vector.broadcast %cst_336 : f32 to vector<16x256xf32>
    %300 = arith.maximumf %298, %299 : vector<16x256xf32>
    %c17_i32_337 = arith.constant 17 : i32
    %301 = tpu.dynamic_rotate %300 by %c17_i32_337 dim 1 : vector<16x256xf32>, i32 -> vector<16x256xf32>
    %c0_338 = arith.constant 0 : index
    %c0_339 = arith.constant 0 : index
    %302 = vector.load %arg4[%c0_338, %c0_339] : memref<144x256xf32, #tpu.memory_space<vmem>>, vector<16x256xf32>
    %303 = arith.mulf %301, %302 : vector<16x256xf32>
    %c0_340 = arith.constant 0 : index
    %c0_341 = arith.constant 0 : index
    %304 = vector.load %arg6[%c0_340, %c0_341] : memref<144x256xf32, #tpu.memory_space<vmem>>, vector<16x256xf32>
    tpu.vector_store %arg6[%c0_340, %c0_341], %303 {strides = array<i32>} : memref<144x256xf32, #tpu.memory_space<vmem>>, vector<16x256xf32>,
    %c16_i32_342 = arith.constant 16 : i32
    %305 = tpu.dynamic_rotate %300 by %c16_i32_342 dim 1 : vector<16x256xf32>, i32 -> vector<16x256xf32>
    %c16_343 = arith.constant 16 : index
    %c0_344 = arith.constant 0 : index
    %306 = vector.load %arg4[%c16_343, %c0_344] : memref<144x256xf32, #tpu.memory_space<vmem>>, vector<16x256xf32>
    %307 = arith.mulf %305, %306 : vector<16x256xf32>
    %c16_345 = arith.constant 16 : index
    %c0_346 = arith.constant 0 : index
    %308 = vector.load %arg6[%c16_345, %c0_346] : memref<144x256xf32, #tpu.memory_space<vmem>>, vector<16x256xf32>
    tpu.vector_store %arg6[%c16_345, %c0_346], %307 {strides = array<i32>} : memref<144x256xf32, #tpu.memory_space<vmem>>, vector<16x256xf32>,
    %c15_i32_347 = arith.constant 15 : i32
    %309 = tpu.dynamic_rotate %300 by %c15_i32_347 dim 1 : vector<16x256xf32>, i32 -> vector<16x256xf32>
    %c32_348 = arith.constant 32 : index
    %c0_349 = arith.constant 0 : index
    %310 = vector.load %arg4[%c32_348, %c0_349] : memref<144x256xf32, #tpu.memory_space<vmem>>, vector<16x256xf32>
    %311 = arith.mulf %309, %310 : vector<16x256xf32>
    %c32_350 = arith.constant 32 : index
    %c0_351 = arith.constant 0 : index
    %312 = vector.load %arg6[%c32_350, %c0_351] : memref<144x256xf32, #tpu.memory_space<vmem>>, vector<16x256xf32>
    tpu.vector_store %arg6[%c32_350, %c0_351], %311 {strides = array<i32>} : memref<144x256xf32, #tpu.memory_space<vmem>>, vector<16x256xf32>,
    %c1_i32_352 = arith.constant 1 : i32
    %313 = tpu.dynamic_rotate %300 by %c1_i32_352 dim 1 : vector<16x256xf32>, i32 -> vector<16x256xf32>
    %c48_353 = arith.constant 48 : index
    %c0_354 = arith.constant 0 : index
    %314 = vector.load %arg4[%c48_353, %c0_354] : memref<144x256xf32, #tpu.memory_space<vmem>>, vector<16x256xf32>
    %315 = arith.mulf %313, %314 : vector<16x256xf32>
    %c48_355 = arith.constant 48 : index
    %c0_356 = arith.constant 0 : index
    %316 = vector.load %arg6[%c48_355, %c0_356] : memref<144x256xf32, #tpu.memory_space<vmem>>, vector<16x256xf32>
    tpu.vector_store %arg6[%c48_355, %c0_356], %315 {strides = array<i32>} : memref<144x256xf32, #tpu.memory_space<vmem>>, vector<16x256xf32>,
    %c64_357 = arith.constant 64 : index
    %c0_358 = arith.constant 0 : index
    %317 = vector.load %arg6[%c64_357, %c0_358] : memref<144x256xf32, #tpu.memory_space<vmem>>, vector<16x256xf32>
    tpu.vector_store %arg6[%c64_357, %c0_358], %300 {strides = array<i32>} : memref<144x256xf32, #tpu.memory_space<vmem>>, vector<16x256xf32>,
    %c255_i32_359 = arith.constant 255 : i32
    %318 = tpu.dynamic_rotate %300 by %c255_i32_359 dim 1 : vector<16x256xf32>, i32 -> vector<16x256xf32>
    %c80_360 = arith.constant 80 : index
    %c0_361 = arith.constant 0 : index
    %319 = vector.load %arg4[%c80_360, %c0_361] : memref<144x256xf32, #tpu.memory_space<vmem>>, vector<16x256xf32>
    %320 = arith.mulf %318, %319 : vector<16x256xf32>
    %c80_362 = arith.constant 80 : index
    %c0_363 = arith.constant 0 : index
    %321 = vector.load %arg6[%c80_362, %c0_363] : memref<144x256xf32, #tpu.memory_space<vmem>>, vector<16x256xf32>
    tpu.vector_store %arg6[%c80_362, %c0_363], %320 {strides = array<i32>} : memref<144x256xf32, #tpu.memory_space<vmem>>, vector<16x256xf32>,
    %c241_i32_364 = arith.constant 241 : i32
    %322 = tpu.dynamic_rotate %300 by %c241_i32_364 dim 1 : vector<16x256xf32>, i32 -> vector<16x256xf32>
    %c96_365 = arith.constant 96 : index
    %c0_366 = arith.constant 0 : index
    %323 = vector.load %arg4[%c96_365, %c0_366] : memref<144x256xf32, #tpu.memory_space<vmem>>, vector<16x256xf32>
    %324 = arith.mulf %322, %323 : vector<16x256xf32>
    %c96_367 = arith.constant 96 : index
    %c0_368 = arith.constant 0 : index
    %325 = vector.load %arg6[%c96_367, %c0_368] : memref<144x256xf32, #tpu.memory_space<vmem>>, vector<16x256xf32>
    tpu.vector_store %arg6[%c96_367, %c0_368], %324 {strides = array<i32>} : memref<144x256xf32, #tpu.memory_space<vmem>>, vector<16x256xf32>,
    %c240_i32_369 = arith.constant 240 : i32
    %326 = tpu.dynamic_rotate %300 by %c240_i32_369 dim 1 : vector<16x256xf32>, i32 -> vector<16x256xf32>
    %c112_370 = arith.constant 112 : index
    %c0_371 = arith.constant 0 : index
    %327 = vector.load %arg4[%c112_370, %c0_371] : memref<144x256xf32, #tpu.memory_space<vmem>>, vector<16x256xf32>
    %328 = arith.mulf %326, %327 : vector<16x256xf32>
    %c112_372 = arith.constant 112 : index
    %c0_373 = arith.constant 0 : index
    %329 = vector.load %arg6[%c112_372, %c0_373] : memref<144x256xf32, #tpu.memory_space<vmem>>, vector<16x256xf32>
    tpu.vector_store %arg6[%c112_372, %c0_373], %328 {strides = array<i32>} : memref<144x256xf32, #tpu.memory_space<vmem>>, vector<16x256xf32>,
    %c239_i32_374 = arith.constant 239 : i32
    %330 = tpu.dynamic_rotate %300 by %c239_i32_374 dim 1 : vector<16x256xf32>, i32 -> vector<16x256xf32>
    %c128_375 = arith.constant 128 : index
    %c0_376 = arith.constant 0 : index
    %331 = vector.load %arg4[%c128_375, %c0_376] : memref<144x256xf32, #tpu.memory_space<vmem>>, vector<16x256xf32>
    %332 = arith.mulf %330, %331 : vector<16x256xf32>
    %c128_377 = arith.constant 128 : index
    %c0_378 = arith.constant 0 : index
    %333 = vector.load %arg6[%c128_377, %c0_378] : memref<144x256xf32, #tpu.memory_space<vmem>>, vector<16x256xf32>
    tpu.vector_store %arg6[%c128_377, %c0_378], %332 {strides = array<i32>} : memref<144x256xf32, #tpu.memory_space<vmem>>, vector<16x256xf32>,
    %c7 = arith.constant 7 : index
    %c0_379 = arith.constant 0 : index
    %c0_380 = arith.constant 0 : index
    %334 = vector.load %arg2[%c7, %c0_379, %c0_380] : memref<11x16x144xf32, #tpu.memory_space<vmem>>, vector<1x16x144xf32>
    %335 = vector.shape_cast %334 : vector<1x16x144xf32> to vector<16x144xf32>
    %c0_381 = arith.constant 0 : index
    %c0_382 = arith.constant 0 : index
    %336 = vector.load %arg6[%c0_381, %c0_382] : memref<144x256xf32, #tpu.memory_space<vmem>>, vector<144x256xf32>
    %cst_383 = arith.constant dense<0.000000e+00> : vector<16x256xf32>
    %337 = tpu.matmul %335, %336, %cst_383 {dimension_numbers = #tpu.dot_dimension_numbers<[1], [0], [0], [1], [0, 0, 1, 1], [], []>} : vector<16x144xf32>, vector<144x256xf32>, vector<16x256xf32> -> vector<16x256xf32>
    %c7_384 = arith.constant 7 : index
    %c0_385 = arith.constant 0 : index
    %c0_386 = arith.constant 0 : index
    %338 = vector.load %arg3[%c7_384, %c0_385, %c0_386] : memref<11x16x1xf32, #tpu.memory_space<vmem>>, vector<1x16x1xf32>
    %339 = vector.shape_cast %338 : vector<1x16x1xf32> to vector<16x1xf32>
    %340 = vector.broadcast %339 : vector<16x1xf32> to vector<16x256xf32>
    %341 = arith.addf %337, %340 : vector<16x256xf32>
    %342 = arith.addf %341, %257 : vector<16x256xf32>
    %c17_i32_387 = arith.constant 17 : i32
    %343 = tpu.dynamic_rotate %342 by %c17_i32_387 dim 1 : vector<16x256xf32>, i32 -> vector<16x256xf32>
    %c0_388 = arith.constant 0 : index
    %c0_389 = arith.constant 0 : index
    %344 = vector.load %arg4[%c0_388, %c0_389] : memref<144x256xf32, #tpu.memory_space<vmem>>, vector<16x256xf32>
    %345 = arith.mulf %343, %344 : vector<16x256xf32>
    %c0_390 = arith.constant 0 : index
    %c0_391 = arith.constant 0 : index
    %346 = vector.load %arg6[%c0_390, %c0_391] : memref<144x256xf32, #tpu.memory_space<vmem>>, vector<16x256xf32>
    tpu.vector_store %arg6[%c0_390, %c0_391], %345 {strides = array<i32>} : memref<144x256xf32, #tpu.memory_space<vmem>>, vector<16x256xf32>,
    %c16_i32_392 = arith.constant 16 : i32
    %347 = tpu.dynamic_rotate %342 by %c16_i32_392 dim 1 : vector<16x256xf32>, i32 -> vector<16x256xf32>
    %c16_393 = arith.constant 16 : index
    %c0_394 = arith.constant 0 : index
    %348 = vector.load %arg4[%c16_393, %c0_394] : memref<144x256xf32, #tpu.memory_space<vmem>>, vector<16x256xf32>
    %349 = arith.mulf %347, %348 : vector<16x256xf32>
    %c16_395 = arith.constant 16 : index
    %c0_396 = arith.constant 0 : index
    %350 = vector.load %arg6[%c16_395, %c0_396] : memref<144x256xf32, #tpu.memory_space<vmem>>, vector<16x256xf32>
    tpu.vector_store %arg6[%c16_395, %c0_396], %349 {strides = array<i32>} : memref<144x256xf32, #tpu.memory_space<vmem>>, vector<16x256xf32>,
    %c15_i32_397 = arith.constant 15 : i32
    %351 = tpu.dynamic_rotate %342 by %c15_i32_397 dim 1 : vector<16x256xf32>, i32 -> vector<16x256xf32>
    %c32_398 = arith.constant 32 : index
    %c0_399 = arith.constant 0 : index
    %352 = vector.load %arg4[%c32_398, %c0_399] : memref<144x256xf32, #tpu.memory_space<vmem>>, vector<16x256xf32>
    %353 = arith.mulf %351, %352 : vector<16x256xf32>
    %c32_400 = arith.constant 32 : index
    %c0_401 = arith.constant 0 : index
    %354 = vector.load %arg6[%c32_400, %c0_401] : memref<144x256xf32, #tpu.memory_space<vmem>>, vector<16x256xf32>
    tpu.vector_store %arg6[%c32_400, %c0_401], %353 {strides = array<i32>} : memref<144x256xf32, #tpu.memory_space<vmem>>, vector<16x256xf32>,
    %c1_i32_402 = arith.constant 1 : i32
    %355 = tpu.dynamic_rotate %342 by %c1_i32_402 dim 1 : vector<16x256xf32>, i32 -> vector<16x256xf32>
    %c48_403 = arith.constant 48 : index
    %c0_404 = arith.constant 0 : index
    %356 = vector.load %arg4[%c48_403, %c0_404] : memref<144x256xf32, #tpu.memory_space<vmem>>, vector<16x256xf32>
    %357 = arith.mulf %355, %356 : vector<16x256xf32>
    %c48_405 = arith.constant 48 : index
    %c0_406 = arith.constant 0 : index
    %358 = vector.load %arg6[%c48_405, %c0_406] : memref<144x256xf32, #tpu.memory_space<vmem>>, vector<16x256xf32>
    tpu.vector_store %arg6[%c48_405, %c0_406], %357 {strides = array<i32>} : memref<144x256xf32, #tpu.memory_space<vmem>>, vector<16x256xf32>,
    %c64_407 = arith.constant 64 : index
    %c0_408 = arith.constant 0 : index
    %359 = vector.load %arg6[%c64_407, %c0_408] : memref<144x256xf32, #tpu.memory_space<vmem>>, vector<16x256xf32>
    tpu.vector_store %arg6[%c64_407, %c0_408], %342 {strides = array<i32>} : memref<144x256xf32, #tpu.memory_space<vmem>>, vector<16x256xf32>,
    %c255_i32_409 = arith.constant 255 : i32
    %360 = tpu.dynamic_rotate %342 by %c255_i32_409 dim 1 : vector<16x256xf32>, i32 -> vector<16x256xf32>
    %c80_410 = arith.constant 80 : index
    %c0_411 = arith.constant 0 : index
    %361 = vector.load %arg4[%c80_410, %c0_411] : memref<144x256xf32, #tpu.memory_space<vmem>>, vector<16x256xf32>
    %362 = arith.mulf %360, %361 : vector<16x256xf32>
    %c80_412 = arith.constant 80 : index
    %c0_413 = arith.constant 0 : index
    %363 = vector.load %arg6[%c80_412, %c0_413] : memref<144x256xf32, #tpu.memory_space<vmem>>, vector<16x256xf32>
    tpu.vector_store %arg6[%c80_412, %c0_413], %362 {strides = array<i32>} : memref<144x256xf32, #tpu.memory_space<vmem>>, vector<16x256xf32>,
    %c241_i32_414 = arith.constant 241 : i32
    %364 = tpu.dynamic_rotate %342 by %c241_i32_414 dim 1 : vector<16x256xf32>, i32 -> vector<16x256xf32>
    %c96_415 = arith.constant 96 : index
    %c0_416 = arith.constant 0 : index
    %365 = vector.load %arg4[%c96_415, %c0_416] : memref<144x256xf32, #tpu.memory_space<vmem>>, vector<16x256xf32>
    %366 = arith.mulf %364, %365 : vector<16x256xf32>
    %c96_417 = arith.constant 96 : index
    %c0_418 = arith.constant 0 : index
    %367 = vector.load %arg6[%c96_417, %c0_418] : memref<144x256xf32, #tpu.memory_space<vmem>>, vector<16x256xf32>
    tpu.vector_store %arg6[%c96_417, %c0_418], %366 {strides = array<i32>} : memref<144x256xf32, #tpu.memory_space<vmem>>, vector<16x256xf32>,
    %c240_i32_419 = arith.constant 240 : i32
    %368 = tpu.dynamic_rotate %342 by %c240_i32_419 dim 1 : vector<16x256xf32>, i32 -> vector<16x256xf32>
    %c112_420 = arith.constant 112 : index
    %c0_421 = arith.constant 0 : index
    %369 = vector.load %arg4[%c112_420, %c0_421] : memref<144x256xf32, #tpu.memory_space<vmem>>, vector<16x256xf32>
    %370 = arith.mulf %368, %369 : vector<16x256xf32>
    %c112_422 = arith.constant 112 : index
    %c0_423 = arith.constant 0 : index
    %371 = vector.load %arg6[%c112_422, %c0_423] : memref<144x256xf32, #tpu.memory_space<vmem>>, vector<16x256xf32>
    tpu.vector_store %arg6[%c112_422, %c0_423], %370 {strides = array<i32>} : memref<144x256xf32, #tpu.memory_space<vmem>>, vector<16x256xf32>,
    %c239_i32_424 = arith.constant 239 : i32
    %372 = tpu.dynamic_rotate %342 by %c239_i32_424 dim 1 : vector<16x256xf32>, i32 -> vector<16x256xf32>
    %c128_425 = arith.constant 128 : index
    %c0_426 = arith.constant 0 : index
    %373 = vector.load %arg4[%c128_425, %c0_426] : memref<144x256xf32, #tpu.memory_space<vmem>>, vector<16x256xf32>
    %374 = arith.mulf %372, %373 : vector<16x256xf32>
    %c128_427 = arith.constant 128 : index
    %c0_428 = arith.constant 0 : index
    %375 = vector.load %arg6[%c128_427, %c0_428] : memref<144x256xf32, #tpu.memory_space<vmem>>, vector<16x256xf32>
    tpu.vector_store %arg6[%c128_427, %c0_428], %374 {strides = array<i32>} : memref<144x256xf32, #tpu.memory_space<vmem>>, vector<16x256xf32>,
    %c8_429 = arith.constant 8 : index
    %c0_430 = arith.constant 0 : index
    %c0_431 = arith.constant 0 : index
    %376 = vector.load %arg2[%c8_429, %c0_430, %c0_431] : memref<11x16x144xf32, #tpu.memory_space<vmem>>, vector<1x16x144xf32>
    %377 = vector.shape_cast %376 : vector<1x16x144xf32> to vector<16x144xf32>
    %c0_432 = arith.constant 0 : index
    %c0_433 = arith.constant 0 : index
    %378 = vector.load %arg6[%c0_432, %c0_433] : memref<144x256xf32, #tpu.memory_space<vmem>>, vector<144x256xf32>
    %cst_434 = arith.constant dense<0.000000e+00> : vector<16x256xf32>
    %379 = tpu.matmul %377, %378, %cst_434 {dimension_numbers = #tpu.dot_dimension_numbers<[1], [0], [0], [1], [0, 0, 1, 1], [], []>} : vector<16x144xf32>, vector<144x256xf32>, vector<16x256xf32> -> vector<16x256xf32>
    %c8_435 = arith.constant 8 : index
    %c0_436 = arith.constant 0 : index
    %c0_437 = arith.constant 0 : index
    %380 = vector.load %arg3[%c8_435, %c0_436, %c0_437] : memref<11x16x1xf32, #tpu.memory_space<vmem>>, vector<1x16x1xf32>
    %381 = vector.shape_cast %380 : vector<1x16x1xf32> to vector<16x1xf32>
    %382 = vector.broadcast %381 : vector<16x1xf32> to vector<16x256xf32>
    %383 = arith.addf %379, %382 : vector<16x256xf32>
    %cst_438 = arith.constant 0.000000e+00 : f32
    %384 = vector.broadcast %cst_438 : f32 to vector<16x256xf32>
    %385 = arith.maximumf %383, %384 : vector<16x256xf32>
    %c17_i32_439 = arith.constant 17 : i32
    %386 = tpu.dynamic_rotate %385 by %c17_i32_439 dim 1 : vector<16x256xf32>, i32 -> vector<16x256xf32>
    %c0_440 = arith.constant 0 : index
    %c0_441 = arith.constant 0 : index
    %387 = vector.load %arg4[%c0_440, %c0_441] : memref<144x256xf32, #tpu.memory_space<vmem>>, vector<16x256xf32>
    %388 = arith.mulf %386, %387 : vector<16x256xf32>
    %c0_442 = arith.constant 0 : index
    %c0_443 = arith.constant 0 : index
    %389 = vector.load %arg6[%c0_442, %c0_443] : memref<144x256xf32, #tpu.memory_space<vmem>>, vector<16x256xf32>
    tpu.vector_store %arg6[%c0_442, %c0_443], %388 {strides = array<i32>} : memref<144x256xf32, #tpu.memory_space<vmem>>, vector<16x256xf32>,
    %c16_i32_444 = arith.constant 16 : i32
    %390 = tpu.dynamic_rotate %385 by %c16_i32_444 dim 1 : vector<16x256xf32>, i32 -> vector<16x256xf32>
    %c16_445 = arith.constant 16 : index
    %c0_446 = arith.constant 0 : index
    %391 = vector.load %arg4[%c16_445, %c0_446] : memref<144x256xf32, #tpu.memory_space<vmem>>, vector<16x256xf32>
    %392 = arith.mulf %390, %391 : vector<16x256xf32>
    %c16_447 = arith.constant 16 : index
    %c0_448 = arith.constant 0 : index
    %393 = vector.load %arg6[%c16_447, %c0_448] : memref<144x256xf32, #tpu.memory_space<vmem>>, vector<16x256xf32>
    tpu.vector_store %arg6[%c16_447, %c0_448], %392 {strides = array<i32>} : memref<144x256xf32, #tpu.memory_space<vmem>>, vector<16x256xf32>,
    %c15_i32_449 = arith.constant 15 : i32
    %394 = tpu.dynamic_rotate %385 by %c15_i32_449 dim 1 : vector<16x256xf32>, i32 -> vector<16x256xf32>
    %c32_450 = arith.constant 32 : index
    %c0_451 = arith.constant 0 : index
    %395 = vector.load %arg4[%c32_450, %c0_451] : memref<144x256xf32, #tpu.memory_space<vmem>>, vector<16x256xf32>
    %396 = arith.mulf %394, %395 : vector<16x256xf32>
    %c32_452 = arith.constant 32 : index
    %c0_453 = arith.constant 0 : index
    %397 = vector.load %arg6[%c32_452, %c0_453] : memref<144x256xf32, #tpu.memory_space<vmem>>, vector<16x256xf32>
    tpu.vector_store %arg6[%c32_452, %c0_453], %396 {strides = array<i32>} : memref<144x256xf32, #tpu.memory_space<vmem>>, vector<16x256xf32>,
    %c1_i32_454 = arith.constant 1 : i32
    %398 = tpu.dynamic_rotate %385 by %c1_i32_454 dim 1 : vector<16x256xf32>, i32 -> vector<16x256xf32>
    %c48_455 = arith.constant 48 : index
    %c0_456 = arith.constant 0 : index
    %399 = vector.load %arg4[%c48_455, %c0_456] : memref<144x256xf32, #tpu.memory_space<vmem>>, vector<16x256xf32>
    %400 = arith.mulf %398, %399 : vector<16x256xf32>
    %c48_457 = arith.constant 48 : index
    %c0_458 = arith.constant 0 : index
    %401 = vector.load %arg6[%c48_457, %c0_458] : memref<144x256xf32, #tpu.memory_space<vmem>>, vector<16x256xf32>
    tpu.vector_store %arg6[%c48_457, %c0_458], %400 {strides = array<i32>} : memref<144x256xf32, #tpu.memory_space<vmem>>, vector<16x256xf32>,
    %c64_459 = arith.constant 64 : index
    %c0_460 = arith.constant 0 : index
    %402 = vector.load %arg6[%c64_459, %c0_460] : memref<144x256xf32, #tpu.memory_space<vmem>>, vector<16x256xf32>
    tpu.vector_store %arg6[%c64_459, %c0_460], %385 {strides = array<i32>} : memref<144x256xf32, #tpu.memory_space<vmem>>, vector<16x256xf32>,
    %c255_i32_461 = arith.constant 255 : i32
    %403 = tpu.dynamic_rotate %385 by %c255_i32_461 dim 1 : vector<16x256xf32>, i32 -> vector<16x256xf32>
    %c80_462 = arith.constant 80 : index
    %c0_463 = arith.constant 0 : index
    %404 = vector.load %arg4[%c80_462, %c0_463] : memref<144x256xf32, #tpu.memory_space<vmem>>, vector<16x256xf32>
    %405 = arith.mulf %403, %404 : vector<16x256xf32>
    %c80_464 = arith.constant 80 : index
    %c0_465 = arith.constant 0 : index
    %406 = vector.load %arg6[%c80_464, %c0_465] : memref<144x256xf32, #tpu.memory_space<vmem>>, vector<16x256xf32>
    tpu.vector_store %arg6[%c80_464, %c0_465], %405 {strides = array<i32>} : memref<144x256xf32, #tpu.memory_space<vmem>>, vector<16x256xf32>,
    %c241_i32_466 = arith.constant 241 : i32
    %407 = tpu.dynamic_rotate %385 by %c241_i32_466 dim 1 : vector<16x256xf32>, i32 -> vector<16x256xf32>
    %c96_467 = arith.constant 96 : index
    %c0_468 = arith.constant 0 : index
    %408 = vector.load %arg4[%c96_467, %c0_468] : memref<144x256xf32, #tpu.memory_space<vmem>>, vector<16x256xf32>
    %409 = arith.mulf %407, %408 : vector<16x256xf32>
    %c96_469 = arith.constant 96 : index
    %c0_470 = arith.constant 0 : index
    %410 = vector.load %arg6[%c96_469, %c0_470] : memref<144x256xf32, #tpu.memory_space<vmem>>, vector<16x256xf32>
    tpu.vector_store %arg6[%c96_469, %c0_470], %409 {strides = array<i32>} : memref<144x256xf32, #tpu.memory_space<vmem>>, vector<16x256xf32>,
    %c240_i32_471 = arith.constant 240 : i32
    %411 = tpu.dynamic_rotate %385 by %c240_i32_471 dim 1 : vector<16x256xf32>, i32 -> vector<16x256xf32>
    %c112_472 = arith.constant 112 : index
    %c0_473 = arith.constant 0 : index
    %412 = vector.load %arg4[%c112_472, %c0_473] : memref<144x256xf32, #tpu.memory_space<vmem>>, vector<16x256xf32>
    %413 = arith.mulf %411, %412 : vector<16x256xf32>
    %c112_474 = arith.constant 112 : index
    %c0_475 = arith.constant 0 : index
    %414 = vector.load %arg6[%c112_474, %c0_475] : memref<144x256xf32, #tpu.memory_space<vmem>>, vector<16x256xf32>
    tpu.vector_store %arg6[%c112_474, %c0_475], %413 {strides = array<i32>} : memref<144x256xf32, #tpu.memory_space<vmem>>, vector<16x256xf32>,
    %c239_i32_476 = arith.constant 239 : i32
    %415 = tpu.dynamic_rotate %385 by %c239_i32_476 dim 1 : vector<16x256xf32>, i32 -> vector<16x256xf32>
    %c128_477 = arith.constant 128 : index
    %c0_478 = arith.constant 0 : index
    %416 = vector.load %arg4[%c128_477, %c0_478] : memref<144x256xf32, #tpu.memory_space<vmem>>, vector<16x256xf32>
    %417 = arith.mulf %415, %416 : vector<16x256xf32>
    %c128_479 = arith.constant 128 : index
    %c0_480 = arith.constant 0 : index
    %418 = vector.load %arg6[%c128_479, %c0_480] : memref<144x256xf32, #tpu.memory_space<vmem>>, vector<16x256xf32>
    tpu.vector_store %arg6[%c128_479, %c0_480], %417 {strides = array<i32>} : memref<144x256xf32, #tpu.memory_space<vmem>>, vector<16x256xf32>,
    %c9 = arith.constant 9 : index
    %c0_481 = arith.constant 0 : index
    %c0_482 = arith.constant 0 : index
    %419 = vector.load %arg2[%c9, %c0_481, %c0_482] : memref<11x16x144xf32, #tpu.memory_space<vmem>>, vector<1x16x144xf32>
    %420 = vector.shape_cast %419 : vector<1x16x144xf32> to vector<16x144xf32>
    %c0_483 = arith.constant 0 : index
    %c0_484 = arith.constant 0 : index
    %421 = vector.load %arg6[%c0_483, %c0_484] : memref<144x256xf32, #tpu.memory_space<vmem>>, vector<144x256xf32>
    %cst_485 = arith.constant dense<0.000000e+00> : vector<16x256xf32>
    %422 = tpu.matmul %420, %421, %cst_485 {dimension_numbers = #tpu.dot_dimension_numbers<[1], [0], [0], [1], [0, 0, 1, 1], [], []>} : vector<16x144xf32>, vector<144x256xf32>, vector<16x256xf32> -> vector<16x256xf32>
    %c9_486 = arith.constant 9 : index
    %c0_487 = arith.constant 0 : index
    %c0_488 = arith.constant 0 : index
    %423 = vector.load %arg3[%c9_486, %c0_487, %c0_488] : memref<11x16x1xf32, #tpu.memory_space<vmem>>, vector<1x16x1xf32>
    %424 = vector.shape_cast %423 : vector<1x16x1xf32> to vector<16x1xf32>
    %425 = vector.broadcast %424 : vector<16x1xf32> to vector<16x256xf32>
    %426 = arith.addf %422, %425 : vector<16x256xf32>
    %427 = arith.addf %426, %342 : vector<16x256xf32>
    %c17_i32_489 = arith.constant 17 : i32
    %428 = tpu.dynamic_rotate %427 by %c17_i32_489 dim 1 : vector<16x256xf32>, i32 -> vector<16x256xf32>
    %c0_490 = arith.constant 0 : index
    %c0_491 = arith.constant 0 : index
    %429 = vector.load %arg4[%c0_490, %c0_491] : memref<144x256xf32, #tpu.memory_space<vmem>>, vector<16x256xf32>
    %430 = arith.mulf %428, %429 : vector<16x256xf32>
    %c0_492 = arith.constant 0 : index
    %c0_493 = arith.constant 0 : index
    %431 = vector.load %arg6[%c0_492, %c0_493] : memref<144x256xf32, #tpu.memory_space<vmem>>, vector<16x256xf32>
    tpu.vector_store %arg6[%c0_492, %c0_493], %430 {strides = array<i32>} : memref<144x256xf32, #tpu.memory_space<vmem>>, vector<16x256xf32>,
    %c16_i32_494 = arith.constant 16 : i32
    %432 = tpu.dynamic_rotate %427 by %c16_i32_494 dim 1 : vector<16x256xf32>, i32 -> vector<16x256xf32>
    %c16_495 = arith.constant 16 : index
    %c0_496 = arith.constant 0 : index
    %433 = vector.load %arg4[%c16_495, %c0_496] : memref<144x256xf32, #tpu.memory_space<vmem>>, vector<16x256xf32>
    %434 = arith.mulf %432, %433 : vector<16x256xf32>
    %c16_497 = arith.constant 16 : index
    %c0_498 = arith.constant 0 : index
    %435 = vector.load %arg6[%c16_497, %c0_498] : memref<144x256xf32, #tpu.memory_space<vmem>>, vector<16x256xf32>
    tpu.vector_store %arg6[%c16_497, %c0_498], %434 {strides = array<i32>} : memref<144x256xf32, #tpu.memory_space<vmem>>, vector<16x256xf32>,
    %c15_i32_499 = arith.constant 15 : i32
    %436 = tpu.dynamic_rotate %427 by %c15_i32_499 dim 1 : vector<16x256xf32>, i32 -> vector<16x256xf32>
    %c32_500 = arith.constant 32 : index
    %c0_501 = arith.constant 0 : index
    %437 = vector.load %arg4[%c32_500, %c0_501] : memref<144x256xf32, #tpu.memory_space<vmem>>, vector<16x256xf32>
    %438 = arith.mulf %436, %437 : vector<16x256xf32>
    %c32_502 = arith.constant 32 : index
    %c0_503 = arith.constant 0 : index
    %439 = vector.load %arg6[%c32_502, %c0_503] : memref<144x256xf32, #tpu.memory_space<vmem>>, vector<16x256xf32>
    tpu.vector_store %arg6[%c32_502, %c0_503], %438 {strides = array<i32>} : memref<144x256xf32, #tpu.memory_space<vmem>>, vector<16x256xf32>,
    %c1_i32_504 = arith.constant 1 : i32
    %440 = tpu.dynamic_rotate %427 by %c1_i32_504 dim 1 : vector<16x256xf32>, i32 -> vector<16x256xf32>
    %c48_505 = arith.constant 48 : index
    %c0_506 = arith.constant 0 : index
    %441 = vector.load %arg4[%c48_505, %c0_506] : memref<144x256xf32, #tpu.memory_space<vmem>>, vector<16x256xf32>
    %442 = arith.mulf %440, %441 : vector<16x256xf32>
    %c48_507 = arith.constant 48 : index
    %c0_508 = arith.constant 0 : index
    %443 = vector.load %arg6[%c48_507, %c0_508] : memref<144x256xf32, #tpu.memory_space<vmem>>, vector<16x256xf32>
    tpu.vector_store %arg6[%c48_507, %c0_508], %442 {strides = array<i32>} : memref<144x256xf32, #tpu.memory_space<vmem>>, vector<16x256xf32>,
    %c64_509 = arith.constant 64 : index
    %c0_510 = arith.constant 0 : index
    %444 = vector.load %arg6[%c64_509, %c0_510] : memref<144x256xf32, #tpu.memory_space<vmem>>, vector<16x256xf32>
    tpu.vector_store %arg6[%c64_509, %c0_510], %427 {strides = array<i32>} : memref<144x256xf32, #tpu.memory_space<vmem>>, vector<16x256xf32>,
    %c255_i32_511 = arith.constant 255 : i32
    %445 = tpu.dynamic_rotate %427 by %c255_i32_511 dim 1 : vector<16x256xf32>, i32 -> vector<16x256xf32>
    %c80_512 = arith.constant 80 : index
    %c0_513 = arith.constant 0 : index
    %446 = vector.load %arg4[%c80_512, %c0_513] : memref<144x256xf32, #tpu.memory_space<vmem>>, vector<16x256xf32>
    %447 = arith.mulf %445, %446 : vector<16x256xf32>
    %c80_514 = arith.constant 80 : index
    %c0_515 = arith.constant 0 : index
    %448 = vector.load %arg6[%c80_514, %c0_515] : memref<144x256xf32, #tpu.memory_space<vmem>>, vector<16x256xf32>
    tpu.vector_store %arg6[%c80_514, %c0_515], %447 {strides = array<i32>} : memref<144x256xf32, #tpu.memory_space<vmem>>, vector<16x256xf32>,
    %c241_i32_516 = arith.constant 241 : i32
    %449 = tpu.dynamic_rotate %427 by %c241_i32_516 dim 1 : vector<16x256xf32>, i32 -> vector<16x256xf32>
    %c96_517 = arith.constant 96 : index
    %c0_518 = arith.constant 0 : index
    %450 = vector.load %arg4[%c96_517, %c0_518] : memref<144x256xf32, #tpu.memory_space<vmem>>, vector<16x256xf32>
    %451 = arith.mulf %449, %450 : vector<16x256xf32>
    %c96_519 = arith.constant 96 : index
    %c0_520 = arith.constant 0 : index
    %452 = vector.load %arg6[%c96_519, %c0_520] : memref<144x256xf32, #tpu.memory_space<vmem>>, vector<16x256xf32>
    tpu.vector_store %arg6[%c96_519, %c0_520], %451 {strides = array<i32>} : memref<144x256xf32, #tpu.memory_space<vmem>>, vector<16x256xf32>,
    %c240_i32_521 = arith.constant 240 : i32
    %453 = tpu.dynamic_rotate %427 by %c240_i32_521 dim 1 : vector<16x256xf32>, i32 -> vector<16x256xf32>
    %c112_522 = arith.constant 112 : index
    %c0_523 = arith.constant 0 : index
    %454 = vector.load %arg4[%c112_522, %c0_523] : memref<144x256xf32, #tpu.memory_space<vmem>>, vector<16x256xf32>
    %455 = arith.mulf %453, %454 : vector<16x256xf32>
    %c112_524 = arith.constant 112 : index
    %c0_525 = arith.constant 0 : index
    %456 = vector.load %arg6[%c112_524, %c0_525] : memref<144x256xf32, #tpu.memory_space<vmem>>, vector<16x256xf32>
    tpu.vector_store %arg6[%c112_524, %c0_525], %455 {strides = array<i32>} : memref<144x256xf32, #tpu.memory_space<vmem>>, vector<16x256xf32>,
    %c239_i32_526 = arith.constant 239 : i32
    %457 = tpu.dynamic_rotate %427 by %c239_i32_526 dim 1 : vector<16x256xf32>, i32 -> vector<16x256xf32>
    %c128_527 = arith.constant 128 : index
    %c0_528 = arith.constant 0 : index
    %458 = vector.load %arg4[%c128_527, %c0_528] : memref<144x256xf32, #tpu.memory_space<vmem>>, vector<16x256xf32>
    %459 = arith.mulf %457, %458 : vector<16x256xf32>
    %c128_529 = arith.constant 128 : index
    %c0_530 = arith.constant 0 : index
    %460 = vector.load %arg6[%c128_529, %c0_530] : memref<144x256xf32, #tpu.memory_space<vmem>>, vector<16x256xf32>
    tpu.vector_store %arg6[%c128_529, %c0_530], %459 {strides = array<i32>} : memref<144x256xf32, #tpu.memory_space<vmem>>, vector<16x256xf32>,
    %c10 = arith.constant 10 : index
    %c0_531 = arith.constant 0 : index
    %c0_532 = arith.constant 0 : index
    %461 = vector.load %arg2[%c10, %c0_531, %c0_532] : memref<11x16x144xf32, #tpu.memory_space<vmem>>, vector<1x4x144xf32>
    %462 = vector.shape_cast %461 : vector<1x4x144xf32> to vector<4x144xf32>
    %c0_533 = arith.constant 0 : index
    %c0_534 = arith.constant 0 : index
    %463 = vector.load %arg6[%c0_533, %c0_534] : memref<144x256xf32, #tpu.memory_space<vmem>>, vector<144x256xf32>
    %cst_535 = arith.constant dense<0.000000e+00> : vector<4x256xf32>
    %464 = tpu.matmul %462, %463, %cst_535 {dimension_numbers = #tpu.dot_dimension_numbers<[1], [0], [0], [1], [0, 0, 1, 1], [], []>} : vector<4x144xf32>, vector<144x256xf32>, vector<4x256xf32> -> vector<4x256xf32>
    %c10_536 = arith.constant 10 : index
    %c0_537 = arith.constant 0 : index
    %c0_538 = arith.constant 0 : index
    %465 = vector.load %arg3[%c10_536, %c0_537, %c0_538] : memref<11x16x1xf32, #tpu.memory_space<vmem>>, vector<1x4x1xf32>
    %466 = vector.shape_cast %465 : vector<1x4x1xf32> to vector<4x1xf32>
    %467 = vector.broadcast %466 : vector<4x1xf32> to vector<4x256xf32>
    %468 = arith.addf %464, %467 : vector<4x256xf32>
    %c0_539 = arith.constant 0 : index
    %c0_540 = arith.constant 0 : index
    %c0_541 = arith.constant 0 : index
    %469 = vector.load %arg5[%c0_539, %c0_540, %c0_541] : memref<1x4x256xf32, #tpu.memory_space<vmem>>, vector<1x4x256xf32>
    %470 = vector.shape_cast %469 : vector<1x4x256xf32> to vector<4x256xf32>
    %471 = vector.shape_cast %468 : vector<4x256xf32> to vector<1x4x256xf32>
    tpu.vector_store %arg5[%c0_539, %c0_540, %c0_541], %471 {strides = array<i32>} : memref<1x4x256xf32, #tpu.memory_space<vmem>>, vector<1x4x256xf32>,
    return
  }
  func.func @transform_0(%arg0: i32) -> (i32, i32, i32) {
    %c0_i32 = arith.constant 0 : i32
    %c0_i32_0 = arith.constant 0 : i32
    %c0_i32_1 = arith.constant 0 : i32
    return %arg0, %c0_i32, %c0_i32_0 : i32, i32, i32
  }
  func.func @transform_1(%arg0: i32) -> (i32, i32, i32) {
    %c0_i32 = arith.constant 0 : i32
    %c0_i32_0 = arith.constant 0 : i32
    %c0_i32_1 = arith.constant 0 : i32
    %c0_i32_2 = arith.constant 0 : i32
    return %c0_i32, %c0_i32_0, %c0_i32_1 : i32, i32, i32
  }
  func.func @transform_2(%arg0: i32) -> (i32, i32, i32) {
    %c0_i32 = arith.constant 0 : i32
    %c0_i32_0 = arith.constant 0 : i32
    %c0_i32_1 = arith.constant 0 : i32
    %c0_i32_2 = arith.constant 0 : i32
    return %c0_i32, %c0_i32_0, %c0_i32_1 : i32, i32, i32
  }
  func.func @transform_3(%arg0: i32) -> (i32, i32) {
    %c0_i32 = arith.constant 0 : i32
    %c0_i32_0 = arith.constant 0 : i32
    %c0_i32_1 = arith.constant 0 : i32
    return %c0_i32, %c0_i32_0 : i32, i32
  }
  func.func @transform_4(%arg0: i32) -> (i32, i32, i32) {
    %c0_i32 = arith.constant 0 : i32
    %c0_i32_0 = arith.constant 0 : i32
    %c0_i32_1 = arith.constant 0 : i32
    return %arg0, %c0_i32, %c0_i32_0 : i32, i32, i32
  }
}

</mosaic_0001>

<llo_original>
// kernel: tpu_custom_call.1
$region0: #{tpu_custom_call.1}
  #allocation0 [shape = 'u32[]', space=smem, size = 0x4, offset = 0x4, fixed_abs, tag = 'smem constant byte address 0x4 - core index']
  #allocation1 [shape = 'u32[144,128]{1,0:T(1,128)}', space=vmem, size = 0x12000, scoped, tag = 'internal scratch']
  #allocation2 [shape = 'f32[144,256]{1,0:T(8,128)}', space=vmem, size = 0x24000, scoped, tag = 'scratch operand']
  %s0 = inlined_call_operand.vmem [shape: f32[2,8,256], index: 0, kind: input, shape index: {}]
  %s1 = inlined_call_operand.hbm [shape: f32[11,16,144], index: 1, kind: input, shape index: {}]
  %s2 = inlined_call_operand.vmem [shape: f32[11,16,1], index: 2, kind: input, shape index: {}]
  %s3 = inlined_call_operand.hbm [shape: f32[144,256], index: 3, kind: input, shape index: {}]
  %s4 = inlined_call_operand.hbm [shape: f32[2,4,256], index: 4, kind: output, shape index: {}]
  %s5 = sld [smem:[#allocation0]]
  $region57: #{tpu_custom_call.1} parent=0
    _
  %s7 = ssub.s32 1, %s5
  %s8 = scalar_select 0, %s7, %s5
  $region1: #{tpu_custom_call.1} parent=0
    #allocation3 [shape = 'u8[180224]{0}', space=vmem, size = 0x2c000, scoped, tag = 'input window, operand 1, single buffered']
    #allocation4 [shape = 's32[2]{0}', space=sflag, size = 0x8, scoped, tag = 'scoped memory for tpu_custom_call.1']
    #allocation5 [shape = 's32[2]{0}', space=sflag, size = 0x8, scoped, tag = 'scoped memory for tpu_custom_call.1']
    #allocation6 [shape = 'u8[147456]{0}', space=vmem, size = 0x24000, scoped, tag = 'input window, operand 3, single buffered']
    #allocation7 [shape = 's32[1]{0}', space=sflag, size = 0x4, scoped, tag = 'scoped memory for tpu_custom_call.1']
    #allocation8 [shape = 'u8[8192]{0}', space=vmem, size = 0x2000, scoped, tag = 'output window, operand 0']
    %9 = vsyncpa [#allocation4], 0
    %10 = vsyncpa [#allocation7], 0
    %11 = vsyncpa [#allocation5], 0
    %s12 = scalar_lea.sflag [#allocation5], 1
    %13 = vsyncpa %s12, 0
    loop: start=0, step=1, limit=4
    $region2: #{tpu_custom_call.1} parent=1 // loop_pre_header
      _
    $region3: #{tpu_custom_call.1} parent=1 // loop_header
      %s15 = sphi 0, %s19
      %p16 = scmp.ge.s32.totalorder %s15, 4
      %s25 = sphi 0, %s27
      %s28 = sphi 0, %s25
      %s29 = sphi 0, %s28
      %s45 = sphi 0, %s29
      %s49 = sphi 0, %s49
      %s51 = sphi 0, %s49
      %s52 = sphi 0, %s51
      %s66 = sphi 0, %s52
      %s70 = sphi 0, %s70
      %s72 = sphi 0, %s70
      %s73 = sphi 0, %s72
      %s87 = sphi 0, %s73
      %s91 = sphi 0, %s91
      %s93 = sphi 0, %s91
      %s94 = sphi 0, %s93
      %s108 = sphi 0, %s94
      %s114 = sphi 0, %s116
      %s117 = sphi 0, %s114
      %s118 = sphi 0, %s117
      %s134 = sphi 0, %s118
    $region4: #{tpu_custom_call.1} parent=1 // loop_header_branch
      %18 = sbr.rel (%p16) target = $region8
    $region5: #{tpu_custom_call.1} parent=1 // loop_body
      %s20 = ssub.s32 %s15, 1
      %s21 = ssub.s32 %s15, 2
      %s22 = sadd.s32 %s15, 1
      %s23 = ssub.s32 %s15, %s22
      %p24 = scmp.eq.s32.totalorder %s23, 0
      %s26 = sadd.s32 %s25, 1
      %s27 = scalar_select %p24, %s25, %s26
      %p30 = pneg %p24
      %p31 = scmp.eq.s32.totalorder %s15, 1
      %p32 = por %p30, %p31
      %p33 = scmp.ne.s32.totalorder %s25, %s28
      %p34 = scmp.eq.s32.totalorder %s15, 0
      %p35 = por %p33, %p34
      %p36 = scmp.ne.s32.totalorder %s25, %s28
      %p37 = scmp.eq.s32.totalorder %s20, 1
      %p38 = por %p36, %p37
      %p39 = scmp.ne.s32.totalorder %s28, %s29
      %p40 = scmp.eq.s32.totalorder %s20, 0
      %p41 = por %p39, %p40
      %p42 = scmp.ne.s32.totalorder %s28, %s29
      %p43 = scmp.eq.s32.totalorder %s21, 1
      %p44 = por %p42, %p43
      %p46 = scmp.ne.s32.totalorder %s29, %s45
      %p47 = scmp.eq.s32.totalorder %s21, 0
      %p48 = por %p46, %p47
      %s50 = sadd.s32 %s49, 1
      %p53 = scmp.eq.s32.totalorder %s15, 1
      %p54 = scmp.ne.s32.totalorder %s49, %s51
      %p55 = scmp.eq.s32.totalorder %s15, 0
      %p56 = por %p54, %p55
      %p57 = scmp.ne.s32.totalorder %s49, %s51
      %p58 = scmp.eq.s32.totalorder %s20, 1
      %p59 = por %p57, %p58
      %p60 = scmp.ne.s32.totalorder %s51, %s52
      %p61 = scmp.eq.s32.totalorder %s20, 0
      %p62 = por %p60, %p61
      %p63 = scmp.ne.s32.totalorder %s51, %s52
      %p64 = scmp.eq.s32.totalorder %s21, 1
      %p65 = por %p63, %p64
      %p67 = scmp.ne.s32.totalorder %s52, %s66
      %p68 = scmp.eq.s32.totalorder %s21, 0
      %p69 = por %p67, %p68
      %s71 = sadd.s32 %s70, 1
      %p74 = scmp.eq.s32.totalorder %s15, 1
      %p75 = scmp.ne.s32.totalorder %s70, %s72
      %p76 = scmp.eq.s32.totalorder %s15, 0
      %p77 = por %p75, %p76
      %p78 = scmp.ne.s32.totalorder %s70, %s72
      %p79 = scmp.eq.s32.totalorder %s20, 1
      %p80 = por %p78, %p79
      %p81 = scmp.ne.s32.totalorder %s72, %s73
      %p82 = scmp.eq.s32.totalorder %s20, 0
      %p83 = por %p81, %p82
      %p84 = scmp.ne.s32.totalorder %s72, %s73
      %p85 = scmp.eq.s32.totalorder %s21, 1
      %p86 = por %p84, %p85
      %p88 = scmp.ne.s32.totalorder %s73, %s87
      %p89 = scmp.eq.s32.totalorder %s21, 0
      %p90 = por %p88, %p89
      %s92 = sadd.s32 %s91, 1
      %p95 = scmp.eq.s32.totalorder %s15, 1
      %p96 = scmp.ne.s32.totalorder %s91, %s93
      %p97 = scmp.eq.s32.totalorder %s15, 0
      %p98 = por %p96, %p97
      %p99 = scmp.ne.s32.totalorder %s91, %s93
      %p100 = scmp.eq.s32.totalorder %s20, 1
      %p101 = por %p99, %p100
      %p102 = scmp.ne.s32.totalorder %s93, %s94
      %p103 = scmp.eq.s32.totalorder %s20, 0
      %p104 = por %p102, %p103
      %p105 = scmp.ne.s32.totalorder %s93, %s94
      %p106 = scmp.eq.s32.totalorder %s21, 1
      %p107 = por %p105, %p106
      %p109 = scmp.ne.s32.totalorder %s94, %s108
      %p110 = scmp.eq.s32.totalorder %s21, 0
      %p111 = por %p109, %p110
      %s112 = ssub.s32 %s15, %s22
      %p113 = scmp.eq.s32.totalorder %s112, 0
      %s115 = sadd.s32 %s114, 1
      %s116 = scalar_select %p113, %s114, %s115
      %p119 = pneg %p113
      %p120 = scmp.eq.s32.totalorder %s15, 1
      %p121 = por %p119, %p120
      %p122 = scmp.ne.s32.totalorder %s114, %s117
      %p123 = scmp.eq.s32.totalorder %s15, 0
      %p124 = por %p122, %p123
      %p125 = scmp.ne.s32.totalorder %s114, %s117
      %p126 = scmp.eq.s32.totalorder %s20, 1
      %p127 = por %p125, %p126
      %p128 = scmp.ne.s32.totalorder %s117, %s118
      %p129 = scmp.eq.s32.totalorder %s20, 0
      %p130 = por %p128, %p129
      %p131 = scmp.ne.s32.totalorder %s117, %s118
      %p132 = scmp.eq.s32.totalorder %s21, 1
      %p133 = por %p131, %p132
      %p135 = scmp.ne.s32.totalorder %s118, %s134
      %p136 = scmp.eq.s32.totalorder %s21, 0
      %p137 = por %p135, %p136
      %p138 = scmp.le.s32.totalorder 1, %s15
      %p139 = scmp.lt.s32.totalorder %s15, 3
      %p140 = pnand %p138, %p139
      %p141 = pneg %p140
      // Predicated region
      $region9: #{tpu_custom_call.1} parent=5 // pred_check
        _
      $region10: #{tpu_custom_call.1} parent=5 // pred_check_branch
        %143 = sbr.rel (%p140) target = $region12
      $region11: #{tpu_custom_call.1} parent=5 // pred_region
        %s144 = ssub.s32 %s15, 1
        // Predicated region
        $region13: #{tpu_custom_call.1} parent=11 // pred_check
          %p145 = pneg %p62
        $region14: #{tpu_custom_call.1} parent=11 // pred_check_branch
          %147 = sbr.rel (%p145) target = $region16
        $region15: #{tpu_custom_call.1} parent=11 // pred_region
          %s149 = ssub.s32 5632, 5632
          %150 = vsyncadd [#allocation4], %s149
          %s151 = sshll.u32 [#allocation3], 4
          %s152 = int_to_ptr.vmem [resolvable:$true] %s151
          %157 = dma.hbm_to_vmem [thread:$0]  %s1, 5632, %s152, [#allocation4], 256, 256, 16
        $region16: #{tpu_custom_call.1} parent=11 // pred_fallthru
          _
        // Predicated region
        $region17: #{tpu_custom_call.1} parent=11 // pred_check
          %p158 = pneg %p83
        $region18: #{tpu_custom_call.1} parent=11 // pred_check_branch
          %160 = sbr.rel (%p158) target = $region20
        $region19: #{tpu_custom_call.1} parent=11 // pred_region
          _
        $region20: #{tpu_custom_call.1} parent=11 // pred_fallthru
          _
        // Predicated region
        $region21: #{tpu_custom_call.1} parent=11 // pred_check
          %p161 = pneg %p104
        $region22: #{tpu_custom_call.1} parent=11 // pred_check_branch
          %163 = sbr.rel (%p161) target = $region24
        $region23: #{tpu_custom_call.1} parent=11 // pred_region
          %s165 = ssub.s32 4608, 4608
          %166 = vsyncadd [#allocation7], %s165
          %s167 = sshll.u32 [#allocation6], 4
          %s168 = int_to_ptr.vmem [resolvable:$true] %s167
          %173 = dma.hbm_to_vmem [thread:$0]  %s3, 4608, %s168, [#allocation7], 256, 256, 16
        $region24: #{tpu_custom_call.1} parent=11 // pred_fallthru
          _
      $region12: #{tpu_custom_call.1} parent=5 // pred_fallthru
        _
      %p174 = scmp.lt.s32.totalorder %s15, 2
      // Predicated region
      $region25: #{tpu_custom_call.1} parent=5 // pred_check
        %p175 = pneg %p174
      $region26: #{tpu_custom_call.1} parent=5 // pred_check_branch
        %177 = sbr.rel (%p175) target = $region28
      $region27: #{tpu_custom_call.1} parent=5 // pred_region
        // Predicated region
        $region29: #{tpu_custom_call.1} parent=27 // pred_check
          %p178 = pneg %p35
        $region30: #{tpu_custom_call.1} parent=27 // pred_check_branch
          %180 = sbr.rel (%p178) target = $region32
        $region31: #{tpu_custom_call.1} parent=27 // pred_region
          %p181 = scmp.lt.s32.totalorder %s15, 1
          %s182 = scalar_select %p181, %s15, 1
          %s183 = smul.addr %s182, 2
          %s184 = smul.addr %s183, 8
          %s185 = scalar_lea.vmem %s0, %s184
        $region32: #{tpu_custom_call.1} parent=27 // pred_fallthru
          _
      $region28: #{tpu_custom_call.1} parent=5 // pred_fallthru
        _
      %p186 = scmp.le.s32.totalorder 1, %s15
      %p187 = scmp.lt.s32.totalorder %s15, 3
      %p188 = pnand %p186, %p187
      %p189 = pneg %p188
      // Predicated region
      $region33: #{tpu_custom_call.1} parent=5 // pred_check
        _
      $region34: #{tpu_custom_call.1} parent=5 // pred_check_branch
        %191 = sbr.rel (%p188) target = $region36
      $region35: #{tpu_custom_call.1} parent=5 // pred_region
        %s192 = ssub.s32 %s15, 1
        // Predicated region
        $region37: #{tpu_custom_call.1} parent=35 // pred_check
          %p193 = pneg %p62
        $region38: #{tpu_custom_call.1} parent=35 // pred_check_branch
          %195 = sbr.rel (%p193) target = $region40
        $region39: #{tpu_custom_call.1} parent=35 // pred_region
          %196 = dma.done [#allocation4], 5632
        $region40: #{tpu_custom_call.1} parent=35 // pred_fallthru
          _
        // Predicated region
        $region41: #{tpu_custom_call.1} parent=35 // pred_check
          %p197 = pneg %p104
        $region42: #{tpu_custom_call.1} parent=35 // pred_check_branch
          %199 = sbr.rel (%p197) target = $region44
        $region43: #{tpu_custom_call.1} parent=35 // pred_region
          %200 = dma.done [#allocation7], 4608
        $region44: #{tpu_custom_call.1} parent=35 // pred_fallthru
          _
        %p201 = scmp.lt.s32.totalorder %s20, 1
        %s202 = scalar_select %p201, %s20, 1
        %s203 = smul.addr %s202, 2
        %s204 = smul.addr %s203, 8
        %s205 = scalar_lea.vmem %s0, %s204
        %p206 = pneg %p41
        %p207 = pneg %p38
        %p208 = pneg %p62
        %p209 = pneg %p59
        %p210 = pneg %p83
        %p211 = pneg %p80
        %p212 = pneg %p104
        %p213 = pneg %p101
        %p214 = pneg %p130
        %p215 = pneg %p127
        %s216 = sand.u32 %s117, 1
        %s217 = scalar_lea.sflag [#allocation5], %s216
        %s218 = sand.u32 %s117, 1
        %s219 = smul.addr %s218, 8
        %s220 = scalar_lea.vmem [#allocation8], %s219
        %p221 = scmp.lt.s32.totalorder %s20, 1
        %s222 = scalar_select %p221, %s20, 1
        %s223 = smul.addr %s222, 2
        %s224 = smul.addr %s223, 8
        %s225 = scalar_lea.vmem %s0, %s224
        %v226 = vld [vmem:[%s225] sm:$0xff]
        %v227 = vld [vmem:[%s225 + $0x8] sm:$0xff]
        %228 = vrot.lane.b32.xlu0 %v226, 17
        %v229 = vpop.permute.xlu0 %228
        %230 = vrot.lane.b32.xlu0 %v227, 17
        %v231 = vpop.permute.xlu0 %230
        %v232 = vlaneseq
        %v233 = vand.u32 %v232, 127
        %vm234 = vcmp.lt.s32.totalorder %v233, 17
        %v235 = vsel %vm234, %v229, %v231
        %v236 = vsel %vm234, %v231, %v229
        %v237 = vld [vmem:[#allocation6] sm:$0xff]
        %v238 = vld [vmem:[#allocation6 + $0x8] sm:$0xff]
        %v239 = vmul.f32 %v236, %v237
        %v240 = vmul.f32 %v235, %v238
        %241 = vst [vmem:[#allocation2] sm:$0xff] %v239
        %242 = vst [vmem:[#allocation2 + $0x8] sm:$0xff] %v240
        %243 = vrot.lane.b32.xlu0 %v226, 16
        %v244 = vpop.permute.xlu0 %243
        %245 = vrot.lane.b32.xlu0 %v227, 16
        %v246 = vpop.permute.xlu0 %245
        %vm247 = vcmp.lt.s32.totalorder %v233, 16
        %v248 = vsel %vm247, %v244, %v246
        %v249 = vsel %vm247, %v246, %v244
        %v250 = vld [vmem:[#allocation6 + $0x20] sm:$0xff]
        %v251 = vld [vmem:[#allocation6 + $0x28] sm:$0xff]
        %v252 = vmul.f32 %v249, %v250
        %v253 = vmul.f32 %v248, %v251
        %254 = vst [vmem:[#allocation2 + $0x10] sm:$0xff] %v252
        %255 = vst [vmem:[#allocation2 + $0x18] sm:$0xff] %v253
        %256 = vrot.lane.b32.xlu0 %v226, 15
        %v257 = vpop.permute.xlu0 %256
        %258 = vrot.lane.b32.xlu0 %v227, 15
        %v259 = vpop.permute.xlu0 %258
        %vm260 = vcmp.lt.s32.totalorder %v233, 15
        %v261 = vsel %vm260, %v257, %v259
        %v262 = vsel %vm260, %v259, %v257
        %v263 = vld [vmem:[#allocation6 + $0x40] sm:$0xff]
        %v264 = vld [vmem:[#allocation6 + $0x48] sm:$0xff]
        %v265 = vmul.f32 %v262, %v263
        %v266 = vmul.f32 %v261, %v264
        %267 = vst [vmem:[#allocation2 + $0x20] sm:$0xff] %v265
        %268 = vst [vmem:[#allocation2 + $0x28] sm:$0xff] %v266
        %269 = vrot.lane.b32.xlu0 %v226, 1
        %v270 = vpop.permute.xlu0 %269
        %271 = vrot.lane.b32.xlu0 %v227, 1
        %v272 = vpop.permute.xlu0 %271
        %vm273 = vcmp.lt.s32.totalorder %v233, 1
        %v274 = vsel %vm273, %v270, %v272
        %v275 = vsel %vm273, %v272, %v270
        %v276 = vld [vmem:[#allocation6 + $0x60] sm:$0xff]
        %v277 = vld [vmem:[#allocation6 + $0x68] sm:$0xff]
        %v278 = vmul.f32 %v275, %v276
        %v279 = vmul.f32 %v274, %v277
        %280 = vst [vmem:[#allocation2 + $0x30] sm:$0xff] %v278
        %281 = vst [vmem:[#allocation2 + $0x38] sm:$0xff] %v279
        %282 = vst [vmem:[#allocation2 + $0x40] sm:$0xff] %v226
        %283 = vst [vmem:[#allocation2 + $0x48] sm:$0xff] %v227
        %284 = vrot.lane.b32.xlu0 %v226, 127
        %v285 = vpop.permute.xlu0 %284
        %286 = vrot.lane.b32.xlu0 %v227, 127
        %v287 = vpop.permute.xlu0 %286
        %vm288 = vcmp.lt.s32.totalorder %v233, 127
        %v289 = vsel %vm288, %v285, %v287
        %v290 = vsel %vm288, %v287, %v285
        %v291 = vld [vmem:[#allocation6 + $0xa0] sm:$0xff]
        %v292 = vld [vmem:[#allocation6 + $0xa8] sm:$0xff]
        %v293 = vmul.f32 %v289, %v291
        %v294 = vmul.f32 %v290, %v292
        %295 = vst [vmem:[#allocation2 + $0x50] sm:$0xff] %v293
        %296 = vst [vmem:[#allocation2 + $0x58] sm:$0xff] %v294
        %297 = vrot.lane.b32.xlu0 %v226, 113
        %v298 = vpop.permute.xlu0 %297
        %299 = vrot.lane.b32.xlu0 %v227, 113
        %v300 = vpop.permute.xlu0 %299
        %vm301 = vcmp.lt.s32.totalorder %v233, 113
        %v302 = vsel %vm301, %v298, %v300
        %v303 = vsel %vm301, %v300, %v298
        %v304 = vld [vmem:[#allocation6 + $0xc0] sm:$0xff]
        %v305 = vld [vmem:[#allocation6 + $0xc8] sm:$0xff]
        %v306 = vmul.f32 %v302, %v304
        %v307 = vmul.f32 %v303, %v305
        %308 = vst [vmem:[#allocation2 + $0x60] sm:$0xff] %v306
        %309 = vst [vmem:[#allocation2 + $0x68] sm:$0xff] %v307
        %310 = vrot.lane.b32.xlu0 %v226, 112
        %v311 = vpop.permute.xlu0 %310
        %312 = vrot.lane.b32.xlu0 %v227, 112
        %v313 = vpop.permute.xlu0 %312
        %vm314 = vcmp.lt.s32.totalorder %v233, 112
        %v315 = vsel %vm314, %v311, %v313
        %v316 = vsel %vm314, %v313, %v311
        %v317 = vld [vmem:[#allocation6 + $0xe0] sm:$0xff]
        %v318 = vld [vmem:[#allocation6 + $0xe8] sm:$0xff]
        %v319 = vmul.f32 %v315, %v317
        %v320 = vmul.f32 %v316, %v318
        %321 = vst [vmem:[#allocation2 + $0x70] sm:$0xff] %v319
        %322 = vst [vmem:[#allocation2 + $0x78] sm:$0xff] %v320
        %323 = vrot.lane.b32.xlu0 %v226, 111
        %v324 = vpop.permute.xlu0 %323
        %325 = vrot.lane.b32.xlu0 %v227, 111
        %v326 = vpop.permute.xlu0 %325
        %vm327 = vcmp.lt.s32.totalorder %v233, 111
        %v328 = vsel %vm327, %v324, %v326
        %v329 = vsel %vm327, %v326, %v324
        %v330 = vld [vmem:[#allocation6 + $0x100] sm:$0xff]
        %v331 = vld [vmem:[#allocation6 + $0x108] sm:$0xff]
        %v332 = vmul.f32 %v328, %v330
        %v333 = vmul.f32 %v329, %v331
        %334 = vst [vmem:[#allocation2 + $0x80] sm:$0xff] %v332
        %335 = vst [vmem:[#allocation2 + $0x88] sm:$0xff] %v333
        %v336 = vld [vmem:[#allocation3] sm:$0xff]
        %v337 = vld [vmem:[#allocation2] sm:$0xff]
        %v338 = vld [vmem:[#allocation2 + $0x8] sm:$0xff]
        %v339 = vld [vmem:[#allocation2 + $0x10] sm:$0xff]
        %v340 = vld [vmem:[#allocation2 + $0x18] sm:$0xff]
        %v341 = vld [vmem:[#allocation2 + $0x20] sm:$0xff]
        %v342 = vld [vmem:[#allocation2 + $0x28] sm:$0xff]
        %v343 = vld [vmem:[#allocation2 + $0x30] sm:$0xff]
        %v344 = vld [vmem:[#allocation2 + $0x38] sm:$0xff]
        %v345 = vld [vmem:[#allocation2 + $0x40] sm:$0xff]
        %v346 = vld [vmem:[#allocation2 + $0x48] sm:$0xff]
        %v347 = vld [vmem:[#allocation2 + $0x50] sm:$0xff]
        %v348 = vld [vmem:[#allocation2 + $0x58] sm:$0xff]
        %v349 = vld [vmem:[#allocation2 + $0x60] sm:$0xff]
        %v350 = vld [vmem:[#allocation2 + $0x68] sm:$0xff]
        %v351 = vld [vmem:[#allocation2 + $0x70] sm:$0xff]
        %v352 = vld [vmem:[#allocation2 + $0x78] sm:$0xff]
        %v353 = vld [vmem:[#allocation2 + $0x80] sm:$0xff]
        %v354 = vld [vmem:[#allocation2 + $0x88] sm:$0xff]
        %v355 = vld [vmem:[%s2] sm:$0xff]
        %357 = vset.pattern.permute.xlu0 0
        %358 = vperm.xlu0 %357, %v355
        %v359 = vpop.permute.xlu0 %358
        %vm361 = vcmask 588800
        %v363 = vsel %vm361, %v336, 0
        %365 = vmatprep.subr.mxu0 0.0
        %366 = vmatpush1.msra.mxu0 0.0
        %367 = vmatprep.subr.mxu0 0.0
        %368 = vmatpush1.msra.mxu0 0.0
        %369 = vmatprep.subr.mxu0 0.0
        %370 = vmatpush1.msra.mxu0 0.0
        %371 = vmatprep.subr.mxu0 0.0
        %372 = vmatpush1.msra.mxu0 0.0
        %373 = vmatprep.subr.mxu0 0.0
        %374 = vmatpush1.msra.mxu0 0.0
        %375 = vmatprep.subr.mxu0 0.0
        %376 = vmatpush1.msra.mxu0 0.0
        %377 = vmatprep.subr.mxu0 0.0
        %378 = vmatpush1.msra.mxu0 0.0
        %379 = vmatprep.subr.mxu0 %v354
        %380 = vmatpush1.msra.mxu0 %v353
        %381 = vmatprep.subr.mxu0 %v352
        %382 = vmatpush1.msra.mxu0 %v351
        %383 = vmatprep.subr.mxu0 %v350
        %384 = vmatpush1.msra.mxu0 %v349
        %385 = vmatprep.subr.mxu0 %v348
        %386 = vmatpush1.msra.mxu0 %v347
        %387 = vmatprep.subr.mxu0 %v346
        %388 = vmatpush1.msra.mxu0 %v345
        %389 = vmatprep.subr.mxu0 %v344
        %390 = vmatpush1.msra.mxu0 %v343
        %391 = vmatprep.subr.mxu0 %v342
        %392 = vmatpush1.msra.mxu0 %v341
        %393 = vmatprep.subr.mxu0 %v340
        %394 = vmatpush1.msra.mxu0 %v339
        %395 = vmatprep.subr.mxu0 %v338
        %396 = vmatpush1.msra.mxu0 %v337
        %397 = vmatprep.subr.mxu0 0.0
        %398 = vmatpush2.msra.mxu0 0.0
        %399 = vmatprep.subr.mxu0 0.0
        %400 = vmatpush2.msra.mxu0 0.0
        %401 = vmatprep.subr.mxu0 0.0
        %402 = vmatpush2.msra.mxu0 0.0
        %403 = vmatprep.subr.mxu0 0.0
        %404 = vmatpush2.msra.mxu0 0.0
        %405 = vmatprep.subr.mxu0 0.0
        %406 = vmatpush2.msra.mxu0 0.0
        %407 = vmatprep.subr.mxu0 0.0
        %408 = vmatpush2.msra.mxu0 0.0
        %409 = vmatprep.subr.mxu0 0.0
        %410 = vmatpush2.msra.mxu0 0.0
        %411 = vmatprep.subr.mxu0 0.0
        %412 = vmatpush2.msra.mxu0 0.0
        %413 = vmatprep.subr.mxu0 0.0
        %414 = vmatpush2.msra.mxu0 0.0
        %415 = vmatprep.subr.mxu0 0.0
        %416 = vmatpush2.msra.mxu0 0.0
        %417 = vmatprep.subr.mxu0 0.0
        %418 = vmatpush2.msra.mxu0 0.0
        %419 = vmatprep.subr.mxu0 0.0
        %420 = vmatpush2.msra.mxu0 0.0
        %421 = vmatprep.subr.mxu0 0.0
        %422 = vmatpush2.msra.mxu0 0.0
        %423 = vmatprep.subr.mxu0 0.0
        %424 = vmatpush2.msra.mxu0 0.0
        %425 = vmatprep.subr.mxu0 0.0
        %426 = vmatpush2.msra.mxu0 0.0
        %427 = vmatprep.subr.mxu0 0.0
        %428 = vmatpush2.msra.mxu0 0.0
        %429 = vmatprep.mubr.f32.mxu0 0.0
        %430 = vmatmul.mubr.f32.gmra.mxu0 %v363
        %v431 = vpop.f32.mrf.mxu0
        %v432 = vadd.f32 %v359, %v431
        %v433 = vpop.f32.mrf.mxu0
        %v434 = vadd.f32 %v359, %v433
        %435 = vdwg.mxu0
        %v436 = vmax.f32 %v432, 0.0
        %v437 = vmax.f32 %v434, 0.0
        %438 = vrot.lane.b32.xlu0 %v436, 17
        %v439 = vpop.permute.xlu0 %438
        %440 = vrot.lane.b32.xlu0 %v437, 17
        %v441 = vpop.permute.xlu0 %440
        %v442 = vsel %vm234, %v439, %v441
        %v443 = vsel %vm234, %v441, %v439
        %v444 = vld [vmem:[#allocation6] sm:$0xff]
        %v445 = vld [vmem:[#allocation6 + $0x8] sm:$0xff]
        %v446 = vmul.f32 %v443, %v444
        %v447 = vmul.f32 %v442, %v445
        %448 = vst [vmem:[#allocation2] sm:$0xff] %v446
        %449 = vst [vmem:[#allocation2 + $0x8] sm:$0xff] %v447
        %450 = vrot.lane.b32.xlu0 %v436, 16
        %v451 = vpop.permute.xlu0 %450
        %452 = vrot.lane.b32.xlu0 %v437, 16
        %v453 = vpop.permute.xlu0 %452
        %v454 = vsel %vm247, %v451, %v453
        %v455 = vsel %vm247, %v453, %v451
        %v456 = vld [vmem:[#allocation6 + $0x20] sm:$0xff]
        %v457 = vld [vmem:[#allocation6 + $0x28] sm:$0xff]
        %v458 = vmul.f32 %v455, %v456
        %v459 = vmul.f32 %v454, %v457
        %460 = vst [vmem:[#allocation2 + $0x10] sm:$0xff] %v458
        %461 = vst [vmem:[#allocation2 + $0x18] sm:$0xff] %v459
        %462 = vrot.lane.b32.xlu0 %v436, 15
        %v463 = vpop.permute.xlu0 %462
        %464 = vrot.lane.b32.xlu0 %v437, 15
        %v465 = vpop.permute.xlu0 %464
        %v466 = vsel %vm260, %v463, %v465
        %v467 = vsel %vm260, %v465, %v463
        %v468 = vld [vmem:[#allocation6 + $0x40] sm:$0xff]
        %v469 = vld [vmem:[#allocation6 + $0x48] sm:$0xff]
        %v470 = vmul.f32 %v467, %v468
        %v471 = vmul.f32 %v466, %v469
        %472 = vst [vmem:[#allocation2 + $0x20] sm:$0xff] %v470
        %473 = vst [vmem:[#allocation2 + $0x28] sm:$0xff] %v471
        %474 = vrot.lane.b32.xlu0 %v436, 1
        %v475 = vpop.permute.xlu0 %474
        %476 = vrot.lane.b32.xlu0 %v437, 1
        %v477 = vpop.permute.xlu0 %476
        %v478 = vsel %vm273, %v475, %v477
        %v479 = vsel %vm273, %v477, %v475
        %v480 = vld [vmem:[#allocation6 + $0x60] sm:$0xff]
        %v481 = vld [vmem:[#allocation6 + $0x68] sm:$0xff]
        %v482 = vmul.f32 %v479, %v480
        %v483 = vmul.f32 %v478, %v481
        %484 = vst [vmem:[#allocation2 + $0x30] sm:$0xff] %v482
        %485 = vst [vmem:[#allocation2 + $0x38] sm:$0xff] %v483
        %486 = vst [vmem:[#allocation2 + $0x40] sm:$0xff] %v436
        %487 = vst [vmem:[#allocation2 + $0x48] sm:$0xff] %v437
        %488 = vrot.lane.b32.xlu0 %v436, 127
        %v489 = vpop.permute.xlu0 %488
        %490 = vrot.lane.b32.xlu0 %v437, 127
        %v491 = vpop.permute.xlu0 %490
        %v492 = vsel %vm288, %v489, %v491
        %v493 = vsel %vm288, %v491, %v489
        %v494 = vld [vmem:[#allocation6 + $0xa0] sm:$0xff]
        %v495 = vld [vmem:[#allocation6 + $0xa8] sm:$0xff]
        %v496 = vmul.f32 %v492, %v494
        %v497 = vmul.f32 %v493, %v495
        %498 = vst [vmem:[#allocation2 + $0x50] sm:$0xff] %v496
        %499 = vst [vmem:[#allocation2 + $0x58] sm:$0xff] %v497
        %500 = vrot.lane.b32.xlu0 %v436, 113
        %v501 = vpop.permute.xlu0 %500
        %502 = vrot.lane.b32.xlu0 %v437, 113
        %v503 = vpop.permute.xlu0 %502
        %v504 = vsel %vm301, %v501, %v503
        %v505 = vsel %vm301, %v503, %v501
        %v506 = vld [vmem:[#allocation6 + $0xc0] sm:$0xff]
        %v507 = vld [vmem:[#allocation6 + $0xc8] sm:$0xff]
        %v508 = vmul.f32 %v504, %v506
        %v509 = vmul.f32 %v505, %v507
        %510 = vst [vmem:[#allocation2 + $0x60] sm:$0xff] %v508
        %511 = vst [vmem:[#allocation2 + $0x68] sm:$0xff] %v509
        %512 = vrot.lane.b32.xlu0 %v436, 112
        %v513 = vpop.permute.xlu0 %512
        %514 = vrot.lane.b32.xlu0 %v437, 112
        %v515 = vpop.permute.xlu0 %514
        %v516 = vsel %vm314, %v513, %v515
        %v517 = vsel %vm314, %v515, %v513
        %v518 = vld [vmem:[#allocation6 + $0xe0] sm:$0xff]
        %v519 = vld [vmem:[#allocation6 + $0xe8] sm:$0xff]
        %v520 = vmul.f32 %v516, %v518
        %v521 = vmul.f32 %v517, %v519
        %522 = vst [vmem:[#allocation2 + $0x70] sm:$0xff] %v520
        %523 = vst [vmem:[#allocation2 + $0x78] sm:$0xff] %v521
        %524 = vrot.lane.b32.xlu0 %v436, 111
        %v525 = vpop.permute.xlu0 %524
        %526 = vrot.lane.b32.xlu0 %v437, 111
        %v527 = vpop.permute.xlu0 %526
        %v528 = vsel %vm327, %v525, %v527
        %v529 = vsel %vm327, %v527, %v525
        %v530 = vld [vmem:[#allocation6 + $0x100] sm:$0xff]
        %v531 = vld [vmem:[#allocation6 + $0x108] sm:$0xff]
        %v532 = vmul.f32 %v528, %v530
        %v533 = vmul.f32 %v529, %v531
        %534 = vst [vmem:[#allocation2 + $0x80] sm:$0xff] %v532
        %535 = vst [vmem:[#allocation2 + $0x88] sm:$0xff] %v533
        %s536 = scalar_lea.vmem [#allocation3], 32
        %v537 = vld [vmem:[%s536] sm:$0xff]
        %v538 = vld [vmem:[#allocation2] sm:$0xff]
        %v539 = vld [vmem:[#allocation2 + $0x8] sm:$0xff]
        %v540 = vld [vmem:[#allocation2 + $0x10] sm:$0xff]
        %v541 = vld [vmem:[#allocation2 + $0x18] sm:$0xff]
        %v542 = vld [vmem:[#allocation2 + $0x20] sm:$0xff]
        %v543 = vld [vmem:[#allocation2 + $0x28] sm:$0xff]
        %v544 = vld [vmem:[#allocation2 + $0x30] sm:$0xff]
        %v545 = vld [vmem:[#allocation2 + $0x38] sm:$0xff]
        %v546 = vld [vmem:[#allocation2 + $0x40] sm:$0xff]
        %v547 = vld [vmem:[#allocation2 + $0x48] sm:$0xff]
        %v548 = vld [vmem:[#allocation2 + $0x50] sm:$0xff]
        %v549 = vld [vmem:[#allocation2 + $0x58] sm:$0xff]
        %v550 = vld [vmem:[#allocation2 + $0x60] sm:$0xff]
        %v551 = vld [vmem:[#allocation2 + $0x68] sm:$0xff]
        %v552 = vld [vmem:[#allocation2 + $0x70] sm:$0xff]
        %v553 = vld [vmem:[#allocation2 + $0x78] sm:$0xff]
        %v554 = vld [vmem:[#allocation2 + $0x80] sm:$0xff]
        %v555 = vld [vmem:[#allocation2 + $0x88] sm:$0xff]
        %s556 = scalar_lea.vmem %s2, 16
        %v557 = vld [vmem:[%s556] sm:$0xff]
        %559 = vset.pattern.permute.xlu0 0
        %560 = vperm.xlu0 %559, %v557
        %v561 = vpop.permute.xlu0 %560
        %v564 = vsel %vm361, %v537, 0
        %566 = vmatprep.subr.mxu0 0.0
        %567 = vmatpush1.msra.mxu0 0.0
        %568 = vmatprep.subr.mxu0 0.0
        %569 = vmatpush1.msra.mxu0 0.0
        %570 = vmatprep.subr.mxu0 0.0
        %571 = vmatpush1.msra.mxu0 0.0
        %572 = vmatprep.subr.mxu0 0.0
        %573 = vmatpush1.msra.mxu0 0.0
        %574 = vmatprep.subr.mxu0 0.0
        %575 = vmatpush1.msra.mxu0 0.0
        %576 = vmatprep.subr.mxu0 0.0
        %577 = vmatpush1.msra.mxu0 0.0
        %578 = vmatprep.subr.mxu0 0.0
        %579 = vmatpush1.msra.mxu0 0.0
        %580 = vmatprep.subr.mxu0 %v555
        %581 = vmatpush1.msra.mxu0 %v554
        %582 = vmatprep.subr.mxu0 %v553
        %583 = vmatpush1.msra.mxu0 %v552
        %584 = vmatprep.subr.mxu0 %v551
        %585 = vmatpush1.msra.mxu0 %v550
        %586 = vmatprep.subr.mxu0 %v549
        %587 = vmatpush1.msra.mxu0 %v548
        %588 = vmatprep.subr.mxu0 %v547
        %589 = vmatpush1.msra.mxu0 %v546
        %590 = vmatprep.subr.mxu0 %v545
        %591 = vmatpush1.msra.mxu0 %v544
        %592 = vmatprep.subr.mxu0 %v543
        %593 = vmatpush1.msra.mxu0 %v542
        %594 = vmatprep.subr.mxu0 %v541
        %595 = vmatpush1.msra.mxu0 %v540
        %596 = vmatprep.subr.mxu0 %v539
        %597 = vmatpush1.msra.mxu0 %v538
        %598 = vmatprep.subr.mxu0 0.0
        %599 = vmatpush2.msra.mxu0 0.0
        %600 = vmatprep.subr.mxu0 0.0
        %601 = vmatpush2.msra.mxu0 0.0
        %602 = vmatprep.subr.mxu0 0.0
        %603 = vmatpush2.msra.mxu0 0.0
        %604 = vmatprep.subr.mxu0 0.0
        %605 = vmatpush2.msra.mxu0 0.0
        %606 = vmatprep.subr.mxu0 0.0
        %607 = vmatpush2.msra.mxu0 0.0
        %608 = vmatprep.subr.mxu0 0.0
        %609 = vmatpush2.msra.mxu0 0.0
        %610 = vmatprep.subr.mxu0 0.0
        %611 = vmatpush2.msra.mxu0 0.0
        %612 = vmatprep.subr.mxu0 0.0
        %613 = vmatpush2.msra.mxu0 0.0
        %614 = vmatprep.subr.mxu0 0.0
        %615 = vmatpush2.msra.mxu0 0.0
        %616 = vmatprep.subr.mxu0 0.0
        %617 = vmatpush2.msra.mxu0 0.0
        %618 = vmatprep.subr.mxu0 0.0
        %619 = vmatpush2.msra.mxu0 0.0
        %620 = vmatprep.subr.mxu0 0.0
        %621 = vmatpush2.msra.mxu0 0.0
        %622 = vmatprep.subr.mxu0 0.0
        %623 = vmatpush2.msra.mxu0 0.0
        %624 = vmatprep.subr.mxu0 0.0
        %625 = vmatpush2.msra.mxu0 0.0
        %626 = vmatprep.subr.mxu0 0.0
        %627 = vmatpush2.msra.mxu0 0.0
        %628 = vmatprep.subr.mxu0 0.0
        %629 = vmatpush2.msra.mxu0 0.0
        %630 = vmatprep.mubr.f32.mxu0 0.0
        %631 = vmatmul.mubr.f32.gmra.mxu0 %v564
        %v632 = vpop.f32.mrf.mxu0
        %v633 = vadd.f32 %v561, %v632
        %v634 = vpop.f32.mrf.mxu0
        %v635 = vadd.f32 %v561, %v634
        %636 = vdwg.mxu0
        %v637 = vmax.f32 %v633, 0.0
        %v638 = vmax.f32 %v635, 0.0
        %639 = vrot.lane.b32.xlu0 %v637, 17
        %v640 = vpop.permute.xlu0 %639
        %641 = vrot.lane.b32.xlu0 %v638, 17
        %v642 = vpop.permute.xlu0 %641
        %v643 = vsel %vm234, %v640, %v642
        %v644 = vsel %vm234, %v642, %v640
        %v645 = vld [vmem:[#allocation6] sm:$0xff]
        %v646 = vld [vmem:[#allocation6 + $0x8] sm:$0xff]
        %v647 = vmul.f32 %v644, %v645
        %v648 = vmul.f32 %v643, %v646
        %649 = vst [vmem:[#allocation2] sm:$0xff] %v647
        %650 = vst [vmem:[#allocation2 + $0x8] sm:$0xff] %v648
        %651 = vrot.lane.b32.xlu0 %v637, 16
        %v652 = vpop.permute.xlu0 %651
        %653 = vrot.lane.b32.xlu0 %v638, 16
        %v654 = vpop.permute.xlu0 %653
        %v655 = vsel %vm247, %v652, %v654
        %v656 = vsel %vm247, %v654, %v652
        %v657 = vld [vmem:[#allocation6 + $0x20] sm:$0xff]
        %v658 = vld [vmem:[#allocation6 + $0x28] sm:$0xff]
        %v659 = vmul.f32 %v656, %v657
        %v660 = vmul.f32 %v655, %v658
        %661 = vst [vmem:[#allocation2 + $0x10] sm:$0xff] %v659
        %662 = vst [vmem:[#allocation2 + $0x18] sm:$0xff] %v660
        %663 = vrot.lane.b32.xlu0 %v637, 15
        %v664 = vpop.permute.xlu0 %663
        %665 = vrot.lane.b32.xlu0 %v638, 15
        %v666 = vpop.permute.xlu0 %665
        %v667 = vsel %vm260, %v664, %v666
        %v668 = vsel %vm260, %v666, %v664
        %v669 = vld [vmem:[#allocation6 + $0x40] sm:$0xff]
        %v670 = vld [vmem:[#allocation6 + $0x48] sm:$0xff]
        %v671 = vmul.f32 %v668, %v669
        %v672 = vmul.f32 %v667, %v670
        %673 = vst [vmem:[#allocation2 + $0x20] sm:$0xff] %v671
        %674 = vst [vmem:[#allocation2 + $0x28] sm:$0xff] %v672
        %675 = vrot.lane.b32.xlu0 %v637, 1
        %v676 = vpop.permute.xlu0 %675
        %677 = vrot.lane.b32.xlu0 %v638, 1
        %v678 = vpop.permute.xlu0 %677
        %v679 = vsel %vm273, %v676, %v678
        %v680 = vsel %vm273, %v678, %v676
        %v681 = vld [vmem:[#allocation6 + $0x60] sm:$0xff]
        %v682 = vld [vmem:[#allocation6 + $0x68] sm:$0xff]
        %v683 = vmul.f32 %v680, %v681
        %v684 = vmul.f32 %v679, %v682
        %685 = vst [vmem:[#allocation2 + $0x30] sm:$0xff] %v683
        %686 = vst [vmem:[#allocation2 + $0x38] sm:$0xff] %v684
        %687 = vst [vmem:[#allocation2 + $0x40] sm:$0xff] %v637
        %688 = vst [vmem:[#allocation2 + $0x48] sm:$0xff] %v638
        %689 = vrot.lane.b32.xlu0 %v637, 127
        %v690 = vpop.permute.xlu0 %689
        %691 = vrot.lane.b32.xlu0 %v638, 127
        %v692 = vpop.permute.xlu0 %691
        %v693 = vsel %vm288, %v690, %v692
        %v694 = vsel %vm288, %v692, %v690
        %v695 = vld [vmem:[#allocation6 + $0xa0] sm:$0xff]
        %v696 = vld [vmem:[#allocation6 + $0xa8] sm:$0xff]
        %v697 = vmul.f32 %v693, %v695
        %v698 = vmul.f32 %v694, %v696
        %699 = vst [vmem:[#allocation2 + $0x50] sm:$0xff] %v697
        %700 = vst [vmem:[#allocation2 + $0x58] sm:$0xff] %v698
        %701 = vrot.lane.b32.xlu0 %v637, 113
        %v702 = vpop.permute.xlu0 %701
        %703 = vrot.lane.b32.xlu0 %v638, 113
        %v704 = vpop.permute.xlu0 %703
        %v705 = vsel %vm301, %v702, %v704
        %v706 = vsel %vm301, %v704, %v702
        %v707 = vld [vmem:[#allocation6 + $0xc0] sm:$0xff]
        %v708 = vld [vmem:[#allocation6 + $0xc8] sm:$0xff]
        %v709 = vmul.f32 %v705, %v707
        %v710 = vmul.f32 %v706, %v708
        %711 = vst [vmem:[#allocation2 + $0x60] sm:$0xff] %v709
        %712 = vst [vmem:[#allocation2 + $0x68] sm:$0xff] %v710
        %713 = vrot.lane.b32.xlu0 %v637, 112
        %v714 = vpop.permute.xlu0 %713
        %715 = vrot.lane.b32.xlu0 %v638, 112
        %v716 = vpop.permute.xlu0 %715
        %v717 = vsel %vm314, %v714, %v716
        %v718 = vsel %vm314, %v716, %v714
        %v719 = vld [vmem:[#allocation6 + $0xe0] sm:$0xff]
        %v720 = vld [vmem:[#allocation6 + $0xe8] sm:$0xff]
        %v721 = vmul.f32 %v717, %v719
        %v722 = vmul.f32 %v718, %v720
        %723 = vst [vmem:[#allocation2 + $0x70] sm:$0xff] %v721
        %724 = vst [vmem:[#allocation2 + $0x78] sm:$0xff] %v722
        %725 = vrot.lane.b32.xlu0 %v637, 111
        %v726 = vpop.permute.xlu0 %725
        %727 = vrot.lane.b32.xlu0 %v638, 111
        %v728 = vpop.permute.xlu0 %727
        %v729 = vsel %vm327, %v726, %v728
        %v730 = vsel %vm327, %v728, %v726
        %v731 = vld [vmem:[#allocation6 + $0x100] sm:$0xff]
        %v732 = vld [vmem:[#allocation6 + $0x108] sm:$0xff]
        %v733 = vmul.f32 %v729, %v731
        %v734 = vmul.f32 %v730, %v732
        %735 = vst [vmem:[#allocation2 + $0x80] sm:$0xff] %v733
        %736 = vst [vmem:[#allocation2 + $0x88] sm:$0xff] %v734
        %s737 = scalar_lea.vmem [#allocation3], 64
        %v738 = vld [vmem:[%s737] sm:$0xff]
        %v739 = vld [vmem:[#allocation2] sm:$0xff]
        %v740 = vld [vmem:[#allocation2 + $0x8] sm:$0xff]
        %v741 = vld [vmem:[#allocation2 + $0x10] sm:$0xff]
        %v742 = vld [vmem:[#allocation2 + $0x18] sm:$0xff]
        %v743 = vld [vmem:[#allocation2 + $0x20] sm:$0xff]
        %v744 = vld [vmem:[#allocation2 + $0x28] sm:$0xff]
        %v745 = vld [vmem:[#allocation2 + $0x30] sm:$0xff]
        %v746 = vld [vmem:[#allocation2 + $0x38] sm:$0xff]
        %v747 = vld [vmem:[#allocation2 + $0x40] sm:$0xff]
        %v748 = vld [vmem:[#allocation2 + $0x48] sm:$0xff]
        %v749 = vld [vmem:[#allocation2 + $0x50] sm:$0xff]
        %v750 = vld [vmem:[#allocation2 + $0x58] sm:$0xff]
        %v751 = vld [vmem:[#allocation2 + $0x60] sm:$0xff]
        %v752 = vld [vmem:[#allocation2 + $0x68] sm:$0xff]
        %v753 = vld [vmem:[#allocation2 + $0x70] sm:$0xff]
        %v754 = vld [vmem:[#allocation2 + $0x78] sm:$0xff]
        %v755 = vld [vmem:[#allocation2 + $0x80] sm:$0xff]
        %v756 = vld [vmem:[#allocation2 + $0x88] sm:$0xff]
        %s757 = scalar_lea.vmem %s2, 32
        %v758 = vld [vmem:[%s757] sm:$0xff]
        %760 = vset.pattern.permute.xlu0 0
        %761 = vperm.xlu0 %760, %v758
        %v762 = vpop.permute.xlu0 %761
        %v765 = vsel %vm361, %v738, 0
        %767 = vmatprep.subr.mxu0 0.0
        %768 = vmatpush1.msra.mxu0 0.0
        %769 = vmatprep.subr.mxu0 0.0
        %770 = vmatpush1.msra.mxu0 0.0
        %771 = vmatprep.subr.mxu0 0.0
        %772 = vmatpush1.msra.mxu0 0.0
        %773 = vmatprep.subr.mxu0 0.0
        %774 = vmatpush1.msra.mxu0 0.0
        %775 = vmatprep.subr.mxu0 0.0
        %776 = vmatpush1.msra.mxu0 0.0
        %777 = vmatprep.subr.mxu0 0.0
        %778 = vmatpush1.msra.mxu0 0.0
        %779 = vmatprep.subr.mxu0 0.0
        %780 = vmatpush1.msra.mxu0 0.0
        %781 = vmatprep.subr.mxu0 %v756
        %782 = vmatpush1.msra.mxu0 %v755
        %783 = vmatprep.subr.mxu0 %v754
        %784 = vmatpush1.msra.mxu0 %v753
        %785 = vmatprep.subr.mxu0 %v752
        %786 = vmatpush1.msra.mxu0 %v751
        %787 = vmatprep.subr.mxu0 %v750
        %788 = vmatpush1.msra.mxu0 %v749
        %789 = vmatprep.subr.mxu0 %v748
        %790 = vmatpush1.msra.mxu0 %v747
        %791 = vmatprep.subr.mxu0 %v746
        %792 = vmatpush1.msra.mxu0 %v745
        %793 = vmatprep.subr.mxu0 %v744
        %794 = vmatpush1.msra.mxu0 %v743
        %795 = vmatprep.subr.mxu0 %v742
        %796 = vmatpush1.msra.mxu0 %v741
        %797 = vmatprep.subr.mxu0 %v740
        %798 = vmatpush1.msra.mxu0 %v739
        %799 = vmatprep.subr.mxu0 0.0
        %800 = vmatpush2.msra.mxu0 0.0
        %801 = vmatprep.subr.mxu0 0.0
        %802 = vmatpush2.msra.mxu0 0.0
        %803 = vmatprep.subr.mxu0 0.0
        %804 = vmatpush2.msra.mxu0 0.0
        %805 = vmatprep.subr.mxu0 0.0
        %806 = vmatpush2.msra.mxu0 0.0
        %807 = vmatprep.subr.mxu0 0.0
        %808 = vmatpush2.msra.mxu0 0.0
        %809 = vmatprep.subr.mxu0 0.0
        %810 = vmatpush2.msra.mxu0 0.0
        %811 = vmatprep.subr.mxu0 0.0
        %812 = vmatpush2.msra.mxu0 0.0
        %813 = vmatprep.subr.mxu0 0.0
        %814 = vmatpush2.msra.mxu0 0.0
        %815 = vmatprep.subr.mxu0 0.0
        %816 = vmatpush2.msra.mxu0 0.0
        %817 = vmatprep.subr.mxu0 0.0
        %818 = vmatpush2.msra.mxu0 0.0
        %819 = vmatprep.subr.mxu0 0.0
        %820 = vmatpush2.msra.mxu0 0.0
        %821 = vmatprep.subr.mxu0 0.0
        %822 = vmatpush2.msra.mxu0 0.0
        %823 = vmatprep.subr.mxu0 0.0
        %824 = vmatpush2.msra.mxu0 0.0
        %825 = vmatprep.subr.mxu0 0.0
        %826 = vmatpush2.msra.mxu0 0.0
        %827 = vmatprep.subr.mxu0 0.0
        %828 = vmatpush2.msra.mxu0 0.0
        %829 = vmatprep.subr.mxu0 0.0
        %830 = vmatpush2.msra.mxu0 0.0
        %831 = vmatprep.mubr.f32.mxu0 0.0
        %832 = vmatmul.mubr.f32.gmra.mxu0 %v765
        %v833 = vpop.f32.mrf.mxu0
        %v834 = vadd.f32 %v762, %v833
        %v835 = vpop.f32.mrf.mxu0
        %v836 = vadd.f32 %v762, %v835
        %837 = vdwg.mxu0
        %v838 = vadd.f32 %v834, %v436
        %v839 = vadd.f32 %v836, %v437
        %840 = vrot.lane.b32.xlu0 %v838, 17
        %v841 = vpop.permute.xlu0 %840
        %842 = vrot.lane.b32.xlu0 %v839, 17
        %v843 = vpop.permute.xlu0 %842
        %v844 = vsel %vm234, %v841, %v843
        %v845 = vsel %vm234, %v843, %v841
        %v846 = vld [vmem:[#allocation6] sm:$0xff]
        %v847 = vld [vmem:[#allocation6 + $0x8] sm:$0xff]
        %v848 = vmul.f32 %v845, %v846
        %v849 = vmul.f32 %v844, %v847
        %850 = vst [vmem:[#allocation2] sm:$0xff] %v848
        %851 = vst [vmem:[#allocation2 + $0x8] sm:$0xff] %v849
        %852 = vrot.lane.b32.xlu0 %v838, 16
        %v853 = vpop.permute.xlu0 %852
        %854 = vrot.lane.b32.xlu0 %v839, 16
        %v855 = vpop.permute.xlu0 %854
        %v856 = vsel %vm247, %v853, %v855
        %v857 = vsel %vm247, %v855, %v853
        %v858 = vld [vmem:[#allocation6 + $0x20] sm:$0xff]
        %v859 = vld [vmem:[#allocation6 + $0x28] sm:$0xff]
        %v860 = vmul.f32 %v857, %v858
        %v861 = vmul.f32 %v856, %v859
        %862 = vst [vmem:[#allocation2 + $0x10] sm:$0xff] %v860
        %863 = vst [vmem:[#allocation2 + $0x18] sm:$0xff] %v861
        %864 = vrot.lane.b32.xlu0 %v838, 15
        %v865 = vpop.permute.xlu0 %864
        %866 = vrot.lane.b32.xlu0 %v839, 15
        %v867 = vpop.permute.xlu0 %866
        %v868 = vsel %vm260, %v865, %v867
        %v869 = vsel %vm260, %v867, %v865
        %v870 = vld [vmem:[#allocation6 + $0x40] sm:$0xff]
        %v871 = vld [vmem:[#allocation6 + $0x48] sm:$0xff]
        %v872 = vmul.f32 %v869, %v870
        %v873 = vmul.f32 %v868, %v871
        %874 = vst [vmem:[#allocation2 + $0x20] sm:$0xff] %v872
        %875 = vst [vmem:[#allocation2 + $0x28] sm:$0xff] %v873
        %876 = vrot.lane.b32.xlu0 %v838, 1
        %v877 = vpop.permute.xlu0 %876
        %878 = vrot.lane.b32.xlu0 %v839, 1
        %v879 = vpop.permute.xlu0 %878
        %v880 = vsel %vm273, %v877, %v879
        %v881 = vsel %vm273, %v879, %v877
        %v882 = vld [vmem:[#allocation6 + $0x60] sm:$0xff]
        %v883 = vld [vmem:[#allocation6 + $0x68] sm:$0xff]
        %v884 = vmul.f32 %v881, %v882
        %v885 = vmul.f32 %v880, %v883
        %886 = vst [vmem:[#allocation2 + $0x30] sm:$0xff] %v884
        %887 = vst [vmem:[#allocation2 + $0x38] sm:$0xff] %v885
        %888 = vst [vmem:[#allocation2 + $0x40] sm:$0xff] %v838
        %889 = vst [vmem:[#allocation2 + $0x48] sm:$0xff] %v839
        %890 = vrot.lane.b32.xlu0 %v838, 127
        %v891 = vpop.permute.xlu0 %890
        %892 = vrot.lane.b32.xlu0 %v839, 127
        %v893 = vpop.permute.xlu0 %892
        %v894 = vsel %vm288, %v891, %v893
        %v895 = vsel %vm288, %v893, %v891
        %v896 = vld [vmem:[#allocation6 + $0xa0] sm:$0xff]
        %v897 = vld [vmem:[#allocation6 + $0xa8] sm:$0xff]
        %v898 = vmul.f32 %v894, %v896
        %v899 = vmul.f32 %v895, %v897
        %900 = vst [vmem:[#allocation2 + $0x50] sm:$0xff] %v898
        %901 = vst [vmem:[#allocation2 + $0x58] sm:$0xff] %v899
        %902 = vrot.lane.b32.xlu0 %v838, 113
        %v903 = vpop.permute.xlu0 %902
        %904 = vrot.lane.b32.xlu0 %v839, 113
        %v905 = vpop.permute.xlu0 %904
        %v906 = vsel %vm301, %v903, %v905
        %v907 = vsel %vm301, %v905, %v903
        %v908 = vld [vmem:[#allocation6 + $0xc0] sm:$0xff]
        %v909 = vld [vmem:[#allocation6 + $0xc8] sm:$0xff]
        %v910 = vmul.f32 %v906, %v908
        %v911 = vmul.f32 %v907, %v909
        %912 = vst [vmem:[#allocation2 + $0x60] sm:$0xff] %v910
        %913 = vst [vmem:[#allocation2 + $0x68] sm:$0xff] %v911
        %914 = vrot.lane.b32.xlu0 %v838, 112
        %v915 = vpop.permute.xlu0 %914
        %916 = vrot.lane.b32.xlu0 %v839, 112
        %v917 = vpop.permute.xlu0 %916
        %v918 = vsel %vm314, %v915, %v917
        %v919 = vsel %vm314, %v917, %v915
        %v920 = vld [vmem:[#allocation6 + $0xe0] sm:$0xff]
        %v921 = vld [vmem:[#allocation6 + $0xe8] sm:$0xff]
        %v922 = vmul.f32 %v918, %v920
        %v923 = vmul.f32 %v919, %v921
        %924 = vst [vmem:[#allocation2 + $0x70] sm:$0xff] %v922
        %925 = vst [vmem:[#allocation2 + $0x78] sm:$0xff] %v923
        %926 = vrot.lane.b32.xlu0 %v838, 111
        %v927 = vpop.permute.xlu0 %926
        %928 = vrot.lane.b32.xlu0 %v839, 111
        %v929 = vpop.permute.xlu0 %928
        %v930 = vsel %vm327, %v927, %v929
        %v931 = vsel %vm327, %v929, %v927
        %v932 = vld [vmem:[#allocation6 + $0x100] sm:$0xff]
        %v933 = vld [vmem:[#allocation6 + $0x108] sm:$0xff]
        %v934 = vmul.f32 %v930, %v932
        %v935 = vmul.f32 %v931, %v933
        %936 = vst [vmem:[#allocation2 + $0x80] sm:$0xff] %v934
        %937 = vst [vmem:[#allocation2 + $0x88] sm:$0xff] %v935
        %s938 = scalar_lea.vmem [#allocation3], 96
        %v939 = vld [vmem:[%s938] sm:$0xff]
        %v940 = vld [vmem:[#allocation2] sm:$0xff]
        %v941 = vld [vmem:[#allocation2 + $0x8] sm:$0xff]
        %v942 = vld [vmem:[#allocation2 + $0x10] sm:$0xff]
        %v943 = vld [vmem:[#allocation2 + $0x18] sm:$0xff]
        %v944 = vld [vmem:[#allocation2 + $0x20] sm:$0xff]
        %v945 = vld [vmem:[#allocation2 + $0x28] sm:$0xff]
        %v946 = vld [vmem:[#allocation2 + $0x30] sm:$0xff]
        %v947 = vld [vmem:[#allocation2 + $0x38] sm:$0xff]
        %v948 = vld [vmem:[#allocation2 + $0x40] sm:$0xff]
        %v949 = vld [vmem:[#allocation2 + $0x48] sm:$0xff]
        %v950 = vld [vmem:[#allocation2 + $0x50] sm:$0xff]
        %v951 = vld [vmem:[#allocation2 + $0x58] sm:$0xff]
        %v952 = vld [vmem:[#allocation2 + $0x60] sm:$0xff]
        %v953 = vld [vmem:[#allocation2 + $0x68] sm:$0xff]
        %v954 = vld [vmem:[#allocation2 + $0x70] sm:$0xff]
        %v955 = vld [vmem:[#allocation2 + $0x78] sm:$0xff]
        %v956 = vld [vmem:[#allocation2 + $0x80] sm:$0xff]
        %v957 = vld [vmem:[#allocation2 + $0x88] sm:$0xff]
        %s958 = scalar_lea.vmem %s2, 48
        %v959 = vld [vmem:[%s958] sm:$0xff]
        %961 = vset.pattern.permute.xlu0 0
        %962 = vperm.xlu0 %961, %v959
        %v963 = vpop.permute.xlu0 %962
        %v966 = vsel %vm361, %v939, 0
        %968 = vmatprep.subr.mxu0 0.0
        %969 = vmatpush1.msra.mxu0 0.0
        %970 = vmatprep.subr.mxu0 0.0
        %971 = vmatpush1.msra.mxu0 0.0
        %972 = vmatprep.subr.mxu0 0.0
        %973 = vmatpush1.msra.mxu0 0.0
        %974 = vmatprep.subr.mxu0 0.0
        %975 = vmatpush1.msra.mxu0 0.0
        %976 = vmatprep.subr.mxu0 0.0
        %977 = vmatpush1.msra.mxu0 0.0
        %978 = vmatprep.subr.mxu0 0.0
        %979 = vmatpush1.msra.mxu0 0.0
        %980 = vmatprep.subr.mxu0 0.0
        %981 = vmatpush1.msra.mxu0 0.0
        %982 = vmatprep.subr.mxu0 %v957
        %983 = vmatpush1.msra.mxu0 %v956
        %984 = vmatprep.subr.mxu0 %v955
        %985 = vmatpush1.msra.mxu0 %v954
        %986 = vmatprep.subr.mxu0 %v953
        %987 = vmatpush1.msra.mxu0 %v952
        %988 = vmatprep.subr.mxu0 %v951
        %989 = vmatpush1.msra.mxu0 %v950
        %990 = vmatprep.subr.mxu0 %v949
        %991 = vmatpush1.msra.mxu0 %v948
        %992 = vmatprep.subr.mxu0 %v947
        %993 = vmatpush1.msra.mxu0 %v946
        %994 = vmatprep.subr.mxu0 %v945
        %995 = vmatpush1.msra.mxu0 %v944
        %996 = vmatprep.subr.mxu0 %v943
        %997 = vmatpush1.msra.mxu0 %v942
        %998 = vmatprep.subr.mxu0 %v941
        %999 = vmatpush1.msra.mxu0 %v940
        %1000 = vmatprep.subr.mxu0 0.0
        %1001 = vmatpush2.msra.mxu0 0.0
        %1002 = vmatprep.subr.mxu0 0.0
        %1003 = vmatpush2.msra.mxu0 0.0
        %1004 = vmatprep.subr.mxu0 0.0
        %1005 = vmatpush2.msra.mxu0 0.0
        %1006 = vmatprep.subr.mxu0 0.0
        %1007 = vmatpush2.msra.mxu0 0.0
        %1008 = vmatprep.subr.mxu0 0.0
        %1009 = vmatpush2.msra.mxu0 0.0
        %1010 = vmatprep.subr.mxu0 0.0
        %1011 = vmatpush2.msra.mxu0 0.0
        %1012 = vmatprep.subr.mxu0 0.0
        %1013 = vmatpush2.msra.mxu0 0.0
        %1014 = vmatprep.subr.mxu0 0.0
        %1015 = vmatpush2.msra.mxu0 0.0
        %1016 = vmatprep.subr.mxu0 0.0
        %1017 = vmatpush2.msra.mxu0 0.0
        %1018 = vmatprep.subr.mxu0 0.0
        %1019 = vmatpush2.msra.mxu0 0.0
        %1020 = vmatprep.subr.mxu0 0.0
        %1021 = vmatpush2.msra.mxu0 0.0
        %1022 = vmatprep.subr.mxu0 0.0
        %1023 = vmatpush2.msra.mxu0 0.0
        %1024 = vmatprep.subr.mxu0 0.0
        %1025 = vmatpush2.msra.mxu0 0.0
        %1026 = vmatprep.subr.mxu0 0.0
        %1027 = vmatpush2.msra.mxu0 0.0
        %1028 = vmatprep.subr.mxu0 0.0
        %1029 = vmatpush2.msra.mxu0 0.0
        %1030 = vmatprep.subr.mxu0 0.0
        %1031 = vmatpush2.msra.mxu0 0.0
        %1032 = vmatprep.mubr.f32.mxu0 0.0
        %1033 = vmatmul.mubr.f32.gmra.mxu0 %v966
        %v1034 = vpop.f32.mrf.mxu0
        %v1035 = vadd.f32 %v963, %v1034
        %v1036 = vpop.f32.mrf.mxu0
        %v1037 = vadd.f32 %v963, %v1036
        %1038 = vdwg.mxu0
        %v1039 = vmax.f32 %v1035, 0.0
        %v1040 = vmax.f32 %v1037, 0.0
        %1041 = vrot.lane.b32.xlu0 %v1039, 17
        %v1042 = vpop.permute.xlu0 %1041
        %1043 = vrot.lane.b32.xlu0 %v1040, 17
        %v1044 = vpop.permute.xlu0 %1043
        %v1045 = vsel %vm234, %v1042, %v1044
        %v1046 = vsel %vm234, %v1044, %v1042
        %v1047 = vld [vmem:[#allocation6] sm:$0xff]
        %v1048 = vld [vmem:[#allocation6 + $0x8] sm:$0xff]
        %v1049 = vmul.f32 %v1046, %v1047
        %v1050 = vmul.f32 %v1045, %v1048
        %1051 = vst [vmem:[#allocation2] sm:$0xff] %v1049
        %1052 = vst [vmem:[#allocation2 + $0x8] sm:$0xff] %v1050
        %1053 = vrot.lane.b32.xlu0 %v1039, 16
        %v1054 = vpop.permute.xlu0 %1053
        %1055 = vrot.lane.b32.xlu0 %v1040, 16
        %v1056 = vpop.permute.xlu0 %1055
        %v1057 = vsel %vm247, %v1054, %v1056
        %v1058 = vsel %vm247, %v1056, %v1054
        %v1059 = vld [vmem:[#allocation6 + $0x20] sm:$0xff]
        %v1060 = vld [vmem:[#allocation6 + $0x28] sm:$0xff]
        %v1061 = vmul.f32 %v1058, %v1059
        %v1062 = vmul.f32 %v1057, %v1060
        %1063 = vst [vmem:[#allocation2 + $0x10] sm:$0xff] %v1061
        %1064 = vst [vmem:[#allocation2 + $0x18] sm:$0xff] %v1062
        %1065 = vrot.lane.b32.xlu0 %v1039, 15
        %v1066 = vpop.permute.xlu0 %1065
        %1067 = vrot.lane.b32.xlu0 %v1040, 15
        %v1068 = vpop.permute.xlu0 %1067
        %v1069 = vsel %vm260, %v1066, %v1068
        %v1070 = vsel %vm260, %v1068, %v1066
        %v1071 = vld [vmem:[#allocation6 + $0x40] sm:$0xff]
        %v1072 = vld [vmem:[#allocation6 + $0x48] sm:$0xff]
        %v1073 = vmul.f32 %v1070, %v1071
        %v1074 = vmul.f32 %v1069, %v1072
        %1075 = vst [vmem:[#allocation2 + $0x20] sm:$0xff] %v1073
        %1076 = vst [vmem:[#allocation2 + $0x28] sm:$0xff] %v1074
        %1077 = vrot.lane.b32.xlu0 %v1039, 1
        %v1078 = vpop.permute.xlu0 %1077
        %1079 = vrot.lane.b32.xlu0 %v1040, 1
        %v1080 = vpop.permute.xlu0 %1079
        %v1081 = vsel %vm273, %v1078, %v1080
        %v1082 = vsel %vm273, %v1080, %v1078
        %v1083 = vld [vmem:[#allocation6 + $0x60] sm:$0xff]
        %v1084 = vld [vmem:[#allocation6 + $0x68] sm:$0xff]
        %v1085 = vmul.f32 %v1082, %v1083
        %v1086 = vmul.f32 %v1081, %v1084
        %1087 = vst [vmem:[#allocation2 + $0x30] sm:$0xff] %v1085
        %1088 = vst [vmem:[#allocation2 + $0x38] sm:$0xff] %v1086
        %1089 = vst [vmem:[#allocation2 + $0x40] sm:$0xff] %v1039
        %1090 = vst [vmem:[#allocation2 + $0x48] sm:$0xff] %v1040
        %1091 = vrot.lane.b32.xlu0 %v1039, 127
        %v1092 = vpop.permute.xlu0 %1091
        %1093 = vrot.lane.b32.xlu0 %v1040, 127
        %v1094 = vpop.permute.xlu0 %1093
        %v1095 = vsel %vm288, %v1092, %v1094
        %v1096 = vsel %vm288, %v1094, %v1092
        %v1097 = vld [vmem:[#allocation6 + $0xa0] sm:$0xff]
        %v1098 = vld [vmem:[#allocation6 + $0xa8] sm:$0xff]
        %v1099 = vmul.f32 %v1095, %v1097
        %v1100 = vmul.f32 %v1096, %v1098
        %1101 = vst [vmem:[#allocation2 + $0x50] sm:$0xff] %v1099
        %1102 = vst [vmem:[#allocation2 + $0x58] sm:$0xff] %v1100
        %1103 = vrot.lane.b32.xlu0 %v1039, 113
        %v1104 = vpop.permute.xlu0 %1103
        %1105 = vrot.lane.b32.xlu0 %v1040, 113
        %v1106 = vpop.permute.xlu0 %1105
        %v1107 = vsel %vm301, %v1104, %v1106
        %v1108 = vsel %vm301, %v1106, %v1104
        %v1109 = vld [vmem:[#allocation6 + $0xc0] sm:$0xff]
        %v1110 = vld [vmem:[#allocation6 + $0xc8] sm:$0xff]
        %v1111 = vmul.f32 %v1107, %v1109
        %v1112 = vmul.f32 %v1108, %v1110
        %1113 = vst [vmem:[#allocation2 + $0x60] sm:$0xff] %v1111
        %1114 = vst [vmem:[#allocation2 + $0x68] sm:$0xff] %v1112
        %1115 = vrot.lane.b32.xlu0 %v1039, 112
        %v1116 = vpop.permute.xlu0 %1115
        %1117 = vrot.lane.b32.xlu0 %v1040, 112
        %v1118 = vpop.permute.xlu0 %1117
        %v1119 = vsel %vm314, %v1116, %v1118
        %v1120 = vsel %vm314, %v1118, %v1116
        %v1121 = vld [vmem:[#allocation6 + $0xe0] sm:$0xff]
        %v1122 = vld [vmem:[#allocation6 + $0xe8] sm:$0xff]
        %v1123 = vmul.f32 %v1119, %v1121
        %v1124 = vmul.f32 %v1120, %v1122
        %1125 = vst [vmem:[#allocation2 + $0x70] sm:$0xff] %v1123
        %1126 = vst [vmem:[#allocation2 + $0x78] sm:$0xff] %v1124
        %1127 = vrot.lane.b32.xlu0 %v1039, 111
        %v1128 = vpop.permute.xlu0 %1127
        %1129 = vrot.lane.b32.xlu0 %v1040, 111
        %v1130 = vpop.permute.xlu0 %1129
        %v1131 = vsel %vm327, %v1128, %v1130
        %v1132 = vsel %vm327, %v1130, %v1128
        %v1133 = vld [vmem:[#allocation6 + $0x100] sm:$0xff]
        %v1134 = vld [vmem:[#allocation6 + $0x108] sm:$0xff]
        %v1135 = vmul.f32 %v1131, %v1133
        %v1136 = vmul.f32 %v1132, %v1134
        %1137 = vst [vmem:[#allocation2 + $0x80] sm:$0xff] %v1135
        %1138 = vst [vmem:[#allocation2 + $0x88] sm:$0xff] %v1136
        %s1139 = scalar_lea.vmem [#allocation3], 128
        %v1140 = vld [vmem:[%s1139] sm:$0xff]
        %v1141 = vld [vmem:[#allocation2] sm:$0xff]
        %v1142 = vld [vmem:[#allocation2 + $0x8] sm:$0xff]
        %v1143 = vld [vmem:[#allocation2 + $0x10] sm:$0xff]
        %v1144 = vld [vmem:[#allocation2 + $0x18] sm:$0xff]
        %v1145 = vld [vmem:[#allocation2 + $0x20] sm:$0xff]
        %v1146 = vld [vmem:[#allocation2 + $0x28] sm:$0xff]
        %v1147 = vld [vmem:[#allocation2 + $0x30] sm:$0xff]
        %v1148 = vld [vmem:[#allocation2 + $0x38] sm:$0xff]
        %v1149 = vld [vmem:[#allocation2 + $0x40] sm:$0xff]
        %v1150 = vld [vmem:[#allocation2 + $0x48] sm:$0xff]
        %v1151 = vld [vmem:[#allocation2 + $0x50] sm:$0xff]
        %v1152 = vld [vmem:[#allocation2 + $0x58] sm:$0xff]
        %v1153 = vld [vmem:[#allocation2 + $0x60] sm:$0xff]
        %v1154 = vld [vmem:[#allocation2 + $0x68] sm:$0xff]
        %v1155 = vld [vmem:[#allocation2 + $0x70] sm:$0xff]
        %v1156 = vld [vmem:[#allocation2 + $0x78] sm:$0xff]
        %v1157 = vld [vmem:[#allocation2 + $0x80] sm:$0xff]
        %v1158 = vld [vmem:[#allocation2 + $0x88] sm:$0xff]
        %s1159 = scalar_lea.vmem %s2, 64
        %v1160 = vld [vmem:[%s1159] sm:$0xff]
        %1162 = vset.pattern.permute.xlu0 0
        %1163 = vperm.xlu0 %1162, %v1160
        %v1164 = vpop.permute.xlu0 %1163
        %v1167 = vsel %vm361, %v1140, 0
        %1169 = vmatprep.subr.mxu0 0.0
        %1170 = vmatpush1.msra.mxu0 0.0
        %1171 = vmatprep.subr.mxu0 0.0
        %1172 = vmatpush1.msra.mxu0 0.0
        %1173 = vmatprep.subr.mxu0 0.0
        %1174 = vmatpush1.msra.mxu0 0.0
        %1175 = vmatprep.subr.mxu0 0.0
        %1176 = vmatpush1.msra.mxu0 0.0
        %1177 = vmatprep.subr.mxu0 0.0
        %1178 = vmatpush1.msra.mxu0 0.0
        %1179 = vmatprep.subr.mxu0 0.0
        %1180 = vmatpush1.msra.mxu0 0.0
        %1181 = vmatprep.subr.mxu0 0.0
        %1182 = vmatpush1.msra.mxu0 0.0
        %1183 = vmatprep.subr.mxu0 %v1158
        %1184 = vmatpush1.msra.mxu0 %v1157
        %1185 = vmatprep.subr.mxu0 %v1156
        %1186 = vmatpush1.msra.mxu0 %v1155
        %1187 = vmatprep.subr.mxu0 %v1154
        %1188 = vmatpush1.msra.mxu0 %v1153
        %1189 = vmatprep.subr.mxu0 %v1152
        %1190 = vmatpush1.msra.mxu0 %v1151
        %1191 = vmatprep.subr.mxu0 %v1150
        %1192 = vmatpush1.msra.mxu0 %v1149
        %1193 = vmatprep.subr.mxu0 %v1148
        %1194 = vmatpush1.msra.mxu0 %v1147
        %1195 = vmatprep.subr.mxu0 %v1146
        %1196 = vmatpush1.msra.mxu0 %v1145
        %1197 = vmatprep.subr.mxu0 %v1144
        %1198 = vmatpush1.msra.mxu0 %v1143
        %1199 = vmatprep.subr.mxu0 %v1142
        %1200 = vmatpush1.msra.mxu0 %v1141
        %1201 = vmatprep.subr.mxu0 0.0
        %1202 = vmatpush2.msra.mxu0 0.0
        %1203 = vmatprep.subr.mxu0 0.0
        %1204 = vmatpush2.msra.mxu0 0.0
        %1205 = vmatprep.subr.mxu0 0.0
        %1206 = vmatpush2.msra.mxu0 0.0
        %1207 = vmatprep.subr.mxu0 0.0
        %1208 = vmatpush2.msra.mxu0 0.0
        %1209 = vmatprep.subr.mxu0 0.0
        %1210 = vmatpush2.msra.mxu0 0.0
        %1211 = vmatprep.subr.mxu0 0.0
        %1212 = vmatpush2.msra.mxu0 0.0
        %1213 = vmatprep.subr.mxu0 0.0
        %1214 = vmatpush2.msra.mxu0 0.0
        %1215 = vmatprep.subr.mxu0 0.0
        %1216 = vmatpush2.msra.mxu0 0.0
        %1217 = vmatprep.subr.mxu0 0.0
        %1218 = vmatpush2.msra.mxu0 0.0
        %1219 = vmatprep.subr.mxu0 0.0
        %1220 = vmatpush2.msra.mxu0 0.0
        %1221 = vmatprep.subr.mxu0 0.0
        %1222 = vmatpush2.msra.mxu0 0.0
        %1223 = vmatprep.subr.mxu0 0.0
        %1224 = vmatpush2.msra.mxu0 0.0
        %1225 = vmatprep.subr.mxu0 0.0
        %1226 = vmatpush2.msra.mxu0 0.0
        %1227 = vmatprep.subr.mxu0 0.0
        %1228 = vmatpush2.msra.mxu0 0.0
        %1229 = vmatprep.subr.mxu0 0.0
        %1230 = vmatpush2.msra.mxu0 0.0
        %1231 = vmatprep.subr.mxu0 0.0
        %1232 = vmatpush2.msra.mxu0 0.0
        %1233 = vmatprep.mubr.f32.mxu0 0.0
        %1234 = vmatmul.mubr.f32.gmra.mxu0 %v1167
        %v1235 = vpop.f32.mrf.mxu0
        %v1236 = vadd.f32 %v1164, %v1235
        %v1237 = vpop.f32.mrf.mxu0
        %v1238 = vadd.f32 %v1164, %v1237
        %1239 = vdwg.mxu0
        %v1240 = vadd.f32 %v1236, %v838
        %v1241 = vadd.f32 %v1238, %v839
        %1242 = vrot.lane.b32.xlu0 %v1240, 17
        %v1243 = vpop.permute.xlu0 %1242
        %1244 = vrot.lane.b32.xlu0 %v1241, 17
        %v1245 = vpop.permute.xlu0 %1244
        %v1246 = vsel %vm234, %v1243, %v1245
        %v1247 = vsel %vm234, %v1245, %v1243
        %v1248 = vld [vmem:[#allocation6] sm:$0xff]
        %v1249 = vld [vmem:[#allocation6 + $0x8] sm:$0xff]
        %v1250 = vmul.f32 %v1247, %v1248
        %v1251 = vmul.f32 %v1246, %v1249
        %1252 = vst [vmem:[#allocation2] sm:$0xff] %v1250
        %1253 = vst [vmem:[#allocation2 + $0x8] sm:$0xff] %v1251
        %1254 = vrot.lane.b32.xlu0 %v1240, 16
        %v1255 = vpop.permute.xlu0 %1254
        %1256 = vrot.lane.b32.xlu0 %v1241, 16
        %v1257 = vpop.permute.xlu0 %1256
        %v1258 = vsel %vm247, %v1255, %v1257
        %v1259 = vsel %vm247, %v1257, %v1255
        %v1260 = vld [vmem:[#allocation6 + $0x20] sm:$0xff]
        %v1261 = vld [vmem:[#allocation6 + $0x28] sm:$0xff]
        %v1262 = vmul.f32 %v1259, %v1260
        %v1263 = vmul.f32 %v1258, %v1261
        %1264 = vst [vmem:[#allocation2 + $0x10] sm:$0xff] %v1262
        %1265 = vst [vmem:[#allocation2 + $0x18] sm:$0xff] %v1263
        %1266 = vrot.lane.b32.xlu0 %v1240, 15
        %v1267 = vpop.permute.xlu0 %1266
        %1268 = vrot.lane.b32.xlu0 %v1241, 15
        %v1269 = vpop.permute.xlu0 %1268
        %v1270 = vsel %vm260, %v1267, %v1269
        %v1271 = vsel %vm260, %v1269, %v1267
        %v1272 = vld [vmem:[#allocation6 + $0x40] sm:$0xff]
        %v1273 = vld [vmem:[#allocation6 + $0x48] sm:$0xff]
        %v1274 = vmul.f32 %v1271, %v1272
        %v1275 = vmul.f32 %v1270, %v1273
        %1276 = vst [vmem:[#allocation2 + $0x20] sm:$0xff] %v1274
        %1277 = vst [vmem:[#allocation2 + $0x28] sm:$0xff] %v1275
        %1278 = vrot.lane.b32.xlu0 %v1240, 1
        %v1279 = vpop.permute.xlu0 %1278
        %1280 = vrot.lane.b32.xlu0 %v1241, 1
        %v1281 = vpop.permute.xlu0 %1280
        %v1282 = vsel %vm273, %v1279, %v1281
        %v1283 = vsel %vm273, %v1281, %v1279
        %v1284 = vld [vmem:[#allocation6 + $0x60] sm:$0xff]
        %v1285 = vld [vmem:[#allocation6 + $0x68] sm:$0xff]
        %v1286 = vmul.f32 %v1283, %v1284
        %v1287 = vmul.f32 %v1282, %v1285
        %1288 = vst [vmem:[#allocation2 + $0x30] sm:$0xff] %v1286
        %1289 = vst [vmem:[#allocation2 + $0x38] sm:$0xff] %v1287
        %1290 = vst [vmem:[#allocation2 + $0x40] sm:$0xff] %v1240
        %1291 = vst [vmem:[#allocation2 + $0x48] sm:$0xff] %v1241
        %1292 = vrot.lane.b32.xlu0 %v1240, 127
        %v1293 = vpop.permute.xlu0 %1292
        %1294 = vrot.lane.b32.xlu0 %v1241, 127
        %v1295 = vpop.permute.xlu0 %1294
        %v1296 = vsel %vm288, %v1293, %v1295
        %v1297 = vsel %vm288, %v1295, %v1293
        %v1298 = vld [vmem:[#allocation6 + $0xa0] sm:$0xff]
        %v1299 = vld [vmem:[#allocation6 + $0xa8] sm:$0xff]
        %v1300 = vmul.f32 %v1296, %v1298
        %v1301 = vmul.f32 %v1297, %v1299
        %1302 = vst [vmem:[#allocation2 + $0x50] sm:$0xff] %v1300
        %1303 = vst [vmem:[#allocation2 + $0x58] sm:$0xff] %v1301
        %1304 = vrot.lane.b32.xlu0 %v1240, 113
        %v1305 = vpop.permute.xlu0 %1304
        %1306 = vrot.lane.b32.xlu0 %v1241, 113
        %v1307 = vpop.permute.xlu0 %1306
        %v1308 = vsel %vm301, %v1305, %v1307
        %v1309 = vsel %vm301, %v1307, %v1305
        %v1310 = vld [vmem:[#allocation6 + $0xc0] sm:$0xff]
        %v1311 = vld [vmem:[#allocation6 + $0xc8] sm:$0xff]
        %v1312 = vmul.f32 %v1308, %v1310
        %v1313 = vmul.f32 %v1309, %v1311
        %1314 = vst [vmem:[#allocation2 + $0x60] sm:$0xff] %v1312
        %1315 = vst [vmem:[#allocation2 + $0x68] sm:$0xff] %v1313
        %1316 = vrot.lane.b32.xlu0 %v1240, 112
        %v1317 = vpop.permute.xlu0 %1316
        %1318 = vrot.lane.b32.xlu0 %v1241, 112
        %v1319 = vpop.permute.xlu0 %1318
        %v1320 = vsel %vm314, %v1317, %v1319
        %v1321 = vsel %vm314, %v1319, %v1317
        %v1322 = vld [vmem:[#allocation6 + $0xe0] sm:$0xff]
        %v1323 = vld [vmem:[#allocation6 + $0xe8] sm:$0xff]
        %v1324 = vmul.f32 %v1320, %v1322
        %v1325 = vmul.f32 %v1321, %v1323
        %1326 = vst [vmem:[#allocation2 + $0x70] sm:$0xff] %v1324
        %1327 = vst [vmem:[#allocation2 + $0x78] sm:$0xff] %v1325
        %1328 = vrot.lane.b32.xlu0 %v1240, 111
        %v1329 = vpop.permute.xlu0 %1328
        %1330 = vrot.lane.b32.xlu0 %v1241, 111
        %v1331 = vpop.permute.xlu0 %1330
        %v1332 = vsel %vm327, %v1329, %v1331
        %v1333 = vsel %vm327, %v1331, %v1329
        %v1334 = vld [vmem:[#allocation6 + $0x100] sm:$0xff]
        %v1335 = vld [vmem:[#allocation6 + $0x108] sm:$0xff]
        %v1336 = vmul.f32 %v1332, %v1334
        %v1337 = vmul.f32 %v1333, %v1335
        %1338 = vst [vmem:[#allocation2 + $0x80] sm:$0xff] %v1336
        %1339 = vst [vmem:[#allocation2 + $0x88] sm:$0xff] %v1337
        %s1340 = scalar_lea.vmem [#allocation3], 160
        %v1341 = vld [vmem:[%s1340] sm:$0xff]
        %v1342 = vld [vmem:[%s1340 + $0x10] sm:$0xff]
        %v1343 = vld [vmem:[#allocation2] sm:$0xff]
        %v1344 = vld [vmem:[#allocation2 + $0x8] sm:$0xff]
        %v1345 = vld [vmem:[#allocation2 + $0x10] sm:$0xff]
        %v1346 = vld [vmem:[#allocation2 + $0x18] sm:$0xff]
        %v1347 = vld [vmem:[#allocation2 + $0x20] sm:$0xff]
        %v1348 = vld [vmem:[#allocation2 + $0x28] sm:$0xff]
        %v1349 = vld [vmem:[#allocation2 + $0x30] sm:$0xff]
        %v1350 = vld [vmem:[#allocation2 + $0x38] sm:$0xff]
        %v1351 = vld [vmem:[#allocation2 + $0x40] sm:$0xff]
        %v1352 = vld [vmem:[#allocation2 + $0x48] sm:$0xff]
        %v1353 = vld [vmem:[#allocation2 + $0x50] sm:$0xff]
        %v1354 = vld [vmem:[#allocation2 + $0x58] sm:$0xff]
        %v1355 = vld [vmem:[#allocation2 + $0x60] sm:$0xff]
        %v1356 = vld [vmem:[#allocation2 + $0x68] sm:$0xff]
        %v1357 = vld [vmem:[#allocation2 + $0x70] sm:$0xff]
        %v1358 = vld [vmem:[#allocation2 + $0x78] sm:$0xff]
        %v1359 = vld [vmem:[#allocation2 + $0x80] sm:$0xff]
        %v1360 = vld [vmem:[#allocation2 + $0x88] sm:$0xff]
        %s1361 = scalar_lea.vmem %s2, 80
        %v1362 = vld [vmem:[%s1361] sm:$0xff]
        %v1363 = vld [vmem:[%s1361 + $0x8] sm:$0xff]
        %1365 = vset.pattern.permute.xlu0 0
        %1366 = vperm.xlu0 %1365, %v1362
        %v1367 = vpop.permute.xlu0 %1366
        %1370 = vset.pattern.permute.xlu0 0
        %1371 = vperm.xlu0 %1370, %v1363
        %v1372 = vpop.permute.xlu0 %1371
        %v1375 = vsel %vm361, %v1341, 0
        %v1378 = vsel %vm361, %v1342, 0
        %1380 = vmatprep.subr.mxu0 0.0
        %1381 = vmatpush1.msra.mxu0 0.0
        %1382 = vmatprep.subr.mxu0 0.0
        %1383 = vmatpush1.msra.mxu0 0.0
        %1384 = vmatprep.subr.mxu0 0.0
        %1385 = vmatpush1.msra.mxu0 0.0
        %1386 = vmatprep.subr.mxu0 0.0
        %1387 = vmatpush1.msra.mxu0 0.0
        %1388 = vmatprep.subr.mxu0 0.0
        %1389 = vmatpush1.msra.mxu0 0.0
        %1390 = vmatprep.subr.mxu0 0.0
        %1391 = vmatpush1.msra.mxu0 0.0
        %1392 = vmatprep.subr.mxu0 0.0
        %1393 = vmatpush1.msra.mxu0 0.0
        %1394 = vmatprep.subr.mxu0 %v1360
        %1395 = vmatpush1.msra.mxu0 %v1359
        %1396 = vmatprep.subr.mxu0 %v1358
        %1397 = vmatpush1.msra.mxu0 %v1357
        %1398 = vmatprep.subr.mxu0 %v1356
        %1399 = vmatpush1.msra.mxu0 %v1355
        %1400 = vmatprep.subr.mxu0 %v1354
        %1401 = vmatpush1.msra.mxu0 %v1353
        %1402 = vmatprep.subr.mxu0 %v1352
        %1403 = vmatpush1.msra.mxu0 %v1351
        %1404 = vmatprep.subr.mxu0 %v1350
        %1405 = vmatpush1.msra.mxu0 %v1349
        %1406 = vmatprep.subr.mxu0 %v1348
        %1407 = vmatpush1.msra.mxu0 %v1347
        %1408 = vmatprep.subr.mxu0 %v1346
        %1409 = vmatpush1.msra.mxu0 %v1345
        %1410 = vmatprep.subr.mxu0 %v1344
        %1411 = vmatpush1.msra.mxu0 %v1343
        %1412 = vmatprep.subr.mxu0 0.0
        %1413 = vmatpush2.msra.mxu0 0.0
        %1414 = vmatprep.subr.mxu0 0.0
        %1415 = vmatpush2.msra.mxu0 0.0
        %1416 = vmatprep.subr.mxu0 0.0
        %1417 = vmatpush2.msra.mxu0 0.0
        %1418 = vmatprep.subr.mxu0 0.0
        %1419 = vmatpush2.msra.mxu0 0.0
        %1420 = vmatprep.subr.mxu0 0.0
        %1421 = vmatpush2.msra.mxu0 0.0
        %1422 = vmatprep.subr.mxu0 0.0
        %1423 = vmatpush2.msra.mxu0 0.0
        %1424 = vmatprep.subr.mxu0 0.0
        %1425 = vmatpush2.msra.mxu0 0.0
        %1426 = vmatprep.subr.mxu0 0.0
        %1427 = vmatpush2.msra.mxu0 0.0
        %1428 = vmatprep.subr.mxu0 0.0
        %1429 = vmatpush2.msra.mxu0 0.0
        %1430 = vmatprep.subr.mxu0 0.0
        %1431 = vmatpush2.msra.mxu0 0.0
        %1432 = vmatprep.subr.mxu0 0.0
        %1433 = vmatpush2.msra.mxu0 0.0
        %1434 = vmatprep.subr.mxu0 0.0
        %1435 = vmatpush2.msra.mxu0 0.0
        %1436 = vmatprep.subr.mxu0 0.0
        %1437 = vmatpush2.msra.mxu0 0.0
        %1438 = vmatprep.subr.mxu0 0.0
        %1439 = vmatpush2.msra.mxu0 0.0
        %1440 = vmatprep.subr.mxu0 0.0
        %1441 = vmatpush2.msra.mxu0 0.0
        %1442 = vmatprep.subr.mxu0 0.0
        %1443 = vmatpush2.msra.mxu0 0.0
        %1444 = vmatprep.mubr.f32.mxu0 0.0
        %1445 = vmatmul.mubr.f32.gmra.mxu0 %v1375
        %v1446 = vpop.f32.mrf.mxu0
        %v1447 = vadd.f32 %v1367, %v1446
        %v1448 = vpop.f32.mrf.mxu0
        %v1449 = vadd.f32 %v1367, %v1448
        %1450 = vmatprep.mubr.f32.mxu0 0.0
        %1451 = vmatmul.mubr.f32.gmra.mxu0 %v1378
        %v1452 = vpop.f32.mrf.mxu0
        %v1453 = vadd.f32 %v1372, %v1452
        %v1454 = vpop.f32.mrf.mxu0
        %v1455 = vadd.f32 %v1372, %v1454
        %1456 = vdwg.mxu0
        %v1457 = vmax.f32 %v1447, 0.0
        %v1458 = vmax.f32 %v1449, 0.0
        %v1459 = vmax.f32 %v1453, 0.0
        %v1460 = vmax.f32 %v1455, 0.0
        %1461 = vrot.lane.b32.xlu0 %v1457, 17
        %v1462 = vpop.permute.xlu0 %1461
        %1463 = vrot.lane.b32.xlu0 %v1459, 17
        %v1464 = vpop.permute.xlu0 %1463
        %1465 = vrot.lane.b32.xlu0 %v1458, 17
        %v1466 = vpop.permute.xlu0 %1465
        %1467 = vrot.lane.b32.xlu0 %v1460, 17
        %v1468 = vpop.permute.xlu0 %1467
        %v1469 = vsel %vm234, %v1462, %v1466
        %v1470 = vsel %vm234, %v1464, %v1468
        %v1471 = vsel %vm234, %v1466, %v1462
        %v1472 = vsel %vm234, %v1468, %v1464
        %v1473 = vld [vmem:[#allocation6] sm:$0xff]
        %v1474 = vld [vmem:[#allocation6 + $0x8] sm:$0xff]
        %v1475 = vld [vmem:[#allocation6 + $0x10] sm:$0xff]
        %v1476 = vld [vmem:[#allocation6 + $0x18] sm:$0xff]
        %v1477 = vmul.f32 %v1471, %v1473
        %v1478 = vmul.f32 %v1469, %v1474
        %v1479 = vmul.f32 %v1472, %v1475
        %v1480 = vmul.f32 %v1470, %v1476
        %1481 = vst [vmem:[#allocation2] sm:$0xff] %v1477
        %1482 = vst [vmem:[#allocation2 + $0x8] sm:$0xff] %v1478
        %1483 = vst [vmem:[#allocation2 + $0x10] sm:$0xff] %v1479
        %1484 = vst [vmem:[#allocation2 + $0x18] sm:$0xff] %v1480
        %1485 = vrot.lane.b32.xlu0 %v1457, 16
        %v1486 = vpop.permute.xlu0 %1485
        %1487 = vrot.lane.b32.xlu0 %v1459, 16
        %v1488 = vpop.permute.xlu0 %1487
        %1489 = vrot.lane.b32.xlu0 %v1458, 16
        %v1490 = vpop.permute.xlu0 %1489
        %1491 = vrot.lane.b32.xlu0 %v1460, 16
        %v1492 = vpop.permute.xlu0 %1491
        %v1493 = vsel %vm247, %v1486, %v1490
        %v1494 = vsel %vm247, %v1488, %v1492
        %v1495 = vsel %vm247, %v1490, %v1486
        %v1496 = vsel %vm247, %v1492, %v1488
        %v1497 = vld [vmem:[#allocation6 + $0x20] sm:$0xff]
        %v1498 = vld [vmem:[#allocation6 + $0x28] sm:$0xff]
        %v1499 = vld [vmem:[#allocation6 + $0x30] sm:$0xff]
        %v1500 = vld [vmem:[#allocation6 + $0x38] sm:$0xff]
        %v1501 = vmul.f32 %v1495, %v1497
        %v1502 = vmul.f32 %v1493, %v1498
        %v1503 = vmul.f32 %v1496, %v1499
        %v1504 = vmul.f32 %v1494, %v1500
        %1505 = vst [vmem:[#allocation2 + $0x20] sm:$0xff] %v1501
        %1506 = vst [vmem:[#allocation2 + $0x28] sm:$0xff] %v1502
        %1507 = vst [vmem:[#allocation2 + $0x30] sm:$0xff] %v1503
        %1508 = vst [vmem:[#allocation2 + $0x38] sm:$0xff] %v1504
        %1509 = vrot.lane.b32.xlu0 %v1457, 15
        %v1510 = vpop.permute.xlu0 %1509
        %1511 = vrot.lane.b32.xlu0 %v1459, 15
        %v1512 = vpop.permute.xlu0 %1511
        %1513 = vrot.lane.b32.xlu0 %v1458, 15
        %v1514 = vpop.permute.xlu0 %1513
        %1515 = vrot.lane.b32.xlu0 %v1460, 15
        %v1516 = vpop.permute.xlu0 %1515
        %v1517 = vsel %vm260, %v1510, %v1514
        %v1518 = vsel %vm260, %v1512, %v1516
        %v1519 = vsel %vm260, %v1514, %v1510
        %v1520 = vsel %vm260, %v1516, %v1512
        %v1521 = vld [vmem:[#allocation6 + $0x40] sm:$0xff]
        %v1522 = vld [vmem:[#allocation6 + $0x48] sm:$0xff]
        %v1523 = vld [vmem:[#allocation6 + $0x50] sm:$0xff]
        %v1524 = vld [vmem:[#allocation6 + $0x58] sm:$0xff]
        %v1525 = vmul.f32 %v1519, %v1521
        %v1526 = vmul.f32 %v1517, %v1522
        %v1527 = vmul.f32 %v1520, %v1523
        %v1528 = vmul.f32 %v1518, %v1524
        %1529 = vst [vmem:[#allocation2 + $0x40] sm:$0xff] %v1525
        %1530 = vst [vmem:[#allocation2 + $0x48] sm:$0xff] %v1526
        %1531 = vst [vmem:[#allocation2 + $0x50] sm:$0xff] %v1527
        %1532 = vst [vmem:[#allocation2 + $0x58] sm:$0xff] %v1528
        %1533 = vrot.lane.b32.xlu0 %v1457, 1
        %v1534 = vpop.permute.xlu0 %1533
        %1535 = vrot.lane.b32.xlu0 %v1459, 1
        %v1536 = vpop.permute.xlu0 %1535
        %1537 = vrot.lane.b32.xlu0 %v1458, 1
        %v1538 = vpop.permute.xlu0 %1537
        %1539 = vrot.lane.b32.xlu0 %v1460, 1
        %v1540 = vpop.permute.xlu0 %1539
        %v1541 = vsel %vm273, %v1534, %v1538
        %v1542 = vsel %vm273, %v1536, %v1540
        %v1543 = vsel %vm273, %v1538, %v1534
        %v1544 = vsel %vm273, %v1540, %v1536
        %v1545 = vld [vmem:[#allocation6 + $0x60] sm:$0xff]
        %v1546 = vld [vmem:[#allocation6 + $0x68] sm:$0xff]
        %v1547 = vld [vmem:[#allocation6 + $0x70] sm:$0xff]
        %v1548 = vld [vmem:[#allocation6 + $0x78] sm:$0xff]
        %v1549 = vmul.f32 %v1543, %v1545
        %v1550 = vmul.f32 %v1541, %v1546
        %v1551 = vmul.f32 %v1544, %v1547
        %v1552 = vmul.f32 %v1542, %v1548
        %1553 = vst [vmem:[#allocation2 + $0x60] sm:$0xff] %v1549
        %1554 = vst [vmem:[#allocation2 + $0x68] sm:$0xff] %v1550
        %1555 = vst [vmem:[#allocation2 + $0x70] sm:$0xff] %v1551
        %1556 = vst [vmem:[#allocation2 + $0x78] sm:$0xff] %v1552
        %1557 = vst [vmem:[#allocation2 + $0x80] sm:$0xff] %v1457
        %1558 = vst [vmem:[#allocation2 + $0x88] sm:$0xff] %v1458
        %1559 = vst [vmem:[#allocation2 + $0x90] sm:$0xff] %v1459
        %1560 = vst [vmem:[#allocation2 + $0x98] sm:$0xff] %v1460
        %1561 = vrot.lane.b32.xlu0 %v1457, 127
        %v1562 = vpop.permute.xlu0 %1561
        %1563 = vrot.lane.b32.xlu0 %v1459, 127
        %v1564 = vpop.permute.xlu0 %1563
        %1565 = vrot.lane.b32.xlu0 %v1458, 127
        %v1566 = vpop.permute.xlu0 %1565
        %1567 = vrot.lane.b32.xlu0 %v1460, 127
        %v1568 = vpop.permute.xlu0 %1567
        %v1569 = vsel %vm288, %v1562, %v1566
        %v1570 = vsel %vm288, %v1564, %v1568
        %v1571 = vsel %vm288, %v1566, %v1562
        %v1572 = vsel %vm288, %v1568, %v1564
        %v1573 = vld [vmem:[#allocation6 + $0xa0] sm:$0xff]
        %v1574 = vld [vmem:[#allocation6 + $0xa8] sm:$0xff]
        %v1575 = vld [vmem:[#allocation6 + $0xb0] sm:$0xff]
        %v1576 = vld [vmem:[#allocation6 + $0xb8] sm:$0xff]
        %v1577 = vmul.f32 %v1569, %v1573
        %v1578 = vmul.f32 %v1571, %v1574
        %v1579 = vmul.f32 %v1570, %v1575
        %v1580 = vmul.f32 %v1572, %v1576
        %1581 = vst [vmem:[#allocation2 + $0xa0] sm:$0xff] %v1577
        %1582 = vst [vmem:[#allocation2 + $0xa8] sm:$0xff] %v1578
        %1583 = vst [vmem:[#allocation2 + $0xb0] sm:$0xff] %v1579
        %1584 = vst [vmem:[#allocation2 + $0xb8] sm:$0xff] %v1580
        %1585 = vrot.lane.b32.xlu0 %v1457, 113
        %v1586 = vpop.permute.xlu0 %1585
        %1587 = vrot.lane.b32.xlu0 %v1459, 113
        %v1588 = vpop.permute.xlu0 %1587
        %1589 = vrot.lane.b32.xlu0 %v1458, 113
        %v1590 = vpop.permute.xlu0 %1589
        %1591 = vrot.lane.b32.xlu0 %v1460, 113
        %v1592 = vpop.permute.xlu0 %1591
        %v1593 = vsel %vm301, %v1586, %v1590
        %v1594 = vsel %vm301, %v1588, %v1592
        %v1595 = vsel %vm301, %v1590, %v1586
        %v1596 = vsel %vm301, %v1592, %v1588
        %v1597 = vld [vmem:[#allocation6 + $0xc0] sm:$0xff]
        %v1598 = vld [vmem:[#allocation6 + $0xc8] sm:$0xff]
        %v1599 = vld [vmem:[#allocation6 + $0xd0] sm:$0xff]
        %v1600 = vld [vmem:[#allocation6 + $0xd8] sm:$0xff]
        %v1601 = vmul.f32 %v1593, %v1597
        %v1602 = vmul.f32 %v1595, %v1598
        %v1603 = vmul.f32 %v1594, %v1599
        %v1604 = vmul.f32 %v1596, %v1600
        %1605 = vst [vmem:[#allocation2 + $0xc0] sm:$0xff] %v1601
        %1606 = vst [vmem:[#allocation2 + $0xc8] sm:$0xff] %v1602
        %1607 = vst [vmem:[#allocation2 + $0xd0] sm:$0xff] %v1603
        %1608 = vst [vmem:[#allocation2 + $0xd8] sm:$0xff] %v1604
        %1609 = vrot.lane.b32.xlu0 %v1457, 112
        %v1610 = vpop.permute.xlu0 %1609
        %1611 = vrot.lane.b32.xlu0 %v1459, 112
        %v1612 = vpop.permute.xlu0 %1611
        %1613 = vrot.lane.b32.xlu0 %v1458, 112
        %v1614 = vpop.permute.xlu0 %1613
        %1615 = vrot.lane.b32.xlu0 %v1460, 112
        %v1616 = vpop.permute.xlu0 %1615
        %v1617 = vsel %vm314, %v1610, %v1614
        %v1618 = vsel %vm314, %v1612, %v1616
        %v1619 = vsel %vm314, %v1614, %v1610
        %v1620 = vsel %vm314, %v1616, %v1612
        %v1621 = vld [vmem:[#allocation6 + $0xe0] sm:$0xff]
        %v1622 = vld [vmem:[#allocation6 + $0xe8] sm:$0xff]
        %v1623 = vld [vmem:[#allocation6 + $0xf0] sm:$0xff]
        %v1624 = vld [vmem:[#allocation6 + $0xf8] sm:$0xff]
        %v1625 = vmul.f32 %v1617, %v1621
        %v1626 = vmul.f32 %v1619, %v1622
        %v1627 = vmul.f32 %v1618, %v1623
        %v1628 = vmul.f32 %v1620, %v1624
        %1629 = vst [vmem:[#allocation2 + $0xe0] sm:$0xff] %v1625
        %1630 = vst [vmem:[#allocation2 + $0xe8] sm:$0xff] %v1626
        %1631 = vst [vmem:[#allocation2 + $0xf0] sm:$0xff] %v1627
        %1632 = vst [vmem:[#allocation2 + $0xf8] sm:$0xff] %v1628
        %1633 = vrot.lane.b32.xlu0 %v1457, 111
        %v1634 = vpop.permute.xlu0 %1633
        %1635 = vrot.lane.b32.xlu0 %v1459, 111
        %v1636 = vpop.permute.xlu0 %1635
        %1637 = vrot.lane.b32.xlu0 %v1458, 111
        %v1638 = vpop.permute.xlu0 %1637
        %1639 = vrot.lane.b32.xlu0 %v1460, 111
        %v1640 = vpop.permute.xlu0 %1639
        %v1641 = vsel %vm327, %v1634, %v1638
        %v1642 = vsel %vm327, %v1636, %v1640
        %v1643 = vsel %vm327, %v1638, %v1634
        %v1644 = vsel %vm327, %v1640, %v1636
        %v1645 = vld [vmem:[#allocation6 + $0x100] sm:$0xff]
        %v1646 = vld [vmem:[#allocation6 + $0x108] sm:$0xff]
        %v1647 = vld [vmem:[#allocation6 + $0x110] sm:$0xff]
        %v1648 = vld [vmem:[#allocation6 + $0x118] sm:$0xff]
        %v1649 = vmul.f32 %v1641, %v1645
        %v1650 = vmul.f32 %v1643, %v1646
        %v1651 = vmul.f32 %v1642, %v1647
        %v1652 = vmul.f32 %v1644, %v1648
        %1653 = vst [vmem:[#allocation2 + $0x100] sm:$0xff] %v1649
        %1654 = vst [vmem:[#allocation2 + $0x108] sm:$0xff] %v1650
        %1655 = vst [vmem:[#allocation2 + $0x110] sm:$0xff] %v1651
        %1656 = vst [vmem:[#allocation2 + $0x118] sm:$0xff] %v1652
        %s1657 = scalar_lea.vmem [#allocation3], 192
        %v1658 = vld [vmem:[%s1657] sm:$0xff]
        %v1659 = vld [vmem:[%s1657 + $0x8] sm:$0xff]
        %v1660 = vld [vmem:[%s1657 + $0x10] sm:$0xff]
        %v1661 = vld [vmem:[%s1657 + $0x18] sm:$0xff]
        %v1662 = vld [vmem:[#allocation2] sm:$0xff]
        %v1663 = vld [vmem:[#allocation2 + $0x8] sm:$0xff]
        %v1664 = vld [vmem:[#allocation2 + $0x10] sm:$0xff]
        %v1665 = vld [vmem:[#allocation2 + $0x18] sm:$0xff]
        %v1666 = vld [vmem:[#allocation2 + $0x20] sm:$0xff]
        %v1667 = vld [vmem:[#allocation2 + $0x28] sm:$0xff]
        %v1668 = vld [vmem:[#allocation2 + $0x30] sm:$0xff]
        %v1669 = vld [vmem:[#allocation2 + $0x38] sm:$0xff]
        %v1670 = vld [vmem:[#allocation2 + $0x40] sm:$0xff]
        %v1671 = vld [vmem:[#allocation2 + $0x48] sm:$0xff]
        %v1672 = vld [vmem:[#allocation2 + $0x50] sm:$0xff]
        %v1673 = vld [vmem:[#allocation2 + $0x58] sm:$0xff]
        %v1674 = vld [vmem:[#allocation2 + $0x60] sm:$0xff]
        %v1675 = vld [vmem:[#allocation2 + $0x68] sm:$0xff]
        %v1676 = vld [vmem:[#allocation2 + $0x70] sm:$0xff]
        %v1677 = vld [vmem:[#allocation2 + $0x78] sm:$0xff]
        %v1678 = vld [vmem:[#allocation2 + $0x80] sm:$0xff]
        %v1679 = vld [vmem:[#allocation2 + $0x88] sm:$0xff]
        %v1680 = vld [vmem:[#allocation2 + $0x90] sm:$0xff]
        %v1681 = vld [vmem:[#allocation2 + $0x98] sm:$0xff]
        %v1682 = vld [vmem:[#allocation2 + $0xa0] sm:$0xff]
        %v1683 = vld [vmem:[#allocation2 + $0xa8] sm:$0xff]
        %v1684 = vld [vmem:[#allocation2 + $0xb0] sm:$0xff]
        %v1685 = vld [vmem:[#allocation2 + $0xb8] sm:$0xff]
        %v1686 = vld [vmem:[#allocation2 + $0xc0] sm:$0xff]
        %v1687 = vld [vmem:[#allocation2 + $0xc8] sm:$0xff]
        %v1688 = vld [vmem:[#allocation2 + $0xd0] sm:$0xff]
        %v1689 = vld [vmem:[#allocation2 + $0xd8] sm:$0xff]
        %v1690 = vld [vmem:[#allocation2 + $0xe0] sm:$0xff]
        %v1691 = vld [vmem:[#allocation2 + $0xe8] sm:$0xff]
        %v1692 = vld [vmem:[#allocation2 + $0xf0] sm:$0xff]
        %v1693 = vld [vmem:[#allocation2 + $0xf8] sm:$0xff]
        %v1694 = vld [vmem:[#allocation2 + $0x100] sm:$0xff]
        %v1695 = vld [vmem:[#allocation2 + $0x108] sm:$0xff]
        %v1696 = vld [vmem:[#allocation2 + $0x110] sm:$0xff]
        %v1697 = vld [vmem:[#allocation2 + $0x118] sm:$0xff]
        %s1698 = scalar_lea.vmem %s2, 96
        %v1699 = vld [vmem:[%s1698] sm:$0xff]
        %v1700 = vld [vmem:[%s1698 + $0x8] sm:$0xff]
        %1702 = vset.pattern.permute.xlu0 0
        %1703 = vperm.xlu0 %1702, %v1699
        %v1704 = vpop.permute.xlu0 %1703
        %1707 = vset.pattern.permute.xlu0 0
        %1708 = vperm.xlu0 %1707, %v1700
        %v1709 = vpop.permute.xlu0 %1708
        %vm1711 = vcmask 130048
        %v1713 = vsel %vm1711, %v1659, 0
        %v1716 = vsel %vm1711, %v1661, 0
        %1718 = vmatprep.subr.mxu0 %v1693
        %1719 = vmatpush1.msra.mxu0 %v1692
        %1720 = vmatprep.subr.mxu0 %v1691
        %1721 = vmatpush1.msra.mxu0 %v1690
        %1722 = vmatprep.subr.mxu0 %v1689
        %1723 = vmatpush1.msra.mxu0 %v1688
        %1724 = vmatprep.subr.mxu0 %v1687
        %1725 = vmatpush1.msra.mxu0 %v1686
        %1726 = vmatprep.subr.mxu0 %v1685
        %1727 = vmatpush1.msra.mxu0 %v1684
        %1728 = vmatprep.subr.mxu0 %v1683
        %1729 = vmatpush1.msra.mxu0 %v1682
        %1730 = vmatprep.subr.mxu0 %v1681
        %1731 = vmatpush1.msra.mxu0 %v1680
        %1732 = vmatprep.subr.mxu0 %v1679
        %1733 = vmatpush1.msra.mxu0 %v1678
        %1734 = vmatprep.subr.mxu0 %v1677
        %1735 = vmatpush1.msra.mxu0 %v1676
        %1736 = vmatprep.subr.mxu0 %v1675
        %1737 = vmatpush1.msra.mxu0 %v1674
        %1738 = vmatprep.subr.mxu0 %v1673
        %1739 = vmatpush1.msra.mxu0 %v1672
        %1740 = vmatprep.subr.mxu0 %v1671
        %1741 = vmatpush1.msra.mxu0 %v1670
        %1742 = vmatprep.subr.mxu0 %v1669
        %1743 = vmatpush1.msra.mxu0 %v1668
        %1744 = vmatprep.subr.mxu0 %v1667
        %1745 = vmatpush1.msra.mxu0 %v1666
        %1746 = vmatprep.subr.mxu0 %v1665
        %1747 = vmatpush1.msra.mxu0 %v1664
        %1748 = vmatprep.subr.mxu0 %v1663
        %1749 = vmatpush1.msra.mxu0 %v1662
        %1750 = vmatprep.subr.mxu0 0.0
        %1751 = vmatpush2.msra.mxu0 0.0
        %1752 = vmatprep.subr.mxu0 0.0
        %1753 = vmatpush2.msra.mxu0 0.0
        %1754 = vmatprep.subr.mxu0 0.0
        %1755 = vmatpush2.msra.mxu0 0.0
        %1756 = vmatprep.subr.mxu0 0.0
        %1757 = vmatpush2.msra.mxu0 0.0
        %1758 = vmatprep.subr.mxu0 0.0
        %1759 = vmatpush2.msra.mxu0 0.0
        %1760 = vmatprep.subr.mxu0 0.0
        %1761 = vmatpush2.msra.mxu0 0.0
        %1762 = vmatprep.subr.mxu0 0.0
        %1763 = vmatpush2.msra.mxu0 0.0
        %1764 = vmatprep.subr.mxu0 0.0
        %1765 = vmatpush2.msra.mxu0 0.0
        %1766 = vmatprep.subr.mxu0 0.0
        %1767 = vmatpush2.msra.mxu0 0.0
        %1768 = vmatprep.subr.mxu0 0.0
        %1769 = vmatpush2.msra.mxu0 0.0
        %1770 = vmatprep.subr.mxu0 0.0
        %1771 = vmatpush2.msra.mxu0 0.0
        %1772 = vmatprep.subr.mxu0 0.0
        %1773 = vmatpush2.msra.mxu0 0.0
        %1774 = vmatprep.subr.mxu0 0.0
        %1775 = vmatpush2.msra.mxu0 0.0
        %1776 = vmatprep.subr.mxu0 0.0
        %1777 = vmatpush2.msra.mxu0 0.0
        %1778 = vmatprep.subr.mxu0 %v1697
        %1779 = vmatpush2.msra.mxu0 %v1696
        %1780 = vmatprep.subr.mxu0 %v1695
        %1781 = vmatpush2.msra.mxu0 %v1694
        %1782 = vmatprep.mubr.f32.mxu0 %v1713
        %1783 = vmatmul.mubr.f32.gmra.mxu0 %v1658
        %v1784 = vpop.f32.mrf.mxu0
        %v1785 = vadd.f32 %v1704, %v1784
        %v1786 = vpop.f32.mrf.mxu0
        %v1787 = vadd.f32 %v1704, %v1786
        %1788 = vmatprep.mubr.f32.mxu0 %v1716
        %1789 = vmatmul.mubr.f32.gmra.mxu0 %v1660
        %v1790 = vpop.f32.mrf.mxu0
        %v1791 = vadd.f32 %v1709, %v1790
        %v1792 = vpop.f32.mrf.mxu0
        %v1793 = vadd.f32 %v1709, %v1792
        %1794 = vdwg.mxu0
        %v1795 = vmax.f32 %v1785, 0.0
        %v1796 = vmax.f32 %v1787, 0.0
        %v1797 = vmax.f32 %v1791, 0.0
        %v1798 = vmax.f32 %v1793, 0.0
        %1799 = vrot.lane.b32.xlu0 %v1795, 17
        %v1800 = vpop.permute.xlu0 %1799
        %1801 = vrot.lane.b32.xlu0 %v1797, 17
        %v1802 = vpop.permute.xlu0 %1801
        %1803 = vrot.lane.b32.xlu0 %v1796, 17
        %v1804 = vpop.permute.xlu0 %1803
        %1805 = vrot.lane.b32.xlu0 %v1798, 17
        %v1806 = vpop.permute.xlu0 %1805
        %v1807 = vsel %vm234, %v1800, %v1804
        %v1808 = vsel %vm234, %v1802, %v1806
        %v1809 = vsel %vm234, %v1804, %v1800
        %v1810 = vsel %vm234, %v1806, %v1802
        %v1811 = vld [vmem:[#allocation6] sm:$0xff]
        %v1812 = vld [vmem:[#allocation6 + $0x8] sm:$0xff]
        %v1813 = vld [vmem:[#allocation6 + $0x10] sm:$0xff]
        %v1814 = vld [vmem:[#allocation6 + $0x18] sm:$0xff]
        %v1815 = vmul.f32 %v1809, %v1811
        %v1816 = vmul.f32 %v1807, %v1812
        %v1817 = vmul.f32 %v1810, %v1813
        %v1818 = vmul.f32 %v1808, %v1814
        %1819 = vst [vmem:[#allocation2] sm:$0xff] %v1815
        %1820 = vst [vmem:[#allocation2 + $0x8] sm:$0xff] %v1816
        %1821 = vst [vmem:[#allocation2 + $0x10] sm:$0xff] %v1817
        %1822 = vst [vmem:[#allocation2 + $0x18] sm:$0xff] %v1818
        %1823 = vrot.lane.b32.xlu0 %v1795, 16
        %v1824 = vpop.permute.xlu0 %1823
        %1825 = vrot.lane.b32.xlu0 %v1797, 16
        %v1826 = vpop.permute.xlu0 %1825
        %1827 = vrot.lane.b32.xlu0 %v1796, 16
        %v1828 = vpop.permute.xlu0 %1827
        %1829 = vrot.lane.b32.xlu0 %v1798, 16
        %v1830 = vpop.permute.xlu0 %1829
        %v1831 = vsel %vm247, %v1824, %v1828
        %v1832 = vsel %vm247, %v1826, %v1830
        %v1833 = vsel %vm247, %v1828, %v1824
        %v1834 = vsel %vm247, %v1830, %v1826
        %v1835 = vld [vmem:[#allocation6 + $0x20] sm:$0xff]
        %v1836 = vld [vmem:[#allocation6 + $0x28] sm:$0xff]
        %v1837 = vld [vmem:[#allocation6 + $0x30] sm:$0xff]
        %v1838 = vld [vmem:[#allocation6 + $0x38] sm:$0xff]
        %v1839 = vmul.f32 %v1833, %v1835
        %v1840 = vmul.f32 %v1831, %v1836
        %v1841 = vmul.f32 %v1834, %v1837
        %v1842 = vmul.f32 %v1832, %v1838
        %1843 = vst [vmem:[#allocation2 + $0x20] sm:$0xff] %v1839
        %1844 = vst [vmem:[#allocation2 + $0x28] sm:$0xff] %v1840
        %1845 = vst [vmem:[#allocation2 + $0x30] sm:$0xff] %v1841
        %1846 = vst [vmem:[#allocation2 + $0x38] sm:$0xff] %v1842
        %1847 = vrot.lane.b32.xlu0 %v1795, 15
        %v1848 = vpop.permute.xlu0 %1847
        %1849 = vrot.lane.b32.xlu0 %v1797, 15
        %v1850 = vpop.permute.xlu0 %1849
        %1851 = vrot.lane.b32.xlu0 %v1796, 15
        %v1852 = vpop.permute.xlu0 %1851
        %1853 = vrot.lane.b32.xlu0 %v1798, 15
        %v1854 = vpop.permute.xlu0 %1853
        %v1855 = vsel %vm260, %v1848, %v1852
        %v1856 = vsel %vm260, %v1850, %v1854
        %v1857 = vsel %vm260, %v1852, %v1848
        %v1858 = vsel %vm260, %v1854, %v1850
        %v1859 = vld [vmem:[#allocation6 + $0x40] sm:$0xff]
        %v1860 = vld [vmem:[#allocation6 + $0x48] sm:$0xff]
        %v1861 = vld [vmem:[#allocation6 + $0x50] sm:$0xff]
        %v1862 = vld [vmem:[#allocation6 + $0x58] sm:$0xff]
        %v1863 = vmul.f32 %v1857, %v1859
        %v1864 = vmul.f32 %v1855, %v1860
        %v1865 = vmul.f32 %v1858, %v1861
        %v1866 = vmul.f32 %v1856, %v1862
        %1867 = vst [vmem:[#allocation2 + $0x40] sm:$0xff] %v1863
        %1868 = vst [vmem:[#allocation2 + $0x48] sm:$0xff] %v1864
        %1869 = vst [vmem:[#allocation2 + $0x50] sm:$0xff] %v1865
        %1870 = vst [vmem:[#allocation2 + $0x58] sm:$0xff] %v1866
        %1871 = vrot.lane.b32.xlu0 %v1795, 1
        %v1872 = vpop.permute.xlu0 %1871
        %1873 = vrot.lane.b32.xlu0 %v1797, 1
        %v1874 = vpop.permute.xlu0 %1873
        %1875 = vrot.lane.b32.xlu0 %v1796, 1
        %v1876 = vpop.permute.xlu0 %1875
        %1877 = vrot.lane.b32.xlu0 %v1798, 1
        %v1878 = vpop.permute.xlu0 %1877
        %v1879 = vsel %vm273, %v1872, %v1876
        %v1880 = vsel %vm273, %v1874, %v1878
        %v1881 = vsel %vm273, %v1876, %v1872
        %v1882 = vsel %vm273, %v1878, %v1874
        %v1883 = vld [vmem:[#allocation6 + $0x60] sm:$0xff]
        %v1884 = vld [vmem:[#allocation6 + $0x68] sm:$0xff]
        %v1885 = vld [vmem:[#allocation6 + $0x70] sm:$0xff]
        %v1886 = vld [vmem:[#allocation6 + $0x78] sm:$0xff]
        %v1887 = vmul.f32 %v1881, %v1883
        %v1888 = vmul.f32 %v1879, %v1884
        %v1889 = vmul.f32 %v1882, %v1885
        %v1890 = vmul.f32 %v1880, %v1886
        %1891 = vst [vmem:[#allocation2 + $0x60] sm:$0xff] %v1887
        %1892 = vst [vmem:[#allocation2 + $0x68] sm:$0xff] %v1888
        %1893 = vst [vmem:[#allocation2 + $0x70] sm:$0xff] %v1889
        %1894 = vst [vmem:[#allocation2 + $0x78] sm:$0xff] %v1890
        %1895 = vst [vmem:[#allocation2 + $0x80] sm:$0xff] %v1795
        %1896 = vst [vmem:[#allocation2 + $0x88] sm:$0xff] %v1796
        %1897 = vst [vmem:[#allocation2 + $0x90] sm:$0xff] %v1797
        %1898 = vst [vmem:[#allocation2 + $0x98] sm:$0xff] %v1798
        %1899 = vrot.lane.b32.xlu0 %v1795, 127
        %v1900 = vpop.permute.xlu0 %1899
        %1901 = vrot.lane.b32.xlu0 %v1797, 127
        %v1902 = vpop.permute.xlu0 %1901
        %1903 = vrot.lane.b32.xlu0 %v1796, 127
        %v1904 = vpop.permute.xlu0 %1903
        %1905 = vrot.lane.b32.xlu0 %v1798, 127
        %v1906 = vpop.permute.xlu0 %1905
        %v1907 = vsel %vm288, %v1900, %v1904
        %v1908 = vsel %vm288, %v1902, %v1906
        %v1909 = vsel %vm288, %v1904, %v1900
        %v1910 = vsel %vm288, %v1906, %v1902
        %v1911 = vld [vmem:[#allocation6 + $0xa0] sm:$0xff]
        %v1912 = vld [vmem:[#allocation6 + $0xa8] sm:$0xff]
        %v1913 = vld [vmem:[#allocation6 + $0xb0] sm:$0xff]
        %v1914 = vld [vmem:[#allocation6 + $0xb8] sm:$0xff]
        %v1915 = vmul.f32 %v1907, %v1911
        %v1916 = vmul.f32 %v1909, %v1912
        %v1917 = vmul.f32 %v1908, %v1913
        %v1918 = vmul.f32 %v1910, %v1914
        %1919 = vst [vmem:[#allocation2 + $0xa0] sm:$0xff] %v1915
        %1920 = vst [vmem:[#allocation2 + $0xa8] sm:$0xff] %v1916
        %1921 = vst [vmem:[#allocation2 + $0xb0] sm:$0xff] %v1917
        %1922 = vst [vmem:[#allocation2 + $0xb8] sm:$0xff] %v1918
        %1923 = vrot.lane.b32.xlu0 %v1795, 113
        %v1924 = vpop.permute.xlu0 %1923
        %1925 = vrot.lane.b32.xlu0 %v1797, 113
        %v1926 = vpop.permute.xlu0 %1925
        %1927 = vrot.lane.b32.xlu0 %v1796, 113
        %v1928 = vpop.permute.xlu0 %1927
        %1929 = vrot.lane.b32.xlu0 %v1798, 113
        %v1930 = vpop.permute.xlu0 %1929
        %v1931 = vsel %vm301, %v1924, %v1928
        %v1932 = vsel %vm301, %v1926, %v1930
        %v1933 = vsel %vm301, %v1928, %v1924
        %v1934 = vsel %vm301, %v1930, %v1926
        %v1935 = vld [vmem:[#allocation6 + $0xc0] sm:$0xff]
        %v1936 = vld [vmem:[#allocation6 + $0xc8] sm:$0xff]
        %v1937 = vld [vmem:[#allocation6 + $0xd0] sm:$0xff]
        %v1938 = vld [vmem:[#allocation6 + $0xd8] sm:$0xff]
        %v1939 = vmul.f32 %v1931, %v1935
        %v1940 = vmul.f32 %v1933, %v1936
        %v1941 = vmul.f32 %v1932, %v1937
        %v1942 = vmul.f32 %v1934, %v1938
        %1943 = vst [vmem:[#allocation2 + $0xc0] sm:$0xff] %v1939
        %1944 = vst [vmem:[#allocation2 + $0xc8] sm:$0xff] %v1940
        %1945 = vst [vmem:[#allocation2 + $0xd0] sm:$0xff] %v1941
        %1946 = vst [vmem:[#allocation2 + $0xd8] sm:$0xff] %v1942
        %1947 = vrot.lane.b32.xlu0 %v1795, 112
        %v1948 = vpop.permute.xlu0 %1947
        %1949 = vrot.lane.b32.xlu0 %v1797, 112
        %v1950 = vpop.permute.xlu0 %1949
        %1951 = vrot.lane.b32.xlu0 %v1796, 112
        %v1952 = vpop.permute.xlu0 %1951
        %1953 = vrot.lane.b32.xlu0 %v1798, 112
        %v1954 = vpop.permute.xlu0 %1953
        %v1955 = vsel %vm314, %v1948, %v1952
        %v1956 = vsel %vm314, %v1950, %v1954
        %v1957 = vsel %vm314, %v1952, %v1948
        %v1958 = vsel %vm314, %v1954, %v1950
        %v1959 = vld [vmem:[#allocation6 + $0xe0] sm:$0xff]
        %v1960 = vld [vmem:[#allocation6 + $0xe8] sm:$0xff]
        %v1961 = vld [vmem:[#allocation6 + $0xf0] sm:$0xff]
        %v1962 = vld [vmem:[#allocation6 + $0xf8] sm:$0xff]
        %v1963 = vmul.f32 %v1955, %v1959
        %v1964 = vmul.f32 %v1957, %v1960
        %v1965 = vmul.f32 %v1956, %v1961
        %v1966 = vmul.f32 %v1958, %v1962
        %1967 = vst [vmem:[#allocation2 + $0xe0] sm:$0xff] %v1963
        %1968 = vst [vmem:[#allocation2 + $0xe8] sm:$0xff] %v1964
        %1969 = vst [vmem:[#allocation2 + $0xf0] sm:$0xff] %v1965
        %1970 = vst [vmem:[#allocation2 + $0xf8] sm:$0xff] %v1966
        %1971 = vrot.lane.b32.xlu0 %v1795, 111
        %v1972 = vpop.permute.xlu0 %1971
        %1973 = vrot.lane.b32.xlu0 %v1797, 111
        %v1974 = vpop.permute.xlu0 %1973
        %1975 = vrot.lane.b32.xlu0 %v1796, 111
        %v1976 = vpop.permute.xlu0 %1975
        %1977 = vrot.lane.b32.xlu0 %v1798, 111
        %v1978 = vpop.permute.xlu0 %1977
        %v1979 = vsel %vm327, %v1972, %v1976
        %v1980 = vsel %vm327, %v1974, %v1978
        %v1981 = vsel %vm327, %v1976, %v1972
        %v1982 = vsel %vm327, %v1978, %v1974
        %v1983 = vld [vmem:[#allocation6 + $0x100] sm:$0xff]
        %v1984 = vld [vmem:[#allocation6 + $0x108] sm:$0xff]
        %v1985 = vld [vmem:[#allocation6 + $0x110] sm:$0xff]
        %v1986 = vld [vmem:[#allocation6 + $0x118] sm:$0xff]
        %v1987 = vmul.f32 %v1979, %v1983
        %v1988 = vmul.f32 %v1981, %v1984
        %v1989 = vmul.f32 %v1980, %v1985
        %v1990 = vmul.f32 %v1982, %v1986
        %1991 = vst [vmem:[#allocation2 + $0x100] sm:$0xff] %v1987
        %1992 = vst [vmem:[#allocation2 + $0x108] sm:$0xff] %v1988
        %1993 = vst [vmem:[#allocation2 + $0x110] sm:$0xff] %v1989
        %1994 = vst [vmem:[#allocation2 + $0x118] sm:$0xff] %v1990
        %s1995 = scalar_lea.vmem [#allocation3], 224
        %v1996 = vld [vmem:[%s1995] sm:$0xff]
        %v1997 = vld [vmem:[%s1995 + $0x8] sm:$0xff]
        %v1998 = vld [vmem:[%s1995 + $0x10] sm:$0xff]
        %v1999 = vld [vmem:[%s1995 + $0x18] sm:$0xff]
        %v2000 = vld [vmem:[#allocation2] sm:$0xff]
        %v2001 = vld [vmem:[#allocation2 + $0x8] sm:$0xff]
        %v2002 = vld [vmem:[#allocation2 + $0x10] sm:$0xff]
        %v2003 = vld [vmem:[#allocation2 + $0x18] sm:$0xff]
        %v2004 = vld [vmem:[#allocation2 + $0x20] sm:$0xff]
        %v2005 = vld [vmem:[#allocation2 + $0x28] sm:$0xff]
        %v2006 = vld [vmem:[#allocation2 + $0x30] sm:$0xff]
        %v2007 = vld [vmem:[#allocation2 + $0x38] sm:$0xff]
        %v2008 = vld [vmem:[#allocation2 + $0x40] sm:$0xff]
        %v2009 = vld [vmem:[#allocation2 + $0x48] sm:$0xff]
        %v2010 = vld [vmem:[#allocation2 + $0x50] sm:$0xff]
        %v2011 = vld [vmem:[#allocation2 + $0x58] sm:$0xff]
        %v2012 = vld [vmem:[#allocation2 + $0x60] sm:$0xff]
        %v2013 = vld [vmem:[#allocation2 + $0x68] sm:$0xff]
        %v2014 = vld [vmem:[#allocation2 + $0x70] sm:$0xff]
        %v2015 = vld [vmem:[#allocation2 + $0x78] sm:$0xff]
        %v2016 = vld [vmem:[#allocation2 + $0x80] sm:$0xff]
        %v2017 = vld [vmem:[#allocation2 + $0x88] sm:$0xff]
        %v2018 = vld [vmem:[#allocation2 + $0x90] sm:$0xff]
        %v2019 = vld [vmem:[#allocation2 + $0x98] sm:$0xff]
        %v2020 = vld [vmem:[#allocation2 + $0xa0] sm:$0xff]
        %v2021 = vld [vmem:[#allocation2 + $0xa8] sm:$0xff]
        %v2022 = vld [vmem:[#allocation2 + $0xb0] sm:$0xff]
        %v2023 = vld [vmem:[#allocation2 + $0xb8] sm:$0xff]
        %v2024 = vld [vmem:[#allocation2 + $0xc0] sm:$0xff]
        %v2025 = vld [vmem:[#allocation2 + $0xc8] sm:$0xff]
        %v2026 = vld [vmem:[#allocation2 + $0xd0] sm:$0xff]
        %v2027 = vld [vmem:[#allocation2 + $0xd8] sm:$0xff]
        %v2028 = vld [vmem:[#allocation2 + $0xe0] sm:$0xff]
        %v2029 = vld [vmem:[#allocation2 + $0xe8] sm:$0xff]
        %v2030 = vld [vmem:[#allocation2 + $0xf0] sm:$0xff]
        %v2031 = vld [vmem:[#allocation2 + $0xf8] sm:$0xff]
        %v2032 = vld [vmem:[#allocation2 + $0x100] sm:$0xff]
        %v2033 = vld [vmem:[#allocation2 + $0x108] sm:$0xff]
        %v2034 = vld [vmem:[#allocation2 + $0x110] sm:$0xff]
        %v2035 = vld [vmem:[#allocation2 + $0x118] sm:$0xff]
        %s2036 = scalar_lea.vmem %s2, 112
        %v2037 = vld [vmem:[%s2036] sm:$0xff]
        %v2038 = vld [vmem:[%s2036 + $0x8] sm:$0xff]
        %2040 = vset.pattern.permute.xlu0 0
        %2041 = vperm.xlu0 %2040, %v2037
        %v2042 = vpop.permute.xlu0 %2041
        %2045 = vset.pattern.permute.xlu0 0
        %2046 = vperm.xlu0 %2045, %v2038
        %v2047 = vpop.permute.xlu0 %2046
        %v2050 = vsel %vm1711, %v1997, 0
        %v2053 = vsel %vm1711, %v1999, 0
        %2055 = vmatprep.subr.mxu0 %v2031
        %2056 = vmatpush1.msra.mxu0 %v2030
        %2057 = vmatprep.subr.mxu0 %v2029
        %2058 = vmatpush1.msra.mxu0 %v2028
        %2059 = vmatprep.subr.mxu0 %v2027
        %2060 = vmatpush1.msra.mxu0 %v2026
        %2061 = vmatprep.subr.mxu0 %v2025
        %2062 = vmatpush1.msra.mxu0 %v2024
        %2063 = vmatprep.subr.mxu0 %v2023
        %2064 = vmatpush1.msra.mxu0 %v2022
        %2065 = vmatprep.subr.mxu0 %v2021
        %2066 = vmatpush1.msra.mxu0 %v2020
        %2067 = vmatprep.subr.mxu0 %v2019
        %2068 = vmatpush1.msra.mxu0 %v2018
        %2069 = vmatprep.subr.mxu0 %v2017
        %2070 = vmatpush1.msra.mxu0 %v2016
        %2071 = vmatprep.subr.mxu0 %v2015
        %2072 = vmatpush1.msra.mxu0 %v2014
        %2073 = vmatprep.subr.mxu0 %v2013
        %2074 = vmatpush1.msra.mxu0 %v2012
        %2075 = vmatprep.subr.mxu0 %v2011
        %2076 = vmatpush1.msra.mxu0 %v2010
        %2077 = vmatprep.subr.mxu0 %v2009
        %2078 = vmatpush1.msra.mxu0 %v2008
        %2079 = vmatprep.subr.mxu0 %v2007
        %2080 = vmatpush1.msra.mxu0 %v2006
        %2081 = vmatprep.subr.mxu0 %v2005
        %2082 = vmatpush1.msra.mxu0 %v2004
        %2083 = vmatprep.subr.mxu0 %v2003
        %2084 = vmatpush1.msra.mxu0 %v2002
        %2085 = vmatprep.subr.mxu0 %v2001
        %2086 = vmatpush1.msra.mxu0 %v2000
        %2087 = vmatprep.subr.mxu0 0.0
        %2088 = vmatpush2.msra.mxu0 0.0
        %2089 = vmatprep.subr.mxu0 0.0
        %2090 = vmatpush2.msra.mxu0 0.0
        %2091 = vmatprep.subr.mxu0 0.0
        %2092 = vmatpush2.msra.mxu0 0.0
        %2093 = vmatprep.subr.mxu0 0.0
        %2094 = vmatpush2.msra.mxu0 0.0
        %2095 = vmatprep.subr.mxu0 0.0
        %2096 = vmatpush2.msra.mxu0 0.0
        %2097 = vmatprep.subr.mxu0 0.0
        %2098 = vmatpush2.msra.mxu0 0.0
        %2099 = vmatprep.subr.mxu0 0.0
        %2100 = vmatpush2.msra.mxu0 0.0
        %2101 = vmatprep.subr.mxu0 0.0
        %2102 = vmatpush2.msra.mxu0 0.0
        %2103 = vmatprep.subr.mxu0 0.0
        %2104 = vmatpush2.msra.mxu0 0.0
        %2105 = vmatprep.subr.mxu0 0.0
        %2106 = vmatpush2.msra.mxu0 0.0
        %2107 = vmatprep.subr.mxu0 0.0
        %2108 = vmatpush2.msra.mxu0 0.0
        %2109 = vmatprep.subr.mxu0 0.0
        %2110 = vmatpush2.msra.mxu0 0.0
        %2111 = vmatprep.subr.mxu0 0.0
        %2112 = vmatpush2.msra.mxu0 0.0
        %2113 = vmatprep.subr.mxu0 0.0
        %2114 = vmatpush2.msra.mxu0 0.0
        %2115 = vmatprep.subr.mxu0 %v2035
        %2116 = vmatpush2.msra.mxu0 %v2034
        %2117 = vmatprep.subr.mxu0 %v2033
        %2118 = vmatpush2.msra.mxu0 %v2032
        %2119 = vmatprep.mubr.f32.mxu0 %v2050
        %2120 = vmatmul.mubr.f32.gmra.mxu0 %v1996
        %v2121 = vpop.f32.mrf.mxu0
        %v2122 = vadd.f32 %v2042, %v2121
        %v2123 = vpop.f32.mrf.mxu0
        %v2124 = vadd.f32 %v2042, %v2123
        %2125 = vmatprep.mubr.f32.mxu0 %v2053
        %2126 = vmatmul.mubr.f32.gmra.mxu0 %v1998
        %v2127 = vpop.f32.mrf.mxu0
        %v2128 = vadd.f32 %v2047, %v2127
        %v2129 = vpop.f32.mrf.mxu0
        %v2130 = vadd.f32 %v2047, %v2129
        %2131 = vdwg.mxu0
        %v2132 = vadd.f32 %v2122, %v1457
        %v2133 = vadd.f32 %v2124, %v1458
        %v2134 = vadd.f32 %v2128, %v1459
        %v2135 = vadd.f32 %v2130, %v1460
        %2136 = vrot.lane.b32.xlu0 %v2132, 17
        %v2137 = vpop.permute.xlu0 %2136
        %2138 = vrot.lane.b32.xlu0 %v2134, 17
        %v2139 = vpop.permute.xlu0 %2138
        %2140 = vrot.lane.b32.xlu0 %v2133, 17
        %v2141 = vpop.permute.xlu0 %2140
        %2142 = vrot.lane.b32.xlu0 %v2135, 17
        %v2143 = vpop.permute.xlu0 %2142
        %v2144 = vsel %vm234, %v2137, %v2141
        %v2145 = vsel %vm234, %v2139, %v2143
        %v2146 = vsel %vm234, %v2141, %v2137
        %v2147 = vsel %vm234, %v2143, %v2139
        %v2148 = vld [vmem:[#allocation6] sm:$0xff]
        %v2149 = vld [vmem:[#allocation6 + $0x8] sm:$0xff]
        %v2150 = vld [vmem:[#allocation6 + $0x10] sm:$0xff]
        %v2151 = vld [vmem:[#allocation6 + $0x18] sm:$0xff]
        %v2152 = vmul.f32 %v2146, %v2148
        %v2153 = vmul.f32 %v2144, %v2149
        %v2154 = vmul.f32 %v2147, %v2150
        %v2155 = vmul.f32 %v2145, %v2151
        %2156 = vst [vmem:[#allocation2] sm:$0xff] %v2152
        %2157 = vst [vmem:[#allocation2 + $0x8] sm:$0xff] %v2153
        %2158 = vst [vmem:[#allocation2 + $0x10] sm:$0xff] %v2154
        %2159 = vst [vmem:[#allocation2 + $0x18] sm:$0xff] %v2155
        %2160 = vrot.lane.b32.xlu0 %v2132, 16
        %v2161 = vpop.permute.xlu0 %2160
        %2162 = vrot.lane.b32.xlu0 %v2134, 16
        %v2163 = vpop.permute.xlu0 %2162
        %2164 = vrot.lane.b32.xlu0 %v2133, 16
        %v2165 = vpop.permute.xlu0 %2164
        %2166 = vrot.lane.b32.xlu0 %v2135, 16
        %v2167 = vpop.permute.xlu0 %2166
        %v2168 = vsel %vm247, %v2161, %v2165
        %v2169 = vsel %vm247, %v2163, %v2167
        %v2170 = vsel %vm247, %v2165, %v2161
        %v2171 = vsel %vm247, %v2167, %v2163
        %v2172 = vld [vmem:[#allocation6 + $0x20] sm:$0xff]
        %v2173 = vld [vmem:[#allocation6 + $0x28] sm:$0xff]
        %v2174 = vld [vmem:[#allocation6 + $0x30] sm:$0xff]
        %v2175 = vld [vmem:[#allocation6 + $0x38] sm:$0xff]
        %v2176 = vmul.f32 %v2170, %v2172
        %v2177 = vmul.f32 %v2168, %v2173
        %v2178 = vmul.f32 %v2171, %v2174
        %v2179 = vmul.f32 %v2169, %v2175
        %2180 = vst [vmem:[#allocation2 + $0x20] sm:$0xff] %v2176
        %2181 = vst [vmem:[#allocation2 + $0x28] sm:$0xff] %v2177
        %2182 = vst [vmem:[#allocation2 + $0x30] sm:$0xff] %v2178
        %2183 = vst [vmem:[#allocation2 + $0x38] sm:$0xff] %v2179
        %2184 = vrot.lane.b32.xlu0 %v2132, 15
        %v2185 = vpop.permute.xlu0 %2184
        %2186 = vrot.lane.b32.xlu0 %v2134, 15
        %v2187 = vpop.permute.xlu0 %2186
        %2188 = vrot.lane.b32.xlu0 %v2133, 15
        %v2189 = vpop.permute.xlu0 %2188
        %2190 = vrot.lane.b32.xlu0 %v2135, 15
        %v2191 = vpop.permute.xlu0 %2190
        %v2192 = vsel %vm260, %v2185, %v2189
        %v2193 = vsel %vm260, %v2187, %v2191
        %v2194 = vsel %vm260, %v2189, %v2185
        %v2195 = vsel %vm260, %v2191, %v2187
        %v2196 = vld [vmem:[#allocation6 + $0x40] sm:$0xff]
        %v2197 = vld [vmem:[#allocation6 + $0x48] sm:$0xff]
        %v2198 = vld [vmem:[#allocation6 + $0x50] sm:$0xff]
        %v2199 = vld [vmem:[#allocation6 + $0x58] sm:$0xff]
        %v2200 = vmul.f32 %v2194, %v2196
        %v2201 = vmul.f32 %v2192, %v2197
        %v2202 = vmul.f32 %v2195, %v2198
        %v2203 = vmul.f32 %v2193, %v2199
        %2204 = vst [vmem:[#allocation2 + $0x40] sm:$0xff] %v2200
        %2205 = vst [vmem:[#allocation2 + $0x48] sm:$0xff] %v2201
        %2206 = vst [vmem:[#allocation2 + $0x50] sm:$0xff] %v2202
        %2207 = vst [vmem:[#allocation2 + $0x58] sm:$0xff] %v2203
        %2208 = vrot.lane.b32.xlu0 %v2132, 1
        %v2209 = vpop.permute.xlu0 %2208
        %2210 = vrot.lane.b32.xlu0 %v2134, 1
        %v2211 = vpop.permute.xlu0 %2210
        %2212 = vrot.lane.b32.xlu0 %v2133, 1
        %v2213 = vpop.permute.xlu0 %2212
        %2214 = vrot.lane.b32.xlu0 %v2135, 1
        %v2215 = vpop.permute.xlu0 %2214
        %v2216 = vsel %vm273, %v2209, %v2213
        %v2217 = vsel %vm273, %v2211, %v2215
        %v2218 = vsel %vm273, %v2213, %v2209
        %v2219 = vsel %vm273, %v2215, %v2211
        %v2220 = vld [vmem:[#allocation6 + $0x60] sm:$0xff]
        %v2221 = vld [vmem:[#allocation6 + $0x68] sm:$0xff]
        %v2222 = vld [vmem:[#allocation6 + $0x70] sm:$0xff]
        %v2223 = vld [vmem:[#allocation6 + $0x78] sm:$0xff]
        %v2224 = vmul.f32 %v2218, %v2220
        %v2225 = vmul.f32 %v2216, %v2221
        %v2226 = vmul.f32 %v2219, %v2222
        %v2227 = vmul.f32 %v2217, %v2223
        %2228 = vst [vmem:[#allocation2 + $0x60] sm:$0xff] %v2224
        %2229 = vst [vmem:[#allocation2 + $0x68] sm:$0xff] %v2225
        %2230 = vst [vmem:[#allocation2 + $0x70] sm:$0xff] %v2226
        %2231 = vst [vmem:[#allocation2 + $0x78] sm:$0xff] %v2227
        %2232 = vst [vmem:[#allocation2 + $0x80] sm:$0xff] %v2132
        %2233 = vst [vmem:[#allocation2 + $0x88] sm:$0xff] %v2133
        %2234 = vst [vmem:[#allocation2 + $0x90] sm:$0xff] %v2134
        %2235 = vst [vmem:[#allocation2 + $0x98] sm:$0xff] %v2135
        %2236 = vrot.lane.b32.xlu0 %v2132, 127
        %v2237 = vpop.permute.xlu0 %2236
        %2238 = vrot.lane.b32.xlu0 %v2134, 127
        %v2239 = vpop.permute.xlu0 %2238
        %2240 = vrot.lane.b32.xlu0 %v2133, 127
        %v2241 = vpop.permute.xlu0 %2240
        %2242 = vrot.lane.b32.xlu0 %v2135, 127
        %v2243 = vpop.permute.xlu0 %2242
        %v2244 = vsel %vm288, %v2237, %v2241
        %v2245 = vsel %vm288, %v2239, %v2243
        %v2246 = vsel %vm288, %v2241, %v2237
        %v2247 = vsel %vm288, %v2243, %v2239
        %v2248 = vld [vmem:[#allocation6 + $0xa0] sm:$0xff]
        %v2249 = vld [vmem:[#allocation6 + $0xa8] sm:$0xff]
        %v2250 = vld [vmem:[#allocation6 + $0xb0] sm:$0xff]
        %v2251 = vld [vmem:[#allocation6 + $0xb8] sm:$0xff]
        %v2252 = vmul.f32 %v2244, %v2248
        %v2253 = vmul.f32 %v2246, %v2249
        %v2254 = vmul.f32 %v2245, %v2250
        %v2255 = vmul.f32 %v2247, %v2251
        %2256 = vst [vmem:[#allocation2 + $0xa0] sm:$0xff] %v2252
        %2257 = vst [vmem:[#allocation2 + $0xa8] sm:$0xff] %v2253
        %2258 = vst [vmem:[#allocation2 + $0xb0] sm:$0xff] %v2254
        %2259 = vst [vmem:[#allocation2 + $0xb8] sm:$0xff] %v2255
        %2260 = vrot.lane.b32.xlu0 %v2132, 113
        %v2261 = vpop.permute.xlu0 %2260
        %2262 = vrot.lane.b32.xlu0 %v2134, 113
        %v2263 = vpop.permute.xlu0 %2262
        %2264 = vrot.lane.b32.xlu0 %v2133, 113
        %v2265 = vpop.permute.xlu0 %2264
        %2266 = vrot.lane.b32.xlu0 %v2135, 113
        %v2267 = vpop.permute.xlu0 %2266
        %v2268 = vsel %vm301, %v2261, %v2265
        %v2269 = vsel %vm301, %v2263, %v2267
        %v2270 = vsel %vm301, %v2265, %v2261
        %v2271 = vsel %vm301, %v2267, %v2263
        %v2272 = vld [vmem:[#allocation6 + $0xc0] sm:$0xff]
        %v2273 = vld [vmem:[#allocation6 + $0xc8] sm:$0xff]
        %v2274 = vld [vmem:[#allocation6 + $0xd0] sm:$0xff]
        %v2275 = vld [vmem:[#allocation6 + $0xd8] sm:$0xff]
        %v2276 = vmul.f32 %v2268, %v2272
        %v2277 = vmul.f32 %v2270, %v2273
        %v2278 = vmul.f32 %v2269, %v2274
        %v2279 = vmul.f32 %v2271, %v2275
        %2280 = vst [vmem:[#allocation2 + $0xc0] sm:$0xff] %v2276
        %2281 = vst [vmem:[#allocation2 + $0xc8] sm:$0xff] %v2277
        %2282 = vst [vmem:[#allocation2 + $0xd0] sm:$0xff] %v2278
        %2283 = vst [vmem:[#allocation2 + $0xd8] sm:$0xff] %v2279
        %2284 = vrot.lane.b32.xlu0 %v2132, 112
        %v2285 = vpop.permute.xlu0 %2284
        %2286 = vrot.lane.b32.xlu0 %v2134, 112
        %v2287 = vpop.permute.xlu0 %2286
        %2288 = vrot.lane.b32.xlu0 %v2133, 112
        %v2289 = vpop.permute.xlu0 %2288
        %2290 = vrot.lane.b32.xlu0 %v2135, 112
        %v2291 = vpop.permute.xlu0 %2290
        %v2292 = vsel %vm314, %v2285, %v2289
        %v2293 = vsel %vm314, %v2287, %v2291
        %v2294 = vsel %vm314, %v2289, %v2285
        %v2295 = vsel %vm314, %v2291, %v2287
        %v2296 = vld [vmem:[#allocation6 + $0xe0] sm:$0xff]
        %v2297 = vld [vmem:[#allocation6 + $0xe8] sm:$0xff]
        %v2298 = vld [vmem:[#allocation6 + $0xf0] sm:$0xff]
        %v2299 = vld [vmem:[#allocation6 + $0xf8] sm:$0xff]
        %v2300 = vmul.f32 %v2292, %v2296
        %v2301 = vmul.f32 %v2294, %v2297
        %v2302 = vmul.f32 %v2293, %v2298
        %v2303 = vmul.f32 %v2295, %v2299
        %2304 = vst [vmem:[#allocation2 + $0xe0] sm:$0xff] %v2300
        %2305 = vst [vmem:[#allocation2 + $0xe8] sm:$0xff] %v2301
        %2306 = vst [vmem:[#allocation2 + $0xf0] sm:$0xff] %v2302
        %2307 = vst [vmem:[#allocation2 + $0xf8] sm:$0xff] %v2303
        %2308 = vrot.lane.b32.xlu0 %v2132, 111
        %v2309 = vpop.permute.xlu0 %2308
        %2310 = vrot.lane.b32.xlu0 %v2134, 111
        %v2311 = vpop.permute.xlu0 %2310
        %2312 = vrot.lane.b32.xlu0 %v2133, 111
        %v2313 = vpop.permute.xlu0 %2312
        %2314 = vrot.lane.b32.xlu0 %v2135, 111
        %v2315 = vpop.permute.xlu0 %2314
        %v2316 = vsel %vm327, %v2309, %v2313
        %v2317 = vsel %vm327, %v2311, %v2315
        %v2318 = vsel %vm327, %v2313, %v2309
        %v2319 = vsel %vm327, %v2315, %v2311
        %v2320 = vld [vmem:[#allocation6 + $0x100] sm:$0xff]
        %v2321 = vld [vmem:[#allocation6 + $0x108] sm:$0xff]
        %v2322 = vld [vmem:[#allocation6 + $0x110] sm:$0xff]
        %v2323 = vld [vmem:[#allocation6 + $0x118] sm:$0xff]
        %v2324 = vmul.f32 %v2316, %v2320
        %v2325 = vmul.f32 %v2318, %v2321
        %v2326 = vmul.f32 %v2317, %v2322
        %v2327 = vmul.f32 %v2319, %v2323
        %2328 = vst [vmem:[#allocation2 + $0x100] sm:$0xff] %v2324
        %2329 = vst [vmem:[#allocation2 + $0x108] sm:$0xff] %v2325
        %2330 = vst [vmem:[#allocation2 + $0x110] sm:$0xff] %v2326
        %2331 = vst [vmem:[#allocation2 + $0x118] sm:$0xff] %v2327
        %s2332 = scalar_lea.vmem [#allocation3], 256
        %v2333 = vld [vmem:[%s2332] sm:$0xff]
        %v2334 = vld [vmem:[%s2332 + $0x8] sm:$0xff]
        %v2335 = vld [vmem:[%s2332 + $0x10] sm:$0xff]
        %v2336 = vld [vmem:[%s2332 + $0x18] sm:$0xff]
        %v2337 = vld [vmem:[#allocation2] sm:$0xff]
        %v2338 = vld [vmem:[#allocation2 + $0x8] sm:$0xff]
        %v2339 = vld [vmem:[#allocation2 + $0x10] sm:$0xff]
        %v2340 = vld [vmem:[#allocation2 + $0x18] sm:$0xff]
        %v2341 = vld [vmem:[#allocation2 + $0x20] sm:$0xff]
        %v2342 = vld [vmem:[#allocation2 + $0x28] sm:$0xff]
        %v2343 = vld [vmem:[#allocation2 + $0x30] sm:$0xff]
        %v2344 = vld [vmem:[#allocation2 + $0x38] sm:$0xff]
        %v2345 = vld [vmem:[#allocation2 + $0x40] sm:$0xff]
        %v2346 = vld [vmem:[#allocation2 + $0x48] sm:$0xff]
        %v2347 = vld [vmem:[#allocation2 + $0x50] sm:$0xff]
        %v2348 = vld [vmem:[#allocation2 + $0x58] sm:$0xff]
        %v2349 = vld [vmem:[#allocation2 + $0x60] sm:$0xff]
        %v2350 = vld [vmem:[#allocation2 + $0x68] sm:$0xff]
        %v2351 = vld [vmem:[#allocation2 + $0x70] sm:$0xff]
        %v2352 = vld [vmem:[#allocation2 + $0x78] sm:$0xff]
        %v2353 = vld [vmem:[#allocation2 + $0x80] sm:$0xff]
        %v2354 = vld [vmem:[#allocation2 + $0x88] sm:$0xff]
        %v2355 = vld [vmem:[#allocation2 + $0x90] sm:$0xff]
        %v2356 = vld [vmem:[#allocation2 + $0x98] sm:$0xff]
        %v2357 = vld [vmem:[#allocation2 + $0xa0] sm:$0xff]
        %v2358 = vld [vmem:[#allocation2 + $0xa8] sm:$0xff]
        %v2359 = vld [vmem:[#allocation2 + $0xb0] sm:$0xff]
        %v2360 = vld [vmem:[#allocation2 + $0xb8] sm:$0xff]
        %v2361 = vld [vmem:[#allocation2 + $0xc0] sm:$0xff]
        %v2362 = vld [vmem:[#allocation2 + $0xc8] sm:$0xff]
        %v2363 = vld [vmem:[#allocation2 + $0xd0] sm:$0xff]
        %v2364 = vld [vmem:[#allocation2 + $0xd8] sm:$0xff]
        %v2365 = vld [vmem:[#allocation2 + $0xe0] sm:$0xff]
        %v2366 = vld [vmem:[#allocation2 + $0xe8] sm:$0xff]
        %v2367 = vld [vmem:[#allocation2 + $0xf0] sm:$0xff]
        %v2368 = vld [vmem:[#allocation2 + $0xf8] sm:$0xff]
        %v2369 = vld [vmem:[#allocation2 + $0x100] sm:$0xff]
        %v2370 = vld [vmem:[#allocation2 + $0x108] sm:$0xff]
        %v2371 = vld [vmem:[#allocation2 + $0x110] sm:$0xff]
        %v2372 = vld [vmem:[#allocation2 + $0x118] sm:$0xff]
        %s2373 = scalar_lea.vmem %s2, 128
        %v2374 = vld [vmem:[%s2373] sm:$0xff]
        %v2375 = vld [vmem:[%s2373 + $0x8] sm:$0xff]
        %2377 = vset.pattern.permute.xlu0 0
        %2378 = vperm.xlu0 %2377, %v2374
        %v2379 = vpop.permute.xlu0 %2378
        %2382 = vset.pattern.permute.xlu0 0
        %2383 = vperm.xlu0 %2382, %v2375
        %v2384 = vpop.permute.xlu0 %2383
        %v2387 = vsel %vm1711, %v2334, 0
        %v2390 = vsel %vm1711, %v2336, 0
        %2392 = vmatprep.subr.mxu0 %v2368
        %2393 = vmatpush1.msra.mxu0 %v2367
        %2394 = vmatprep.subr.mxu0 %v2366
        %2395 = vmatpush1.msra.mxu0 %v2365
        %2396 = vmatprep.subr.mxu0 %v2364
        %2397 = vmatpush1.msra.mxu0 %v2363
        %2398 = vmatprep.subr.mxu0 %v2362
        %2399 = vmatpush1.msra.mxu0 %v2361
        %2400 = vmatprep.subr.mxu0 %v2360
        %2401 = vmatpush1.msra.mxu0 %v2359
        %2402 = vmatprep.subr.mxu0 %v2358
        %2403 = vmatpush1.msra.mxu0 %v2357
        %2404 = vmatprep.subr.mxu0 %v2356
        %2405 = vmatpush1.msra.mxu0 %v2355
        %2406 = vmatprep.subr.mxu0 %v2354
        %2407 = vmatpush1.msra.mxu0 %v2353
        %2408 = vmatprep.subr.mxu0 %v2352
        %2409 = vmatpush1.msra.mxu0 %v2351
        %2410 = vmatprep.subr.mxu0 %v2350
        %2411 = vmatpush1.msra.mxu0 %v2349
        %2412 = vmatprep.subr.mxu0 %v2348
        %2413 = vmatpush1.msra.mxu0 %v2347
        %2414 = vmatprep.subr.mxu0 %v2346
        %2415 = vmatpush1.msra.mxu0 %v2345
        %2416 = vmatprep.subr.mxu0 %v2344
        %2417 = vmatpush1.msra.mxu0 %v2343
        %2418 = vmatprep.subr.mxu0 %v2342
        %2419 = vmatpush1.msra.mxu0 %v2341
        %2420 = vmatprep.subr.mxu0 %v2340
        %2421 = vmatpush1.msra.mxu0 %v2339
        %2422 = vmatprep.subr.mxu0 %v2338
        %2423 = vmatpush1.msra.mxu0 %v2337
        %2424 = vmatprep.subr.mxu0 0.0
        %2425 = vmatpush2.msra.mxu0 0.0
        %2426 = vmatprep.subr.mxu0 0.0
        %2427 = vmatpush2.msra.mxu0 0.0
        %2428 = vmatprep.subr.mxu0 0.0
        %2429 = vmatpush2.msra.mxu0 0.0
        %2430 = vmatprep.subr.mxu0 0.0
        %2431 = vmatpush2.msra.mxu0 0.0
        %2432 = vmatprep.subr.mxu0 0.0
        %2433 = vmatpush2.msra.mxu0 0.0
        %2434 = vmatprep.subr.mxu0 0.0
        %2435 = vmatpush2.msra.mxu0 0.0
        %2436 = vmatprep.subr.mxu0 0.0
        %2437 = vmatpush2.msra.mxu0 0.0
        %2438 = vmatprep.subr.mxu0 0.0
        %2439 = vmatpush2.msra.mxu0 0.0
        %2440 = vmatprep.subr.mxu0 0.0
        %2441 = vmatpush2.msra.mxu0 0.0
        %2442 = vmatprep.subr.mxu0 0.0
        %2443 = vmatpush2.msra.mxu0 0.0
        %2444 = vmatprep.subr.mxu0 0.0
        %2445 = vmatpush2.msra.mxu0 0.0
        %2446 = vmatprep.subr.mxu0 0.0
        %2447 = vmatpush2.msra.mxu0 0.0
        %2448 = vmatprep.subr.mxu0 0.0
        %2449 = vmatpush2.msra.mxu0 0.0
        %2450 = vmatprep.subr.mxu0 0.0
        %2451 = vmatpush2.msra.mxu0 0.0
        %2452 = vmatprep.subr.mxu0 %v2372
        %2453 = vmatpush2.msra.mxu0 %v2371
        %2454 = vmatprep.subr.mxu0 %v2370
        %2455 = vmatpush2.msra.mxu0 %v2369
        %2456 = vmatprep.mubr.f32.mxu0 %v2387
        %2457 = vmatmul.mubr.f32.gmra.mxu0 %v2333
        %v2458 = vpop.f32.mrf.mxu0
        %v2459 = vadd.f32 %v2379, %v2458
        %v2460 = vpop.f32.mrf.mxu0
        %v2461 = vadd.f32 %v2379, %v2460
        %2462 = vmatprep.mubr.f32.mxu0 %v2390
        %2463 = vmatmul.mubr.f32.gmra.mxu0 %v2335
        %v2464 = vpop.f32.mrf.mxu0
        %v2465 = vadd.f32 %v2384, %v2464
        %v2466 = vpop.f32.mrf.mxu0
        %v2467 = vadd.f32 %v2384, %v2466
        %2468 = vdwg.mxu0
        %v2469 = vmax.f32 %v2459, 0.0
        %v2470 = vmax.f32 %v2461, 0.0
        %v2471 = vmax.f32 %v2465, 0.0
        %v2472 = vmax.f32 %v2467, 0.0
        %2473 = vrot.lane.b32.xlu0 %v2469, 17
        %v2474 = vpop.permute.xlu0 %2473
        %2475 = vrot.lane.b32.xlu0 %v2471, 17
        %v2476 = vpop.permute.xlu0 %2475
        %2477 = vrot.lane.b32.xlu0 %v2470, 17
        %v2478 = vpop.permute.xlu0 %2477
        %2479 = vrot.lane.b32.xlu0 %v2472, 17
        %v2480 = vpop.permute.xlu0 %2479
        %v2481 = vsel %vm234, %v2474, %v2478
        %v2482 = vsel %vm234, %v2476, %v2480
        %v2483 = vsel %vm234, %v2478, %v2474
        %v2484 = vsel %vm234, %v2480, %v2476
        %v2485 = vld [vmem:[#allocation6] sm:$0xff]
        %v2486 = vld [vmem:[#allocation6 + $0x8] sm:$0xff]
        %v2487 = vld [vmem:[#allocation6 + $0x10] sm:$0xff]
        %v2488 = vld [vmem:[#allocation6 + $0x18] sm:$0xff]
        %v2489 = vmul.f32 %v2483, %v2485
        %v2490 = vmul.f32 %v2481, %v2486
        %v2491 = vmul.f32 %v2484, %v2487
        %v2492 = vmul.f32 %v2482, %v2488
        %2493 = vst [vmem:[#allocation2] sm:$0xff] %v2489
        %2494 = vst [vmem:[#allocation2 + $0x8] sm:$0xff] %v2490
        %2495 = vst [vmem:[#allocation2 + $0x10] sm:$0xff] %v2491
        %2496 = vst [vmem:[#allocation2 + $0x18] sm:$0xff] %v2492
        %2497 = vrot.lane.b32.xlu0 %v2469, 16
        %v2498 = vpop.permute.xlu0 %2497
        %2499 = vrot.lane.b32.xlu0 %v2471, 16
        %v2500 = vpop.permute.xlu0 %2499
        %2501 = vrot.lane.b32.xlu0 %v2470, 16
        %v2502 = vpop.permute.xlu0 %2501
        %2503 = vrot.lane.b32.xlu0 %v2472, 16
        %v2504 = vpop.permute.xlu0 %2503
        %v2505 = vsel %vm247, %v2498, %v2502
        %v2506 = vsel %vm247, %v2500, %v2504
        %v2507 = vsel %vm247, %v2502, %v2498
        %v2508 = vsel %vm247, %v2504, %v2500
        %v2509 = vld [vmem:[#allocation6 + $0x20] sm:$0xff]
        %v2510 = vld [vmem:[#allocation6 + $0x28] sm:$0xff]
        %v2511 = vld [vmem:[#allocation6 + $0x30] sm:$0xff]
        %v2512 = vld [vmem:[#allocation6 + $0x38] sm:$0xff]
        %v2513 = vmul.f32 %v2507, %v2509
        %v2514 = vmul.f32 %v2505, %v2510
        %v2515 = vmul.f32 %v2508, %v2511
        %v2516 = vmul.f32 %v2506, %v2512
        %2517 = vst [vmem:[#allocation2 + $0x20] sm:$0xff] %v2513
        %2518 = vst [vmem:[#allocation2 + $0x28] sm:$0xff] %v2514
        %2519 = vst [vmem:[#allocation2 + $0x30] sm:$0xff] %v2515
        %2520 = vst [vmem:[#allocation2 + $0x38] sm:$0xff] %v2516
        %2521 = vrot.lane.b32.xlu0 %v2469, 15
        %v2522 = vpop.permute.xlu0 %2521
        %2523 = vrot.lane.b32.xlu0 %v2471, 15
        %v2524 = vpop.permute.xlu0 %2523
        %2525 = vrot.lane.b32.xlu0 %v2470, 15
        %v2526 = vpop.permute.xlu0 %2525
        %2527 = vrot.lane.b32.xlu0 %v2472, 15
        %v2528 = vpop.permute.xlu0 %2527
        %v2529 = vsel %vm260, %v2522, %v2526
        %v2530 = vsel %vm260, %v2524, %v2528
        %v2531 = vsel %vm260, %v2526, %v2522
        %v2532 = vsel %vm260, %v2528, %v2524
        %v2533 = vld [vmem:[#allocation6 + $0x40] sm:$0xff]
        %v2534 = vld [vmem:[#allocation6 + $0x48] sm:$0xff]
        %v2535 = vld [vmem:[#allocation6 + $0x50] sm:$0xff]
        %v2536 = vld [vmem:[#allocation6 + $0x58] sm:$0xff]
        %v2537 = vmul.f32 %v2531, %v2533
        %v2538 = vmul.f32 %v2529, %v2534
        %v2539 = vmul.f32 %v2532, %v2535
        %v2540 = vmul.f32 %v2530, %v2536
        %2541 = vst [vmem:[#allocation2 + $0x40] sm:$0xff] %v2537
        %2542 = vst [vmem:[#allocation2 + $0x48] sm:$0xff] %v2538
        %2543 = vst [vmem:[#allocation2 + $0x50] sm:$0xff] %v2539
        %2544 = vst [vmem:[#allocation2 + $0x58] sm:$0xff] %v2540
        %2545 = vrot.lane.b32.xlu0 %v2469, 1
        %v2546 = vpop.permute.xlu0 %2545
        %2547 = vrot.lane.b32.xlu0 %v2471, 1
        %v2548 = vpop.permute.xlu0 %2547
        %2549 = vrot.lane.b32.xlu0 %v2470, 1
        %v2550 = vpop.permute.xlu0 %2549
        %2551 = vrot.lane.b32.xlu0 %v2472, 1
        %v2552 = vpop.permute.xlu0 %2551
        %v2553 = vsel %vm273, %v2546, %v2550
        %v2554 = vsel %vm273, %v2548, %v2552
        %v2555 = vsel %vm273, %v2550, %v2546
        %v2556 = vsel %vm273, %v2552, %v2548
        %v2557 = vld [vmem:[#allocation6 + $0x60] sm:$0xff]
        %v2558 = vld [vmem:[#allocation6 + $0x68] sm:$0xff]
        %v2559 = vld [vmem:[#allocation6 + $0x70] sm:$0xff]
        %v2560 = vld [vmem:[#allocation6 + $0x78] sm:$0xff]
        %v2561 = vmul.f32 %v2555, %v2557
        %v2562 = vmul.f32 %v2553, %v2558
        %v2563 = vmul.f32 %v2556, %v2559
        %v2564 = vmul.f32 %v2554, %v2560
        %2565 = vst [vmem:[#allocation2 + $0x60] sm:$0xff] %v2561
        %2566 = vst [vmem:[#allocation2 + $0x68] sm:$0xff] %v2562
        %2567 = vst [vmem:[#allocation2 + $0x70] sm:$0xff] %v2563
        %2568 = vst [vmem:[#allocation2 + $0x78] sm:$0xff] %v2564
        %2569 = vst [vmem:[#allocation2 + $0x80] sm:$0xff] %v2469
        %2570 = vst [vmem:[#allocation2 + $0x88] sm:$0xff] %v2470
        %2571 = vst [vmem:[#allocation2 + $0x90] sm:$0xff] %v2471
        %2572 = vst [vmem:[#allocation2 + $0x98] sm:$0xff] %v2472
        %2573 = vrot.lane.b32.xlu0 %v2469, 127
        %v2574 = vpop.permute.xlu0 %2573
        %2575 = vrot.lane.b32.xlu0 %v2471, 127
        %v2576 = vpop.permute.xlu0 %2575
        %2577 = vrot.lane.b32.xlu0 %v2470, 127
        %v2578 = vpop.permute.xlu0 %2577
        %2579 = vrot.lane.b32.xlu0 %v2472, 127
        %v2580 = vpop.permute.xlu0 %2579
        %v2581 = vsel %vm288, %v2574, %v2578
        %v2582 = vsel %vm288, %v2576, %v2580
        %v2583 = vsel %vm288, %v2578, %v2574
        %v2584 = vsel %vm288, %v2580, %v2576
        %v2585 = vld [vmem:[#allocation6 + $0xa0] sm:$0xff]
        %v2586 = vld [vmem:[#allocation6 + $0xa8] sm:$0xff]
        %v2587 = vld [vmem:[#allocation6 + $0xb0] sm:$0xff]
        %v2588 = vld [vmem:[#allocation6 + $0xb8] sm:$0xff]
        %v2589 = vmul.f32 %v2581, %v2585
        %v2590 = vmul.f32 %v2583, %v2586
        %v2591 = vmul.f32 %v2582, %v2587
        %v2592 = vmul.f32 %v2584, %v2588
        %2593 = vst [vmem:[#allocation2 + $0xa0] sm:$0xff] %v2589
        %2594 = vst [vmem:[#allocation2 + $0xa8] sm:$0xff] %v2590
        %2595 = vst [vmem:[#allocation2 + $0xb0] sm:$0xff] %v2591
        %2596 = vst [vmem:[#allocation2 + $0xb8] sm:$0xff] %v2592
        %2597 = vrot.lane.b32.xlu0 %v2469, 113
        %v2598 = vpop.permute.xlu0 %2597
        %2599 = vrot.lane.b32.xlu0 %v2471, 113
        %v2600 = vpop.permute.xlu0 %2599
        %2601 = vrot.lane.b32.xlu0 %v2470, 113
        %v2602 = vpop.permute.xlu0 %2601
        %2603 = vrot.lane.b32.xlu0 %v2472, 113
        %v2604 = vpop.permute.xlu0 %2603
        %v2605 = vsel %vm301, %v2598, %v2602
        %v2606 = vsel %vm301, %v2600, %v2604
        %v2607 = vsel %vm301, %v2602, %v2598
        %v2608 = vsel %vm301, %v2604, %v2600
        %v2609 = vld [vmem:[#allocation6 + $0xc0] sm:$0xff]
        %v2610 = vld [vmem:[#allocation6 + $0xc8] sm:$0xff]
        %v2611 = vld [vmem:[#allocation6 + $0xd0] sm:$0xff]
        %v2612 = vld [vmem:[#allocation6 + $0xd8] sm:$0xff]
        %v2613 = vmul.f32 %v2605, %v2609
        %v2614 = vmul.f32 %v2607, %v2610
        %v2615 = vmul.f32 %v2606, %v2611
        %v2616 = vmul.f32 %v2608, %v2612
        %2617 = vst [vmem:[#allocation2 + $0xc0] sm:$0xff] %v2613
        %2618 = vst [vmem:[#allocation2 + $0xc8] sm:$0xff] %v2614
        %2619 = vst [vmem:[#allocation2 + $0xd0] sm:$0xff] %v2615
        %2620 = vst [vmem:[#allocation2 + $0xd8] sm:$0xff] %v2616
        %2621 = vrot.lane.b32.xlu0 %v2469, 112
        %v2622 = vpop.permute.xlu0 %2621
        %2623 = vrot.lane.b32.xlu0 %v2471, 112
        %v2624 = vpop.permute.xlu0 %2623
        %2625 = vrot.lane.b32.xlu0 %v2470, 112
        %v2626 = vpop.permute.xlu0 %2625
        %2627 = vrot.lane.b32.xlu0 %v2472, 112
        %v2628 = vpop.permute.xlu0 %2627
        %v2629 = vsel %vm314, %v2622, %v2626
        %v2630 = vsel %vm314, %v2624, %v2628
        %v2631 = vsel %vm314, %v2626, %v2622
        %v2632 = vsel %vm314, %v2628, %v2624
        %v2633 = vld [vmem:[#allocation6 + $0xe0] sm:$0xff]
        %v2634 = vld [vmem:[#allocation6 + $0xe8] sm:$0xff]
        %v2635 = vld [vmem:[#allocation6 + $0xf0] sm:$0xff]
        %v2636 = vld [vmem:[#allocation6 + $0xf8] sm:$0xff]
        %v2637 = vmul.f32 %v2629, %v2633
        %v2638 = vmul.f32 %v2631, %v2634
        %v2639 = vmul.f32 %v2630, %v2635
        %v2640 = vmul.f32 %v2632, %v2636
        %2641 = vst [vmem:[#allocation2 + $0xe0] sm:$0xff] %v2637
        %2642 = vst [vmem:[#allocation2 + $0xe8] sm:$0xff] %v2638
        %2643 = vst [vmem:[#allocation2 + $0xf0] sm:$0xff] %v2639
        %2644 = vst [vmem:[#allocation2 + $0xf8] sm:$0xff] %v2640
        %2645 = vrot.lane.b32.xlu0 %v2469, 111
        %v2646 = vpop.permute.xlu0 %2645
        %2647 = vrot.lane.b32.xlu0 %v2471, 111
        %v2648 = vpop.permute.xlu0 %2647
        %2649 = vrot.lane.b32.xlu0 %v2470, 111
        %v2650 = vpop.permute.xlu0 %2649
        %2651 = vrot.lane.b32.xlu0 %v2472, 111
        %v2652 = vpop.permute.xlu0 %2651
        %v2653 = vsel %vm327, %v2646, %v2650
        %v2654 = vsel %vm327, %v2648, %v2652
        %v2655 = vsel %vm327, %v2650, %v2646
        %v2656 = vsel %vm327, %v2652, %v2648
        %v2657 = vld [vmem:[#allocation6 + $0x100] sm:$0xff]
        %v2658 = vld [vmem:[#allocation6 + $0x108] sm:$0xff]
        %v2659 = vld [vmem:[#allocation6 + $0x110] sm:$0xff]
        %v2660 = vld [vmem:[#allocation6 + $0x118] sm:$0xff]
        %v2661 = vmul.f32 %v2653, %v2657
        %v2662 = vmul.f32 %v2655, %v2658
        %v2663 = vmul.f32 %v2654, %v2659
        %v2664 = vmul.f32 %v2656, %v2660
        %2665 = vst [vmem:[#allocation2 + $0x100] sm:$0xff] %v2661
        %2666 = vst [vmem:[#allocation2 + $0x108] sm:$0xff] %v2662
        %2667 = vst [vmem:[#allocation2 + $0x110] sm:$0xff] %v2663
        %2668 = vst [vmem:[#allocation2 + $0x118] sm:$0xff] %v2664
        %s2669 = scalar_lea.vmem [#allocation3], 288
        %v2670 = vld [vmem:[%s2669] sm:$0xff]
        %v2671 = vld [vmem:[%s2669 + $0x8] sm:$0xff]
        %v2672 = vld [vmem:[%s2669 + $0x10] sm:$0xff]
        %v2673 = vld [vmem:[%s2669 + $0x18] sm:$0xff]
        %v2674 = vld [vmem:[#allocation2] sm:$0xff]
        %v2675 = vld [vmem:[#allocation2 + $0x8] sm:$0xff]
        %v2676 = vld [vmem:[#allocation2 + $0x10] sm:$0xff]
        %v2677 = vld [vmem:[#allocation2 + $0x18] sm:$0xff]
        %v2678 = vld [vmem:[#allocation2 + $0x20] sm:$0xff]
        %v2679 = vld [vmem:[#allocation2 + $0x28] sm:$0xff]
        %v2680 = vld [vmem:[#allocation2 + $0x30] sm:$0xff]
        %v2681 = vld [vmem:[#allocation2 + $0x38] sm:$0xff]
        %v2682 = vld [vmem:[#allocation2 + $0x40] sm:$0xff]
        %v2683 = vld [vmem:[#allocation2 + $0x48] sm:$0xff]
        %v2684 = vld [vmem:[#allocation2 + $0x50] sm:$0xff]
        %v2685 = vld [vmem:[#allocation2 + $0x58] sm:$0xff]
        %v2686 = vld [vmem:[#allocation2 + $0x60] sm:$0xff]
        %v2687 = vld [vmem:[#allocation2 + $0x68] sm:$0xff]
        %v2688 = vld [vmem:[#allocation2 + $0x70] sm:$0xff]
        %v2689 = vld [vmem:[#allocation2 + $0x78] sm:$0xff]
        %v2690 = vld [vmem:[#allocation2 + $0x80] sm:$0xff]
        %v2691 = vld [vmem:[#allocation2 + $0x88] sm:$0xff]
        %v2692 = vld [vmem:[#allocation2 + $0x90] sm:$0xff]
        %v2693 = vld [vmem:[#allocation2 + $0x98] sm:$0xff]
        %v2694 = vld [vmem:[#allocation2 + $0xa0] sm:$0xff]
        %v2695 = vld [vmem:[#allocation2 + $0xa8] sm:$0xff]
        %v2696 = vld [vmem:[#allocation2 + $0xb0] sm:$0xff]
        %v2697 = vld [vmem:[#allocation2 + $0xb8] sm:$0xff]
        %v2698 = vld [vmem:[#allocation2 + $0xc0] sm:$0xff]
        %v2699 = vld [vmem:[#allocation2 + $0xc8] sm:$0xff]
        %v2700 = vld [vmem:[#allocation2 + $0xd0] sm:$0xff]
        %v2701 = vld [vmem:[#allocation2 + $0xd8] sm:$0xff]
        %v2702 = vld [vmem:[#allocation2 + $0xe0] sm:$0xff]
        %v2703 = vld [vmem:[#allocation2 + $0xe8] sm:$0xff]
        %v2704 = vld [vmem:[#allocation2 + $0xf0] sm:$0xff]
        %v2705 = vld [vmem:[#allocation2 + $0xf8] sm:$0xff]
        %v2706 = vld [vmem:[#allocation2 + $0x100] sm:$0xff]
        %v2707 = vld [vmem:[#allocation2 + $0x108] sm:$0xff]
        %v2708 = vld [vmem:[#allocation2 + $0x110] sm:$0xff]
        %v2709 = vld [vmem:[#allocation2 + $0x118] sm:$0xff]
        %s2710 = scalar_lea.vmem %s2, 144
        %v2711 = vld [vmem:[%s2710] sm:$0xff]
        %v2712 = vld [vmem:[%s2710 + $0x8] sm:$0xff]
        %2714 = vset.pattern.permute.xlu0 0
        %2715 = vperm.xlu0 %2714, %v2711
        %v2716 = vpop.permute.xlu0 %2715
        %2719 = vset.pattern.permute.xlu0 0
        %2720 = vperm.xlu0 %2719, %v2712
        %v2721 = vpop.permute.xlu0 %2720
        %v2724 = vsel %vm1711, %v2671, 0
        %v2727 = vsel %vm1711, %v2673, 0
        %2729 = vmatprep.subr.mxu0 %v2705
        %2730 = vmatpush1.msra.mxu0 %v2704
        %2731 = vmatprep.subr.mxu0 %v2703
        %2732 = vmatpush1.msra.mxu0 %v2702
        %2733 = vmatprep.subr.mxu0 %v2701
        %2734 = vmatpush1.msra.mxu0 %v2700
        %2735 = vmatprep.subr.mxu0 %v2699
        %2736 = vmatpush1.msra.mxu0 %v2698
        %2737 = vmatprep.subr.mxu0 %v2697
        %2738 = vmatpush1.msra.mxu0 %v2696
        %2739 = vmatprep.subr.mxu0 %v2695
        %2740 = vmatpush1.msra.mxu0 %v2694
        %2741 = vmatprep.subr.mxu0 %v2693
        %2742 = vmatpush1.msra.mxu0 %v2692
        %2743 = vmatprep.subr.mxu0 %v2691
        %2744 = vmatpush1.msra.mxu0 %v2690
        %2745 = vmatprep.subr.mxu0 %v2689
        %2746 = vmatpush1.msra.mxu0 %v2688
        %2747 = vmatprep.subr.mxu0 %v2687
        %2748 = vmatpush1.msra.mxu0 %v2686
        %2749 = vmatprep.subr.mxu0 %v2685
        %2750 = vmatpush1.msra.mxu0 %v2684
        %2751 = vmatprep.subr.mxu0 %v2683
        %2752 = vmatpush1.msra.mxu0 %v2682
        %2753 = vmatprep.subr.mxu0 %v2681
        %2754 = vmatpush1.msra.mxu0 %v2680
        %2755 = vmatprep.subr.mxu0 %v2679
        %2756 = vmatpush1.msra.mxu0 %v2678
        %2757 = vmatprep.subr.mxu0 %v2677
        %2758 = vmatpush1.msra.mxu0 %v2676
        %2759 = vmatprep.subr.mxu0 %v2675
        %2760 = vmatpush1.msra.mxu0 %v2674
        %2761 = vmatprep.subr.mxu0 0.0
        %2762 = vmatpush2.msra.mxu0 0.0
        %2763 = vmatprep.subr.mxu0 0.0
        %2764 = vmatpush2.msra.mxu0 0.0
        %2765 = vmatprep.subr.mxu0 0.0
        %2766 = vmatpush2.msra.mxu0 0.0
        %2767 = vmatprep.subr.mxu0 0.0
        %2768 = vmatpush2.msra.mxu0 0.0
        %2769 = vmatprep.subr.mxu0 0.0
        %2770 = vmatpush2.msra.mxu0 0.0
        %2771 = vmatprep.subr.mxu0 0.0
        %2772 = vmatpush2.msra.mxu0 0.0
        %2773 = vmatprep.subr.mxu0 0.0
        %2774 = vmatpush2.msra.mxu0 0.0
        %2775 = vmatprep.subr.mxu0 0.0
        %2776 = vmatpush2.msra.mxu0 0.0
        %2777 = vmatprep.subr.mxu0 0.0
        %2778 = vmatpush2.msra.mxu0 0.0
        %2779 = vmatprep.subr.mxu0 0.0
        %2780 = vmatpush2.msra.mxu0 0.0
        %2781 = vmatprep.subr.mxu0 0.0
        %2782 = vmatpush2.msra.mxu0 0.0
        %2783 = vmatprep.subr.mxu0 0.0
        %2784 = vmatpush2.msra.mxu0 0.0
        %2785 = vmatprep.subr.mxu0 0.0
        %2786 = vmatpush2.msra.mxu0 0.0
        %2787 = vmatprep.subr.mxu0 0.0
        %2788 = vmatpush2.msra.mxu0 0.0
        %2789 = vmatprep.subr.mxu0 %v2709
        %2790 = vmatpush2.msra.mxu0 %v2708
        %2791 = vmatprep.subr.mxu0 %v2707
        %2792 = vmatpush2.msra.mxu0 %v2706
        %2793 = vmatprep.mubr.f32.mxu0 %v2724
        %2794 = vmatmul.mubr.f32.gmra.mxu0 %v2670
        %v2795 = vpop.f32.mrf.mxu0
        %v2796 = vadd.f32 %v2716, %v2795
        %v2797 = vpop.f32.mrf.mxu0
        %v2798 = vadd.f32 %v2716, %v2797
        %2799 = vmatprep.mubr.f32.mxu0 %v2727
        %2800 = vmatmul.mubr.f32.gmra.mxu0 %v2672
        %v2801 = vpop.f32.mrf.mxu0
        %v2802 = vadd.f32 %v2721, %v2801
        %v2803 = vpop.f32.mrf.mxu0
        %v2804 = vadd.f32 %v2721, %v2803
        %2805 = vdwg.mxu0
        %v2806 = vadd.f32 %v2796, %v2132
        %v2807 = vadd.f32 %v2798, %v2133
        %v2808 = vadd.f32 %v2802, %v2134
        %v2809 = vadd.f32 %v2804, %v2135
        %2810 = vrot.lane.b32.xlu0 %v2806, 17
        %v2811 = vpop.permute.xlu0 %2810
        %2812 = vrot.lane.b32.xlu0 %v2808, 17
        %v2813 = vpop.permute.xlu0 %2812
        %2814 = vrot.lane.b32.xlu0 %v2807, 17
        %v2815 = vpop.permute.xlu0 %2814
        %2816 = vrot.lane.b32.xlu0 %v2809, 17
        %v2817 = vpop.permute.xlu0 %2816
        %v2818 = vsel %vm234, %v2811, %v2815
        %v2819 = vsel %vm234, %v2813, %v2817
        %v2820 = vsel %vm234, %v2815, %v2811
        %v2821 = vsel %vm234, %v2817, %v2813
        %v2822 = vld [vmem:[#allocation6] sm:$0xff]
        %v2823 = vld [vmem:[#allocation6 + $0x8] sm:$0xff]
        %v2824 = vld [vmem:[#allocation6 + $0x10] sm:$0xff]
        %v2825 = vld [vmem:[#allocation6 + $0x18] sm:$0xff]
        %v2826 = vmul.f32 %v2820, %v2822
        %v2827 = vmul.f32 %v2818, %v2823
        %v2828 = vmul.f32 %v2821, %v2824
        %v2829 = vmul.f32 %v2819, %v2825
        %2830 = vst [vmem:[#allocation2] sm:$0xff] %v2826
        %2831 = vst [vmem:[#allocation2 + $0x8] sm:$0xff] %v2827
        %2832 = vst [vmem:[#allocation2 + $0x10] sm:$0xff] %v2828
        %2833 = vst [vmem:[#allocation2 + $0x18] sm:$0xff] %v2829
        %2834 = vrot.lane.b32.xlu0 %v2806, 16
        %v2835 = vpop.permute.xlu0 %2834
        %2836 = vrot.lane.b32.xlu0 %v2808, 16
        %v2837 = vpop.permute.xlu0 %2836
        %2838 = vrot.lane.b32.xlu0 %v2807, 16
        %v2839 = vpop.permute.xlu0 %2838
        %2840 = vrot.lane.b32.xlu0 %v2809, 16
        %v2841 = vpop.permute.xlu0 %2840
        %v2842 = vsel %vm247, %v2835, %v2839
        %v2843 = vsel %vm247, %v2837, %v2841
        %v2844 = vsel %vm247, %v2839, %v2835
        %v2845 = vsel %vm247, %v2841, %v2837
        %v2846 = vld [vmem:[#allocation6 + $0x20] sm:$0xff]
        %v2847 = vld [vmem:[#allocation6 + $0x28] sm:$0xff]
        %v2848 = vld [vmem:[#allocation6 + $0x30] sm:$0xff]
        %v2849 = vld [vmem:[#allocation6 + $0x38] sm:$0xff]
        %v2850 = vmul.f32 %v2844, %v2846
        %v2851 = vmul.f32 %v2842, %v2847
        %v2852 = vmul.f32 %v2845, %v2848
        %v2853 = vmul.f32 %v2843, %v2849
        %2854 = vst [vmem:[#allocation2 + $0x20] sm:$0xff] %v2850
        %2855 = vst [vmem:[#allocation2 + $0x28] sm:$0xff] %v2851
        %2856 = vst [vmem:[#allocation2 + $0x30] sm:$0xff] %v2852
        %2857 = vst [vmem:[#allocation2 + $0x38] sm:$0xff] %v2853
        %2858 = vrot.lane.b32.xlu0 %v2806, 15
        %v2859 = vpop.permute.xlu0 %2858
        %2860 = vrot.lane.b32.xlu0 %v2808, 15
        %v2861 = vpop.permute.xlu0 %2860
        %2862 = vrot.lane.b32.xlu0 %v2807, 15
        %v2863 = vpop.permute.xlu0 %2862
        %2864 = vrot.lane.b32.xlu0 %v2809, 15
        %v2865 = vpop.permute.xlu0 %2864
        %v2866 = vsel %vm260, %v2859, %v2863
        %v2867 = vsel %vm260, %v2861, %v2865
        %v2868 = vsel %vm260, %v2863, %v2859
        %v2869 = vsel %vm260, %v2865, %v2861
        %v2870 = vld [vmem:[#allocation6 + $0x40] sm:$0xff]
        %v2871 = vld [vmem:[#allocation6 + $0x48] sm:$0xff]
        %v2872 = vld [vmem:[#allocation6 + $0x50] sm:$0xff]
        %v2873 = vld [vmem:[#allocation6 + $0x58] sm:$0xff]
        %v2874 = vmul.f32 %v2868, %v2870
        %v2875 = vmul.f32 %v2866, %v2871
        %v2876 = vmul.f32 %v2869, %v2872
        %v2877 = vmul.f32 %v2867, %v2873
        %2878 = vst [vmem:[#allocation2 + $0x40] sm:$0xff] %v2874
        %2879 = vst [vmem:[#allocation2 + $0x48] sm:$0xff] %v2875
        %2880 = vst [vmem:[#allocation2 + $0x50] sm:$0xff] %v2876
        %2881 = vst [vmem:[#allocation2 + $0x58] sm:$0xff] %v2877
        %2882 = vrot.lane.b32.xlu0 %v2806, 1
        %v2883 = vpop.permute.xlu0 %2882
        %2884 = vrot.lane.b32.xlu0 %v2808, 1
        %v2885 = vpop.permute.xlu0 %2884
        %2886 = vrot.lane.b32.xlu0 %v2807, 1
        %v2887 = vpop.permute.xlu0 %2886
        %2888 = vrot.lane.b32.xlu0 %v2809, 1
        %v2889 = vpop.permute.xlu0 %2888
        %v2890 = vsel %vm273, %v2883, %v2887
        %v2891 = vsel %vm273, %v2885, %v2889
        %v2892 = vsel %vm273, %v2887, %v2883
        %v2893 = vsel %vm273, %v2889, %v2885
        %v2894 = vld [vmem:[#allocation6 + $0x60] sm:$0xff]
        %v2895 = vld [vmem:[#allocation6 + $0x68] sm:$0xff]
        %v2896 = vld [vmem:[#allocation6 + $0x70] sm:$0xff]
        %v2897 = vld [vmem:[#allocation6 + $0x78] sm:$0xff]
        %v2898 = vmul.f32 %v2892, %v2894
        %v2899 = vmul.f32 %v2890, %v2895
        %v2900 = vmul.f32 %v2893, %v2896
        %v2901 = vmul.f32 %v2891, %v2897
        %2902 = vst [vmem:[#allocation2 + $0x60] sm:$0xff] %v2898
        %2903 = vst [vmem:[#allocation2 + $0x68] sm:$0xff] %v2899
        %2904 = vst [vmem:[#allocation2 + $0x70] sm:$0xff] %v2900
        %2905 = vst [vmem:[#allocation2 + $0x78] sm:$0xff] %v2901
        %2906 = vst [vmem:[#allocation2 + $0x80] sm:$0xff] %v2806
        %2907 = vst [vmem:[#allocation2 + $0x88] sm:$0xff] %v2807
        %2908 = vst [vmem:[#allocation2 + $0x90] sm:$0xff] %v2808
        %2909 = vst [vmem:[#allocation2 + $0x98] sm:$0xff] %v2809
        %2910 = vrot.lane.b32.xlu0 %v2806, 127
        %v2911 = vpop.permute.xlu0 %2910
        %2912 = vrot.lane.b32.xlu0 %v2808, 127
        %v2913 = vpop.permute.xlu0 %2912
        %2914 = vrot.lane.b32.xlu0 %v2807, 127
        %v2915 = vpop.permute.xlu0 %2914
        %2916 = vrot.lane.b32.xlu0 %v2809, 127
        %v2917 = vpop.permute.xlu0 %2916
        %v2918 = vsel %vm288, %v2911, %v2915
        %v2919 = vsel %vm288, %v2913, %v2917
        %v2920 = vsel %vm288, %v2915, %v2911
        %v2921 = vsel %vm288, %v2917, %v2913
        %v2922 = vld [vmem:[#allocation6 + $0xa0] sm:$0xff]
        %v2923 = vld [vmem:[#allocation6 + $0xa8] sm:$0xff]
        %v2924 = vld [vmem:[#allocation6 + $0xb0] sm:$0xff]
        %v2925 = vld [vmem:[#allocation6 + $0xb8] sm:$0xff]
        %v2926 = vmul.f32 %v2918, %v2922
        %v2927 = vmul.f32 %v2920, %v2923
        %v2928 = vmul.f32 %v2919, %v2924
        %v2929 = vmul.f32 %v2921, %v2925
        %2930 = vst [vmem:[#allocation2 + $0xa0] sm:$0xff] %v2926
        %2931 = vst [vmem:[#allocation2 + $0xa8] sm:$0xff] %v2927
        %2932 = vst [vmem:[#allocation2 + $0xb0] sm:$0xff] %v2928
        %2933 = vst [vmem:[#allocation2 + $0xb8] sm:$0xff] %v2929
        %2934 = vrot.lane.b32.xlu0 %v2806, 113
        %v2935 = vpop.permute.xlu0 %2934
        %2936 = vrot.lane.b32.xlu0 %v2808, 113
        %v2937 = vpop.permute.xlu0 %2936
        %2938 = vrot.lane.b32.xlu0 %v2807, 113
        %v2939 = vpop.permute.xlu0 %2938
        %2940 = vrot.lane.b32.xlu0 %v2809, 113
        %v2941 = vpop.permute.xlu0 %2940
        %v2942 = vsel %vm301, %v2935, %v2939
        %v2943 = vsel %vm301, %v2937, %v2941
        %v2944 = vsel %vm301, %v2939, %v2935
        %v2945 = vsel %vm301, %v2941, %v2937
        %v2946 = vld [vmem:[#allocation6 + $0xc0] sm:$0xff]
        %v2947 = vld [vmem:[#allocation6 + $0xc8] sm:$0xff]
        %v2948 = vld [vmem:[#allocation6 + $0xd0] sm:$0xff]
        %v2949 = vld [vmem:[#allocation6 + $0xd8] sm:$0xff]
        %v2950 = vmul.f32 %v2942, %v2946
        %v2951 = vmul.f32 %v2944, %v2947
        %v2952 = vmul.f32 %v2943, %v2948
        %v2953 = vmul.f32 %v2945, %v2949
        %2954 = vst [vmem:[#allocation2 + $0xc0] sm:$0xff] %v2950
        %2955 = vst [vmem:[#allocation2 + $0xc8] sm:$0xff] %v2951
        %2956 = vst [vmem:[#allocation2 + $0xd0] sm:$0xff] %v2952
        %2957 = vst [vmem:[#allocation2 + $0xd8] sm:$0xff] %v2953
        %2958 = vrot.lane.b32.xlu0 %v2806, 112
        %v2959 = vpop.permute.xlu0 %2958
        %2960 = vrot.lane.b32.xlu0 %v2808, 112
        %v2961 = vpop.permute.xlu0 %2960
        %2962 = vrot.lane.b32.xlu0 %v2807, 112
        %v2963 = vpop.permute.xlu0 %2962
        %2964 = vrot.lane.b32.xlu0 %v2809, 112
        %v2965 = vpop.permute.xlu0 %2964
        %v2966 = vsel %vm314, %v2959, %v2963
        %v2967 = vsel %vm314, %v2961, %v2965
        %v2968 = vsel %vm314, %v2963, %v2959
        %v2969 = vsel %vm314, %v2965, %v2961
        %v2970 = vld [vmem:[#allocation6 + $0xe0] sm:$0xff]
        %v2971 = vld [vmem:[#allocation6 + $0xe8] sm:$0xff]
        %v2972 = vld [vmem:[#allocation6 + $0xf0] sm:$0xff]
        %v2973 = vld [vmem:[#allocation6 + $0xf8] sm:$0xff]
        %v2974 = vmul.f32 %v2966, %v2970
        %v2975 = vmul.f32 %v2968, %v2971
        %v2976 = vmul.f32 %v2967, %v2972
        %v2977 = vmul.f32 %v2969, %v2973
        %2978 = vst [vmem:[#allocation2 + $0xe0] sm:$0xff] %v2974
        %2979 = vst [vmem:[#allocation2 + $0xe8] sm:$0xff] %v2975
        %2980 = vst [vmem:[#allocation2 + $0xf0] sm:$0xff] %v2976
        %2981 = vst [vmem:[#allocation2 + $0xf8] sm:$0xff] %v2977
        %2982 = vrot.lane.b32.xlu0 %v2806, 111
        %v2983 = vpop.permute.xlu0 %2982
        %2984 = vrot.lane.b32.xlu0 %v2808, 111
        %v2985 = vpop.permute.xlu0 %2984
        %2986 = vrot.lane.b32.xlu0 %v2807, 111
        %v2987 = vpop.permute.xlu0 %2986
        %2988 = vrot.lane.b32.xlu0 %v2809, 111
        %v2989 = vpop.permute.xlu0 %2988
        %v2990 = vsel %vm327, %v2983, %v2987
        %v2991 = vsel %vm327, %v2985, %v2989
        %v2992 = vsel %vm327, %v2987, %v2983
        %v2993 = vsel %vm327, %v2989, %v2985
        %v2994 = vld [vmem:[#allocation6 + $0x100] sm:$0xff]
        %v2995 = vld [vmem:[#allocation6 + $0x108] sm:$0xff]
        %v2996 = vld [vmem:[#allocation6 + $0x110] sm:$0xff]
        %v2997 = vld [vmem:[#allocation6 + $0x118] sm:$0xff]
        %v2998 = vmul.f32 %v2990, %v2994
        %v2999 = vmul.f32 %v2992, %v2995
        %v3000 = vmul.f32 %v2991, %v2996
        %v3001 = vmul.f32 %v2993, %v2997
        %3002 = vst [vmem:[#allocation2 + $0x100] sm:$0xff] %v2998
        %3003 = vst [vmem:[#allocation2 + $0x108] sm:$0xff] %v2999
        %3004 = vst [vmem:[#allocation2 + $0x110] sm:$0xff] %v3000
        %3005 = vst [vmem:[#allocation2 + $0x118] sm:$0xff] %v3001
        %s3006 = scalar_lea.vmem [#allocation3], 320
        %v3007 = vld [vmem:[%s3006] sm:$0xf]
        %v3008 = vld [vmem:[%s3006 + $0x8] sm:$0xf]
        %v3009 = vld [vmem:[#allocation2] sm:$0xff]
        %v3010 = vld [vmem:[#allocation2 + $0x8] sm:$0xff]
        %v3011 = vld [vmem:[#allocation2 + $0x10] sm:$0xff]
        %v3012 = vld [vmem:[#allocation2 + $0x18] sm:$0xff]
        %v3013 = vld [vmem:[#allocation2 + $0x20] sm:$0xff]
        %v3014 = vld [vmem:[#allocation2 + $0x28] sm:$0xff]
        %v3015 = vld [vmem:[#allocation2 + $0x30] sm:$0xff]
        %v3016 = vld [vmem:[#allocation2 + $0x38] sm:$0xff]
        %v3017 = vld [vmem:[#allocation2 + $0x40] sm:$0xff]
        %v3018 = vld [vmem:[#allocation2 + $0x48] sm:$0xff]
        %v3019 = vld [vmem:[#allocation2 + $0x50] sm:$0xff]
        %v3020 = vld [vmem:[#allocation2 + $0x58] sm:$0xff]
        %v3021 = vld [vmem:[#allocation2 + $0x60] sm:$0xff]
        %v3022 = vld [vmem:[#allocation2 + $0x68] sm:$0xff]
        %v3023 = vld [vmem:[#allocation2 + $0x70] sm:$0xff]
        %v3024 = vld [vmem:[#allocation2 + $0x78] sm:$0xff]
        %v3025 = vld [vmem:[#allocation2 + $0x80] sm:$0xff]
        %v3026 = vld [vmem:[#allocation2 + $0x88] sm:$0xff]
        %v3027 = vld [vmem:[#allocation2 + $0x90] sm:$0xff]
        %v3028 = vld [vmem:[#allocation2 + $0x98] sm:$0xff]
        %v3029 = vld [vmem:[#allocation2 + $0xa0] sm:$0xff]
        %v3030 = vld [vmem:[#allocation2 + $0xa8] sm:$0xff]
        %v3031 = vld [vmem:[#allocation2 + $0xb0] sm:$0xff]
        %v3032 = vld [vmem:[#allocation2 + $0xb8] sm:$0xff]
        %v3033 = vld [vmem:[#allocation2 + $0xc0] sm:$0xff]
        %v3034 = vld [vmem:[#allocation2 + $0xc8] sm:$0xff]
        %v3035 = vld [vmem:[#allocation2 + $0xd0] sm:$0xff]
        %v3036 = vld [vmem:[#allocation2 + $0xd8] sm:$0xff]
        %v3037 = vld [vmem:[#allocation2 + $0xe0] sm:$0xff]
        %v3038 = vld [vmem:[#allocation2 + $0xe8] sm:$0xff]
        %v3039 = vld [vmem:[#allocation2 + $0xf0] sm:$0xff]
        %v3040 = vld [vmem:[#allocation2 + $0xf8] sm:$0xff]
        %v3041 = vld [vmem:[#allocation2 + $0x100] sm:$0xff]
        %v3042 = vld [vmem:[#allocation2 + $0x108] sm:$0xff]
        %v3043 = vld [vmem:[#allocation2 + $0x110] sm:$0xff]
        %v3044 = vld [vmem:[#allocation2 + $0x118] sm:$0xff]
        %s3045 = scalar_lea.vmem %s2, 160
        %v3046 = vld [vmem:[%s3045] sm:$0xf]
        %3048 = vset.pattern.permute.xlu0 0
        %3049 = vperm.xlu0 %3048, %v3046
        %v3050 = vpop.permute.xlu0 %3049
        %v3053 = vsel %vm1711, %v3008, 0
        %3055 = vmatprep.subr.mxu0 %v3040
        %3056 = vmatpush1.msra.mxu0 %v3039
        %3057 = vmatprep.subr.mxu0 %v3038
        %3058 = vmatpush1.msra.mxu0 %v3037
        %3059 = vmatprep.subr.mxu0 %v3036
        %3060 = vmatpush1.msra.mxu0 %v3035
        %3061 = vmatprep.subr.mxu0 %v3034
        %3062 = vmatpush1.msra.mxu0 %v3033
        %3063 = vmatprep.subr.mxu0 %v3032
        %3064 = vmatpush1.msra.mxu0 %v3031
        %3065 = vmatprep.subr.mxu0 %v3030
        %3066 = vmatpush1.msra.mxu0 %v3029
        %3067 = vmatprep.subr.mxu0 %v3028
        %3068 = vmatpush1.msra.mxu0 %v3027
        %3069 = vmatprep.subr.mxu0 %v3026
        %3070 = vmatpush1.msra.mxu0 %v3025
        %3071 = vmatprep.subr.mxu0 %v3024
        %3072 = vmatpush1.msra.mxu0 %v3023
        %3073 = vmatprep.subr.mxu0 %v3022
        %3074 = vmatpush1.msra.mxu0 %v3021
        %3075 = vmatprep.subr.mxu0 %v3020
        %3076 = vmatpush1.msra.mxu0 %v3019
        %3077 = vmatprep.subr.mxu0 %v3018
        %3078 = vmatpush1.msra.mxu0 %v3017
        %3079 = vmatprep.subr.mxu0 %v3016
        %3080 = vmatpush1.msra.mxu0 %v3015
        %3081 = vmatprep.subr.mxu0 %v3014
        %3082 = vmatpush1.msra.mxu0 %v3013
        %3083 = vmatprep.subr.mxu0 %v3012
        %3084 = vmatpush1.msra.mxu0 %v3011
        %3085 = vmatprep.subr.mxu0 %v3010
        %3086 = vmatpush1.msra.mxu0 %v3009
        %3087 = vmatprep.subr.mxu0 0.0
        %3088 = vmatpush2.msra.mxu0 0.0
        %3089 = vmatprep.subr.mxu0 0.0
        %3090 = vmatpush2.msra.mxu0 0.0
        %3091 = vmatprep.subr.mxu0 0.0
        %3092 = vmatpush2.msra.mxu0 0.0
        %3093 = vmatprep.subr.mxu0 0.0
        %3094 = vmatpush2.msra.mxu0 0.0
        %3095 = vmatprep.subr.mxu0 0.0
        %3096 = vmatpush2.msra.mxu0 0.0
        %3097 = vmatprep.subr.mxu0 0.0
        %3098 = vmatpush2.msra.mxu0 0.0
        %3099 = vmatprep.subr.mxu0 0.0
        %3100 = vmatpush2.msra.mxu0 0.0
        %3101 = vmatprep.subr.mxu0 0.0
        %3102 = vmatpush2.msra.mxu0 0.0
        %3103 = vmatprep.subr.mxu0 0.0
        %3104 = vmatpush2.msra.mxu0 0.0
        %3105 = vmatprep.subr.mxu0 0.0
        %3106 = vmatpush2.msra.mxu0 0.0
        %3107 = vmatprep.subr.mxu0 0.0
        %3108 = vmatpush2.msra.mxu0 0.0
        %3109 = vmatprep.subr.mxu0 0.0
        %3110 = vmatpush2.msra.mxu0 0.0
        %3111 = vmatprep.subr.mxu0 0.0
        %3112 = vmatpush2.msra.mxu0 0.0
        %3113 = vmatprep.subr.mxu0 0.0
        %3114 = vmatpush2.msra.mxu0 0.0
        %3115 = vmatprep.subr.mxu0 %v3044
        %3116 = vmatpush2.msra.mxu0 %v3043
        %3117 = vmatprep.subr.mxu0 %v3042
        %3118 = vmatpush2.msra.mxu0 %v3041
        %3119 = vmatprep.mubr.f32.mxu0 %v3053
        %3120 = vmatmul.mubr.f32.gmra.mxu0 %v3007
        %v3121 = vpop.f32.mrf.mxu0
        %v3122 = vadd.f32 %v3050, %v3121
        %v3123 = vpop.f32.mrf.mxu0
        %v3124 = vadd.f32 %v3050, %v3123
        %3125 = vdwg.mxu0
        %v3128 = vcombine.low %v3122, %v3124
        %3130 = vst [vmem:[%s220] sm:$0xff] %v3128
        %s3131 = sand.u32 %s117, 1
        %s3132 = scalar_lea.sflag [#allocation5], %s3131
        %s3133 = sand.u32 %s117, 1
        %s3134 = smul.addr %s3133, 8
        %s3135 = scalar_lea.vmem [#allocation8], %s3134
        // Predicated region
        $region45: #{tpu_custom_call.1} parent=35 // pred_check
          %p3136 = pneg %p127
        $region46: #{tpu_custom_call.1} parent=35 // pred_check_branch
          %3138 = sbr.rel (%p3136) target = $region48
        $region47: #{tpu_custom_call.1} parent=35 // pred_region
          %s3140 = ssub.s32 128, 128
          %3141 = vsyncadd %s3132, %s3140
          %s3142 = smul.addr %s20, 2
          %s3143 = smul.addr %s3142, 64
          %s3144 = scalar_lea.hbm %s4, %s3143
          %s3146 = sshll.u32 %s3135, 4
          %s3147 = int_to_ptr.vmem [resolvable:$true] %s3146
          %3149 = dma.vmem_to_hbm [thread:$0]  %s3147, 128, %s3144, %s3132
        $region48: #{tpu_custom_call.1} parent=35 // pred_fallthru
          _
      $region36: #{tpu_custom_call.1} parent=5 // pred_fallthru
        _
      %p3150 = scmp.le.s32.totalorder 2, %s15
      // Predicated region
      $region49: #{tpu_custom_call.1} parent=5 // pred_check
        %p3151 = pneg %p3150
      $region50: #{tpu_custom_call.1} parent=5 // pred_check_branch
        %3153 = sbr.rel (%p3151) target = $region52
      $region51: #{tpu_custom_call.1} parent=5 // pred_region
        %s3154 = ssub.s32 %s15, 2
        // Predicated region
        $region53: #{tpu_custom_call.1} parent=51 // pred_check
          %p3155 = pneg %p133
        $region54: #{tpu_custom_call.1} parent=51 // pred_check_branch
          %3157 = sbr.rel (%p3155) target = $region56
        $region55: #{tpu_custom_call.1} parent=51 // pred_region
          %s3158 = sand.u32 %s118, 1
          %s3159 = scalar_lea.sflag [#allocation5], %s3158
          %s3160 = sand.u32 %s118, 1
          %s3161 = smul.addr %s3160, 8
          %s3162 = scalar_lea.vmem [#allocation8], %s3161
          %3163 = dma.done %s3159, 128
        $region56: #{tpu_custom_call.1} parent=51 // pred_fallthru
          _
      $region52: #{tpu_custom_call.1} parent=5 // pred_fallthru
        _
    $region6: #{tpu_custom_call.1} parent=1 // loop_footer
      %s19 = sadd.s32 1, %s15
    $region7: #{tpu_custom_call.1} parent=1 // loop_footer_branch
      %14 = sbr.rel target = $region3
    $region8: #{tpu_custom_call.1} parent=1 // loop_exit
      _
    %3164 = vsyncpa [#allocation4], 1
    %s3165 = scalar_lea.sflag [#allocation4], 1
    %3166 = vsyncpa %s3165, 1
    %3167 = vsyncpa [#allocation7], 1
    %3168 = vsyncpa [#allocation5], 1
    %s3169 = scalar_lea.sflag [#allocation5], 1
    %3170 = vsyncpa %s3169, 1

</llo_original>
